<compile_context>
chip_gen: v6e
topology: v6e:2x2x1
jax: 0.10.0
libtpu: 0.0.40
codegen_flags: <defaults>
</compile_context>

<pallas_src>
import functools

import jax
import jax.numpy as jnp
from jax.experimental import pallas as pl
from jax.experimental.pallas import tpu as pltpu

DTYPE_MXU = jnp.bfloat16


# ----------------------------------------------------------------------------
# Kernel 1: fused 3x3 "same" conv + bias + ReLU (im2col fused in-kernel).
#
# The padded image is passed flattened to (Hp*Wp, Cin); tap (dy,dx) of the 3x3
# stencil is then the row window starting at dy*Wp+dx, so the kernel performs
# nine accumulating (rows,Cin)@(Cin,Cout) bf16 MXU dots on shifted in-VMEM
# views of a single input copy.  Output rows at positions h*Wp+w are the valid
# conv outputs; the wrapper folds/crops them back to NHWC.
# ----------------------------------------------------------------------------
def _conv3x3_kernel(x_ref, w_ref, b_ref, o_ref, *, n_rows, wp):
    # x_ref: (Hp*Wp, Cin) bf16   w_ref: (9, Cin, Cout) bf16
    # b_ref: (1, Cout)    f32    o_ref: (n_rows, Cout)  bf16
    x = x_ref[...]
    cout = w_ref.shape[-1]
    acc = jnp.zeros((n_rows, cout), jnp.float32)
    for dy in range(3):
        for dx in range(3):
            shift = dy * wp + dx
            acc = acc + jnp.dot(x[shift:shift + n_rows, :],
                                w_ref[3 * dy + dx],
                                preferred_element_type=jnp.float32)
    y = jnp.maximum(acc + b_ref[...], 0.0)            # f32 epilogue (v5e-safe)
    o_ref[...] = y.astype(o_ref.dtype)


def conv3x3_bias_relu(x_nhwc, w, b):
    """Fused 3x3 same-conv + bias + ReLU.  x:(Bc,H,W,Cin) -> (Bc,H,W,Cout) bf16."""
    bc, h, wd, cin = x_nhwc.shape
    cout = w.shape[-1]
    hp, wp = h + 2, wd + 2
    n = hp * wp
    n_rows = n - 2 * wp - 2        # covers every valid output position exactly

    xp = jnp.pad(x_nhwc, ((0, 0), (1, 1), (1, 1), (0, 0)))
    xp = xp.reshape(bc, n, cin).astype(DTYPE_MXU)

    flops = 2 * bc * n_rows * 9 * cin * cout
    bytes_accessed = (xp.size * 2 + w.size * 2 + b.size * 4
                      + bc * n_rows * cout * 2)

    out = pl.pallas_call(
        functools.partial(_conv3x3_kernel, n_rows=n_rows, wp=wp),
        out_shape=jax.ShapeDtypeStruct((bc, n_rows, cout), DTYPE_MXU),
        grid=(bc,),
        in_specs=[
            pl.BlockSpec((None, n, cin), lambda i: (i, 0, 0)),
            pl.BlockSpec((9, cin, cout), lambda i: (0, 0, 0)),
            pl.BlockSpec((1, cout), lambda i: (0, 0)),
        ],
        out_specs=pl.BlockSpec((None, n_rows, cout), lambda i: (i, 0, 0)),
        compiler_params=pltpu.CompilerParams(
            dimension_semantics=("parallel",)),
        cost_estimate=pl.CostEstimate(flops=flops, transcendentals=0,
                                      bytes_accessed=bytes_accessed),
    )(xp, w.astype(DTYPE_MXU), b.astype(jnp.float32))

    # output row of pixel (y, x) is y*Wp + x: pad 2 rows, fold, drop pad cols.
    out = jnp.pad(out, ((0, 0), (0, h * wp - n_rows), (0, 0)))
    return out.reshape(bc, h, wp, cout)[:, :, :wd, :]


def avgpool2x2(x_nhwc):
    bc, h, wd, c = x_nhwc.shape
    x = x_nhwc.astype(jnp.float32)
    return x.reshape(bc, h // 2, 2, wd // 2, 2, c).mean(axis=(2, 4))


# ----------------------------------------------------------------------------
# Kernel 2: image-discriminator head — global sum-pool + psi (VPU mul + lane
# reduce, no N=1 MXU matmul) + class-embedding projection.  psi_b is in SMEM.
# ----------------------------------------------------------------------------
def _img_head_kernel(feat_ref, psi_w_ref, emb_ref, psi_b_ref, h_ref, s_ref):
    h = jnp.sum(feat_ref[...].astype(jnp.float32), axis=1)         # (Bc, C)
    psi = jnp.sum(h * psi_w_ref[...], axis=-1, keepdims=True)      # VPU + XLU
    proj = jnp.sum(h * emb_ref[...], axis=-1, keepdims=True)
    s_ref[...] = psi + proj + psi_b_ref[0, 0]
    h_ref[...] = h.astype(h_ref.dtype)


def img_score_head(feat, psi_w, psi_b, emb):
    """feat:(Bc,HW,C) -> (pooled features (Bc,C) bf16, scores (Bc,1) f32)."""
    bc, hw, c = feat.shape
    return pl.pallas_call(
        _img_head_kernel,
        out_shape=(jax.ShapeDtypeStruct((bc, c), DTYPE_MXU),
                   jax.ShapeDtypeStruct((bc, 1), jnp.float32)),
        in_specs=[
            pl.BlockSpec((bc, hw, c), lambda: (0, 0, 0)),
            pl.BlockSpec((1, c), lambda: (0, 0)),
            pl.BlockSpec((bc, c), lambda: (0, 0)),
            pl.BlockSpec(memory_space=pltpu.MemorySpace.SMEM),      # scalar bias
        ],
        out_specs=(pl.BlockSpec((bc, c), lambda: (0, 0)),
                   pl.BlockSpec((bc, 1), lambda: (0, 0))),
    )(feat.astype(DTYPE_MXU), psi_w.astype(jnp.float32),
      emb.astype(jnp.float32), psi_b.astype(jnp.float32))


# ----------------------------------------------------------------------------
# Kernel 3: fused 2-layer MLP + linear score head (LatentDisc / CombDisc).
# ----------------------------------------------------------------------------
def _mlp_head_kernel(x_ref, w1_ref, b1_ref, w2_ref, b2_ref, v_ref, c_ref,
                     feat_ref, s_ref):
    h1 = jnp.dot(x_ref[...], w1_ref[...], preferred_element_type=jnp.float32)
    h1 = jnp.maximum(h1 + b1_ref[...], 0.0)
    h2 = jnp.dot(h1.astype(DTYPE_MXU), w2_ref[...],
                 preferred_element_type=jnp.float32)
    feat = jnp.maximum(h2 + b2_ref[...], 0.0)
    s_ref[...] = jnp.sum(feat * v_ref[...], axis=-1, keepdims=True) + c_ref[0, 0]
    feat_ref[...] = feat.astype(feat_ref.dtype)


def mlp_head(x, w1, b1, w2, b2, v, c):
    """x:(M,D1) -> (features (M,D3) bf16, scores (M,1) f32)."""
    m, d1 = x.shape
    d2 = w1.shape[1]
    d3 = w2.shape[1]
    return pl.pallas_call(
        _mlp_head_kernel,
        out_shape=(jax.ShapeDtypeStruct((m, d3), DTYPE_MXU),
                   jax.ShapeDtypeStruct((m, 1), jnp.float32)),
        in_specs=[
            pl.BlockSpec((m, d1), lambda: (0, 0)),
            pl.BlockSpec((d1, d2), lambda: (0, 0)),
            pl.BlockSpec((1, d2), lambda: (0, 0)),
            pl.BlockSpec((d2, d3), lambda: (0, 0)),
            pl.BlockSpec((1, d3), lambda: (0, 0)),
            pl.BlockSpec((1, d3), lambda: (0, 0)),
            pl.BlockSpec(memory_space=pltpu.MemorySpace.SMEM),      # scalar bias
        ],
        out_specs=(pl.BlockSpec((m, d3), lambda: (0, 0)),
                   pl.BlockSpec((m, 1), lambda: (0, 0))),
    )(x.astype(DTYPE_MXU), w1.astype(DTYPE_MXU), b1.astype(jnp.float32),
      w2.astype(DTYPE_MXU), b2.astype(jnp.float32), v.astype(jnp.float32),
      c.astype(jnp.float32))


# ----------------------------------------------------------------------------
# Discriminators + BigBiGAN forward (pure-JAX glue around the Pallas kernels)
# ----------------------------------------------------------------------------
def img_discriminator(params, imgs_nchw, cls):
    """DiscBigGAN-style projection discriminator -> (features (Bc,C), score (Bc,1))."""
    x = jnp.transpose(imgs_nchw, (0, 2, 3, 1))                    # NCHW -> NHWC
    y = conv3x3_bias_relu(x, params["conv1_w"], params["conv1_b"])
    y = avgpool2x2(y)
    y = conv3x3_bias_relu(y, params["conv2_w"], params["conv2_b"])
    y = avgpool2x2(y)
    bc, h, wd, c = y.shape
    feat = y.reshape(bc, h * wd, c)
    emb = params["embed"][cls]                                    # (Bc, C) gather
    return img_score_head(feat, params["psi_w"], params["psi_b"], emb)


def latent_discriminator(params, z):
    return mlp_head(z, params["lat_w1"], params["lat_b1"],
                    params["lat_w2"], params["lat_b2"],
                    params["lat_v"], params["lat_c"])


def comb_discriminator(params, latent_feat, img_feat):
    x = jnp.concatenate([latent_feat, img_feat], axis=-1)
    _, score = mlp_head(x, params["comb_w1"], params["comb_b1"],
                        params["comb_w2"], params["comb_b2"],
                        params["comb_v"], params["comb_c"])
    return score


def bigbigan_forward(params, img_real, img_gen, z_noise, z_img, cls, noise_key,
                     *, add_noise):
    b = img_real.shape[0]

    if add_noise > 0:
        noise = add_noise * jax.random.normal(noise_key, img_real.shape,
                                              img_real.dtype)
    else:
        noise = jnp.zeros_like(img_real)

    # image discriminator: real & generated batched into a single pass
    imgs = jnp.concatenate([img_real + noise, img_gen + noise], axis=0)
    cls2 = jnp.concatenate([cls, cls], axis=0)
    img_out, img_score = img_discriminator(params, imgs, cls2)
    img_real_out, img_gen_out = img_out[:b], img_out[b:]
    img_real_score, img_gen_score = img_score[:b], img_score[b:]

    # latent discriminator: z_noise & z_img batched into a single pass
    z_out, z_score = latent_discriminator(
        params, jnp.concatenate([z_noise, z_img], axis=0))
    z_noise_out, z_img_out = z_out[:b], z_out[b:]
    z_noise_score, z_img_score = z_score[:b], z_score[b:]

    # combined discriminator: (z_img, img_real) & (z_noise, img_gen) batched
    latent_feat = jnp.concatenate([z_img_out, z_noise_out], axis=0)
    img_feat = jnp.concatenate([img_real_out, img_gen_out], axis=0)
    comb_score = comb_discriminator(params, latent_feat, img_feat)
    comb_real_score, comb_gen_score = comb_score[:b], comb_score[b:]

    return {
        "img_real_score": img_real_score,
        "img_gen_score": img_gen_score,
        "z_noise_score": z_noise_score,
        "z_img_score": z_img_score,
        "comb_real_score": comb_real_score,
        "comb_gen_score": comb_gen_score,
    }


def init_params(key, *, in_ch=3, width=128, latent_dim=32, n_classes=4):
    ks = jax.random.split(key, 10)
    s = 0.05
    f32, bf16 = jnp.float32, DTYPE_MXU
    return {
        # DiscBigGAN (image discriminator): conv weights in (tap, Cin, Cout)
        "conv1_w": (s * jax.random.normal(ks[0], (9, in_ch, width))).astype(bf16),
        "conv1_b": jnp.zeros((1, width), f32),
        "conv2_w": (s * jax.random.normal(ks[1], (9, width, width))).astype(bf16),
        "conv2_b": jnp.zeros((1, width), f32),
        "psi_w": (s * jax.random.normal(ks[2], (1, width))).astype(f32),
        "psi_b": jnp.zeros((1, 1), f32),
        "embed": (s * jax.random.normal(ks[3], (n_classes, width))).astype(f32),
        # LatentDisc
        "lat_w1": (s * jax.random.normal(ks[4], (latent_dim, width))).astype(bf16),
        "lat_b1": jnp.zeros((1, width), f32),
        "lat_w2": (s * jax.random.normal(ks[5], (width, width))).astype(bf16),
        "lat_b2": jnp.zeros((1, width), f32),
        "lat_v": (s * jax.random.normal(ks[6], (1, width))).astype(f32),
        "lat_c": jnp.zeros((1, 1), f32),
        # CombDisc (input = concat(latent features, image features))
        "comb_w1": (s * jax.random.normal(ks[7], (2 * width, width))).astype(bf16),
        "comb_b1": jnp.zeros((1, width), f32),
        "comb_w2": (s * jax.random.normal(ks[8], (width, width))).astype(bf16),
        "comb_b2": jnp.zeros((1, width), f32),
        "comb_v": (s * jax.random.normal(ks[9], (1, width))).astype(f32),
        "comb_c": jnp.zeros((1, 1), f32),
    }


if __name__ == "__main__":
    B, C_IN, H, W = 2, 3, 16, 16
    LATENT, N_CLASSES, WIDTH = 32, 4, 128
    ADD_NOISE = 0.1

    root = jax.random.PRNGKey(0)
    k_p, k_r, k_g, k_zn, k_zi, k_n = jax.random.split(root, 6)

    params = init_params(k_p, in_ch=C_IN, width=WIDTH, latent_dim=LATENT,
                         n_classes=N_CLASSES)

    img_real = jax.random.normal(k_r, (B, C_IN, H, W), jnp.float32)   # NCHW
    img_gen = jax.random.normal(k_g, (B, C_IN, H, W), jnp.float32)
    z_noise = jax.random.normal(k_zn, (B, LATENT), jnp.float32)
    z_img = jax.random.normal(k_zi, (B, LATENT), jnp.float32)
    cls = jnp.array([0, 1], dtype=jnp.int32)

    fwd = jax.jit(functools.partial(bigbigan_forward, add_noise=ADD_NOISE))
    out = fwd(params, img_real, img_gen, z_noise, z_img, cls, k_n)
    jax.block_until_ready(out)

    # quick self-check of the fused conv kernel against a pure-jnp reference
    xin = jnp.transpose(img_real, (0, 2, 3, 1))
    got = conv3x3_bias_relu(xin, params["conv1_w"], params["conv1_b"])
    xpad = jnp.pad(xin, ((0, 0), (1, 1), (1, 1), (0, 0)))
    xpad = xpad.astype(DTYPE_MXU).astype(jnp.float32)
    wref = params["conv1_w"].astype(jnp.float32)
    ref = sum(jnp.einsum("bhwc,cd->bhwd",
                         xpad[:, dy:dy + H, dx:dx + W, :], wref[3 * dy + dx])
              for dy in range(3) for dx in range(3))
    ref = jnp.maximum(ref + params["conv1_b"], 0.0)
    assert float(jnp.max(jnp.abs(got.astype(jnp.float32) - ref))) < 5e-2

    for name in ("img_real_score", "img_gen_score", "z_noise_score",
                 "z_img_score", "comb_real_score", "comb_gen_score"):
        assert out[name].shape == (B, 1), name
        assert bool(jnp.all(jnp.isfinite(out[name]))), name

    print("KERNEL_OK")
</pallas_src>

<mosaic_0001>
module attributes {stable_mosaic.version = 11 : i64} {
  func.func @_conv3x3_kernel(%arg0: i32, %arg1: memref<1x324x3xbf16, #tpu.memory_space<vmem>>, %arg2: memref<9x3x128xbf16, #tpu.memory_space<vmem>>, %arg3: memref<1x128xf32, #tpu.memory_space<vmem>>, %arg4: memref<1x286x128xbf16, #tpu.memory_space<vmem>>) attributes {dimension_semantics = [#tpu.dimension_semantics<parallel>], iteration_bounds = array<i64: 4>, scalar_prefetch = 0 : i64, scratch_operands = 0 : i64, tpu.core_type = #tpu.core_type<tc>, window_params = [{transform_indices = @transform_0, window_bounds = array<i64: 1, 324, 3>}, {pipeline_mode = #tpu.pipeline_mode<synchronous>, transform_indices = @transform_1, window_bounds = array<i64: 9, 3, 128>}, {pipeline_mode = #tpu.pipeline_mode<synchronous>, transform_indices = @transform_2, window_bounds = array<i64: 1, 128>}, {transform_indices = @transform_3, window_bounds = array<i64: 1, 286, 128>}]} {
    %c0 = arith.constant 0 : index
    %c0_0 = arith.constant 0 : index
    %c0_1 = arith.constant 0 : index
    %0 = vector.load %arg1[%c0, %c0_0, %c0_1] : memref<1x324x3xbf16, #tpu.memory_space<vmem>>, vector<1x324x3xbf16>
    %1 = vector.shape_cast %0 : vector<1x324x3xbf16> to vector<324x3xbf16>
    %cst = arith.constant 0.000000e+00 : f32
    %2 = vector.broadcast %cst : f32 to vector<286x128xf32>
    %3 = vector.extract_strided_slice %1 {offsets = [0, 0], sizes = [286, 3], strides = [1, 1]} : vector<324x3xbf16> to vector<286x3xbf16>
    %c0_2 = arith.constant 0 : index
    %c0_3 = arith.constant 0 : index
    %c0_4 = arith.constant 0 : index
    %4 = vector.load %arg2[%c0_2, %c0_3, %c0_4] : memref<9x3x128xbf16, #tpu.memory_space<vmem>>, vector<1x3x128xbf16>
    %5 = vector.shape_cast %4 : vector<1x3x128xbf16> to vector<3x128xbf16>
    %cst_5 = arith.constant dense<0.000000e+00> : vector<286x128xf32>
    %6 = tpu.matmul %3, %5, %cst_5 {dimension_numbers = #tpu.dot_dimension_numbers<[1], [0], [0], [1], [0, 0, 1, 1], [], []>} : vector<286x3xbf16>, vector<3x128xbf16>, vector<286x128xf32> -> vector<286x128xf32>
    %7 = arith.addf %2, %6 : vector<286x128xf32>
    %8 = vector.extract_strided_slice %1 {offsets = [1, 0], sizes = [286, 3], strides = [1, 1]} : vector<324x3xbf16> to vector<286x3xbf16>
    %c1 = arith.constant 1 : index
    %c0_6 = arith.constant 0 : index
    %c0_7 = arith.constant 0 : index
    %9 = vector.load %arg2[%c1, %c0_6, %c0_7] : memref<9x3x128xbf16, #tpu.memory_space<vmem>>, vector<1x3x128xbf16>
    %10 = vector.shape_cast %9 : vector<1x3x128xbf16> to vector<3x128xbf16>
    %cst_8 = arith.constant dense<0.000000e+00> : vector<286x128xf32>
    %11 = tpu.matmul %8, %10, %cst_8 {dimension_numbers = #tpu.dot_dimension_numbers<[1], [0], [0], [1], [0, 0, 1, 1], [], []>} : vector<286x3xbf16>, vector<3x128xbf16>, vector<286x128xf32> -> vector<286x128xf32>
    %12 = arith.addf %7, %11 : vector<286x128xf32>
    %13 = vector.extract_strided_slice %1 {offsets = [2, 0], sizes = [286, 3], strides = [1, 1]} : vector<324x3xbf16> to vector<286x3xbf16>
    %c2 = arith.constant 2 : index
    %c0_9 = arith.constant 0 : index
    %c0_10 = arith.constant 0 : index
    %14 = vector.load %arg2[%c2, %c0_9, %c0_10] : memref<9x3x128xbf16, #tpu.memory_space<vmem>>, vector<1x3x128xbf16>
    %15 = vector.shape_cast %14 : vector<1x3x128xbf16> to vector<3x128xbf16>
    %cst_11 = arith.constant dense<0.000000e+00> : vector<286x128xf32>
    %16 = tpu.matmul %13, %15, %cst_11 {dimension_numbers = #tpu.dot_dimension_numbers<[1], [0], [0], [1], [0, 0, 1, 1], [], []>} : vector<286x3xbf16>, vector<3x128xbf16>, vector<286x128xf32> -> vector<286x128xf32>
    %17 = arith.addf %12, %16 : vector<286x128xf32>
    %18 = vector.extract_strided_slice %1 {offsets = [18, 0], sizes = [286, 3], strides = [1, 1]} : vector<324x3xbf16> to vector<286x3xbf16>
    %c3 = arith.constant 3 : index
    %c0_12 = arith.constant 0 : index
    %c0_13 = arith.constant 0 : index
    %19 = vector.load %arg2[%c3, %c0_12, %c0_13] : memref<9x3x128xbf16, #tpu.memory_space<vmem>>, vector<1x3x128xbf16>
    %20 = vector.shape_cast %19 : vector<1x3x128xbf16> to vector<3x128xbf16>
    %cst_14 = arith.constant dense<0.000000e+00> : vector<286x128xf32>
    %21 = tpu.matmul %18, %20, %cst_14 {dimension_numbers = #tpu.dot_dimension_numbers<[1], [0], [0], [1], [0, 0, 1, 1], [], []>} : vector<286x3xbf16>, vector<3x128xbf16>, vector<286x128xf32> -> vector<286x128xf32>
    %22 = arith.addf %17, %21 : vector<286x128xf32>
    %23 = vector.extract_strided_slice %1 {offsets = [19, 0], sizes = [286, 3], strides = [1, 1]} : vector<324x3xbf16> to vector<286x3xbf16>
    %c4 = arith.constant 4 : index
    %c0_15 = arith.constant 0 : index
    %c0_16 = arith.constant 0 : index
    %24 = vector.load %arg2[%c4, %c0_15, %c0_16] : memref<9x3x128xbf16, #tpu.memory_space<vmem>>, vector<1x3x128xbf16>
    %25 = vector.shape_cast %24 : vector<1x3x128xbf16> to vector<3x128xbf16>
    %cst_17 = arith.constant dense<0.000000e+00> : vector<286x128xf32>
    %26 = tpu.matmul %23, %25, %cst_17 {dimension_numbers = #tpu.dot_dimension_numbers<[1], [0], [0], [1], [0, 0, 1, 1], [], []>} : vector<286x3xbf16>, vector<3x128xbf16>, vector<286x128xf32> -> vector<286x128xf32>
    %27 = arith.addf %22, %26 : vector<286x128xf32>
    %28 = vector.extract_strided_slice %1 {offsets = [20, 0], sizes = [286, 3], strides = [1, 1]} : vector<324x3xbf16> to vector<286x3xbf16>
    %c5 = arith.constant 5 : index
    %c0_18 = arith.constant 0 : index
    %c0_19 = arith.constant 0 : index
    %29 = vector.load %arg2[%c5, %c0_18, %c0_19] : memref<9x3x128xbf16, #tpu.memory_space<vmem>>, vector<1x3x128xbf16>
    %30 = vector.shape_cast %29 : vector<1x3x128xbf16> to vector<3x128xbf16>
    %cst_20 = arith.constant dense<0.000000e+00> : vector<286x128xf32>
    %31 = tpu.matmul %28, %30, %cst_20 {dimension_numbers = #tpu.dot_dimension_numbers<[1], [0], [0], [1], [0, 0, 1, 1], [], []>} : vector<286x3xbf16>, vector<3x128xbf16>, vector<286x128xf32> -> vector<286x128xf32>
    %32 = arith.addf %27, %31 : vector<286x128xf32>
    %33 = vector.extract_strided_slice %1 {offsets = [36, 0], sizes = [286, 3], strides = [1, 1]} : vector<324x3xbf16> to vector<286x3xbf16>
    %c6 = arith.constant 6 : index
    %c0_21 = arith.constant 0 : index
    %c0_22 = arith.constant 0 : index
    %34 = vector.load %arg2[%c6, %c0_21, %c0_22] : memref<9x3x128xbf16, #tpu.memory_space<vmem>>, vector<1x3x128xbf16>
    %35 = vector.shape_cast %34 : vector<1x3x128xbf16> to vector<3x128xbf16>
    %cst_23 = arith.constant dense<0.000000e+00> : vector<286x128xf32>
    %36 = tpu.matmul %33, %35, %cst_23 {dimension_numbers = #tpu.dot_dimension_numbers<[1], [0], [0], [1], [0, 0, 1, 1], [], []>} : vector<286x3xbf16>, vector<3x128xbf16>, vector<286x128xf32> -> vector<286x128xf32>
    %37 = arith.addf %32, %36 : vector<286x128xf32>
    %38 = vector.extract_strided_slice %1 {offsets = [37, 0], sizes = [286, 3], strides = [1, 1]} : vector<324x3xbf16> to vector<286x3xbf16>
    %c7 = arith.constant 7 : index
    %c0_24 = arith.constant 0 : index
    %c0_25 = arith.constant 0 : index
    %39 = vector.load %arg2[%c7, %c0_24, %c0_25] : memref<9x3x128xbf16, #tpu.memory_space<vmem>>, vector<1x3x128xbf16>
    %40 = vector.shape_cast %39 : vector<1x3x128xbf16> to vector<3x128xbf16>
    %cst_26 = arith.constant dense<0.000000e+00> : vector<286x128xf32>
    %41 = tpu.matmul %38, %40, %cst_26 {dimension_numbers = #tpu.dot_dimension_numbers<[1], [0], [0], [1], [0, 0, 1, 1], [], []>} : vector<286x3xbf16>, vector<3x128xbf16>, vector<286x128xf32> -> vector<286x128xf32>
    %42 = arith.addf %37, %41 : vector<286x128xf32>
    %43 = vector.extract_strided_slice %1 {offsets = [38, 0], sizes = [286, 3], strides = [1, 1]} : vector<324x3xbf16> to vector<286x3xbf16>
    %c8 = arith.constant 8 : index
    %c0_27 = arith.constant 0 : index
    %c0_28 = arith.constant 0 : index
    %44 = vector.load %arg2[%c8, %c0_27, %c0_28] : memref<9x3x128xbf16, #tpu.memory_space<vmem>>, vector<1x3x128xbf16>
    %45 = vector.shape_cast %44 : vector<1x3x128xbf16> to vector<3x128xbf16>
    %cst_29 = arith.constant dense<0.000000e+00> : vector<286x128xf32>
    %46 = tpu.matmul %43, %45, %cst_29 {dimension_numbers = #tpu.dot_dimension_numbers<[1], [0], [0], [1], [0, 0, 1, 1], [], []>} : vector<286x3xbf16>, vector<3x128xbf16>, vector<286x128xf32> -> vector<286x128xf32>
    %47 = arith.addf %42, %46 : vector<286x128xf32>
    %c0_30 = arith.constant 0 : index
    %c0_31 = arith.constant 0 : index
    %48 = vector.load %arg3[%c0_30, %c0_31] : memref<1x128xf32, #tpu.memory_space<vmem>>, vector<1x128xf32>
    %49 = vector.broadcast %48 : vector<1x128xf32> to vector<286x128xf32>
    %50 = arith.addf %47, %49 : vector<286x128xf32>
    %cst_32 = arith.constant 0.000000e+00 : f32
    %51 = vector.broadcast %cst_32 : f32 to vector<286x128xf32>
    %52 = arith.maximumf %50, %51 : vector<286x128xf32>
    %53 = arith.truncf %52 : vector<286x128xf32> to vector<286x128xbf16>
    %c0_33 = arith.constant 0 : index
    %c0_34 = arith.constant 0 : index
    %c0_35 = arith.constant 0 : index
    %54 = vector.load %arg4[%c0_33, %c0_34, %c0_35] : memref<1x286x128xbf16, #tpu.memory_space<vmem>>, vector<1x286x128xbf16>
    %55 = vector.shape_cast %54 : vector<1x286x128xbf16> to vector<286x128xbf16>
    %56 = vector.shape_cast %53 : vector<286x128xbf16> to vector<1x286x128xbf16>
    tpu.vector_store %arg4[%c0_33, %c0_34, %c0_35], %56 {strides = array<i32>} : memref<1x286x128xbf16, #tpu.memory_space<vmem>>, vector<1x286x128xbf16>,
    return
  }
  func.func @transform_0(%arg0: i32) -> (i32, i32, i32) {
    %c0_i32 = arith.constant 0 : i32
    %c0_i32_0 = arith.constant 0 : i32
    %c0_i32_1 = arith.constant 0 : i32
    return %arg0, %c0_i32, %c0_i32_0 : i32, i32, i32
  }
  func.func @transform_1(%arg0: i32) -> (i32, i32, i32) {
    %c0_i32 = arith.constant 0 : i32
    %c0_i32_0 = arith.constant 0 : i32
    %c0_i32_1 = arith.constant 0 : i32
    %c0_i32_2 = arith.constant 0 : i32
    return %c0_i32, %c0_i32_0, %c0_i32_1 : i32, i32, i32
  }
  func.func @transform_2(%arg0: i32) -> (i32, i32) {
    %c0_i32 = arith.constant 0 : i32
    %c0_i32_0 = arith.constant 0 : i32
    %c0_i32_1 = arith.constant 0 : i32
    return %c0_i32, %c0_i32_0 : i32, i32
  }
  func.func @transform_3(%arg0: i32) -> (i32, i32, i32) {
    %c0_i32 = arith.constant 0 : i32
    %c0_i32_0 = arith.constant 0 : i32
    %c0_i32_1 = arith.constant 0 : i32
    return %arg0, %c0_i32, %c0_i32_0 : i32, i32, i32
  }
}

module attributes {stable_mosaic.version = 11 : i64} {
  func.func @_conv3x3_kernel(%arg0: i32, %arg1: memref<1x100x128xbf16, #tpu.memory_space<vmem>>, %arg2: memref<9x128x128xbf16, #tpu.memory_space<vmem>>, %arg3: memref<1x128xf32, #tpu.memory_space<vmem>>, %arg4: memref<1x78x128xbf16, #tpu.memory_space<vmem>>) attributes {dimension_semantics = [#tpu.dimension_semantics<parallel>], iteration_bounds = array<i64: 4>, scalar_prefetch = 0 : i64, scratch_operands = 0 : i64, tpu.core_type = #tpu.core_type<tc>, window_params = [{transform_indices = @transform_0, window_bounds = array<i64: 1, 100, 128>}, {pipeline_mode = #tpu.pipeline_mode<synchronous>, transform_indices = @transform_1, window_bounds = array<i64: 9, 128, 128>}, {pipeline_mode = #tpu.pipeline_mode<synchronous>, transform_indices = @transform_2, window_bounds = array<i64: 1, 128>}, {transform_indices = @transform_3, window_bounds = array<i64: 1, 78, 128>}]} {
    %c0 = arith.constant 0 : index
    %c0_0 = arith.constant 0 : index
    %c0_1 = arith.constant 0 : index
    %0 = vector.load %arg1[%c0, %c0_0, %c0_1] : memref<1x100x128xbf16, #tpu.memory_space<vmem>>, vector<1x100x128xbf16>
    %1 = vector.shape_cast %0 : vector<1x100x128xbf16> to vector<100x128xbf16>
    %cst = arith.constant 0.000000e+00 : f32
    %2 = vector.broadcast %cst : f32 to vector<78x128xf32>
    %3 = vector.extract_strided_slice %1 {offsets = [0, 0], sizes = [78, 128], strides = [1, 1]} : vector<100x128xbf16> to vector<78x128xbf16>
    %c0_2 = arith.constant 0 : index
    %c0_3 = arith.constant 0 : index
    %c0_4 = arith.constant 0 : index
    %4 = vector.load %arg2[%c0_2, %c0_3, %c0_4] : memref<9x128x128xbf16, #tpu.memory_space<vmem>>, vector<1x128x128xbf16>
    %5 = vector.shape_cast %4 : vector<1x128x128xbf16> to vector<128x128xbf16>
    %cst_5 = arith.constant dense<0.000000e+00> : vector<78x128xf32>
    %6 = tpu.matmul %3, %5, %cst_5 {dimension_numbers = #tpu.dot_dimension_numbers<[1], [0], [0], [1], [0, 0, 1, 1], [], []>} : vector<78x128xbf16>, vector<128x128xbf16>, vector<78x128xf32> -> vector<78x128xf32>
    %7 = arith.addf %2, %6 : vector<78x128xf32>
    %8 = vector.extract_strided_slice %1 {offsets = [1, 0], sizes = [78, 128], strides = [1, 1]} : vector<100x128xbf16> to vector<78x128xbf16>
    %c1 = arith.constant 1 : index
    %c0_6 = arith.constant 0 : index
    %c0_7 = arith.constant 0 : index
    %9 = vector.load %arg2[%c1, %c0_6, %c0_7] : memref<9x128x128xbf16, #tpu.memory_space<vmem>>, vector<1x128x128xbf16>
    %10 = vector.shape_cast %9 : vector<1x128x128xbf16> to vector<128x128xbf16>
    %cst_8 = arith.constant dense<0.000000e+00> : vector<78x128xf32>
    %11 = tpu.matmul %8, %10, %cst_8 {dimension_numbers = #tpu.dot_dimension_numbers<[1], [0], [0], [1], [0, 0, 1, 1], [], []>} : vector<78x128xbf16>, vector<128x128xbf16>, vector<78x128xf32> -> vector<78x128xf32>
    %12 = arith.addf %7, %11 : vector<78x128xf32>
    %13 = vector.extract_strided_slice %1 {offsets = [2, 0], sizes = [78, 128], strides = [1, 1]} : vector<100x128xbf16> to vector<78x128xbf16>
    %c2 = arith.constant 2 : index
    %c0_9 = arith.constant 0 : index
    %c0_10 = arith.constant 0 : index
    %14 = vector.load %arg2[%c2, %c0_9, %c0_10] : memref<9x128x128xbf16, #tpu.memory_space<vmem>>, vector<1x128x128xbf16>
    %15 = vector.shape_cast %14 : vector<1x128x128xbf16> to vector<128x128xbf16>
    %cst_11 = arith.constant dense<0.000000e+00> : vector<78x128xf32>
    %16 = tpu.matmul %13, %15, %cst_11 {dimension_numbers = #tpu.dot_dimension_numbers<[1], [0], [0], [1], [0, 0, 1, 1], [], []>} : vector<78x128xbf16>, vector<128x128xbf16>, vector<78x128xf32> -> vector<78x128xf32>
    %17 = arith.addf %12, %16 : vector<78x128xf32>
    %18 = vector.extract_strided_slice %1 {offsets = [10, 0], sizes = [78, 128], strides = [1, 1]} : vector<100x128xbf16> to vector<78x128xbf16>
    %c3 = arith.constant 3 : index
    %c0_12 = arith.constant 0 : index
    %c0_13 = arith.constant 0 : index
    %19 = vector.load %arg2[%c3, %c0_12, %c0_13] : memref<9x128x128xbf16, #tpu.memory_space<vmem>>, vector<1x128x128xbf16>
    %20 = vector.shape_cast %19 : vector<1x128x128xbf16> to vector<128x128xbf16>
    %cst_14 = arith.constant dense<0.000000e+00> : vector<78x128xf32>
    %21 = tpu.matmul %18, %20, %cst_14 {dimension_numbers = #tpu.dot_dimension_numbers<[1], [0], [0], [1], [0, 0, 1, 1], [], []>} : vector<78x128xbf16>, vector<128x128xbf16>, vector<78x128xf32> -> vector<78x128xf32>
    %22 = arith.addf %17, %21 : vector<78x128xf32>
    %23 = vector.extract_strided_slice %1 {offsets = [11, 0], sizes = [78, 128], strides = [1, 1]} : vector<100x128xbf16> to vector<78x128xbf16>
    %c4 = arith.constant 4 : index
    %c0_15 = arith.constant 0 : index
    %c0_16 = arith.constant 0 : index
    %24 = vector.load %arg2[%c4, %c0_15, %c0_16] : memref<9x128x128xbf16, #tpu.memory_space<vmem>>, vector<1x128x128xbf16>
    %25 = vector.shape_cast %24 : vector<1x128x128xbf16> to vector<128x128xbf16>
    %cst_17 = arith.constant dense<0.000000e+00> : vector<78x128xf32>
    %26 = tpu.matmul %23, %25, %cst_17 {dimension_numbers = #tpu.dot_dimension_numbers<[1], [0], [0], [1], [0, 0, 1, 1], [], []>} : vector<78x128xbf16>, vector<128x128xbf16>, vector<78x128xf32> -> vector<78x128xf32>
    %27 = arith.addf %22, %26 : vector<78x128xf32>
    %28 = vector.extract_strided_slice %1 {offsets = [12, 0], sizes = [78, 128], strides = [1, 1]} : vector<100x128xbf16> to vector<78x128xbf16>
    %c5 = arith.constant 5 : index
    %c0_18 = arith.constant 0 : index
    %c0_19 = arith.constant 0 : index
    %29 = vector.load %arg2[%c5, %c0_18, %c0_19] : memref<9x128x128xbf16, #tpu.memory_space<vmem>>, vector<1x128x128xbf16>
    %30 = vector.shape_cast %29 : vector<1x128x128xbf16> to vector<128x128xbf16>
    %cst_20 = arith.constant dense<0.000000e+00> : vector<78x128xf32>
    %31 = tpu.matmul %28, %30, %cst_20 {dimension_numbers = #tpu.dot_dimension_numbers<[1], [0], [0], [1], [0, 0, 1, 1], [], []>} : vector<78x128xbf16>, vector<128x128xbf16>, vector<78x128xf32> -> vector<78x128xf32>
    %32 = arith.addf %27, %31 : vector<78x128xf32>
    %33 = vector.extract_strided_slice %1 {offsets = [20, 0], sizes = [78, 128], strides = [1, 1]} : vector<100x128xbf16> to vector<78x128xbf16>
    %c6 = arith.constant 6 : index
    %c0_21 = arith.constant 0 : index
    %c0_22 = arith.constant 0 : index
    %34 = vector.load %arg2[%c6, %c0_21, %c0_22] : memref<9x128x128xbf16, #tpu.memory_space<vmem>>, vector<1x128x128xbf16>
    %35 = vector.shape_cast %34 : vector<1x128x128xbf16> to vector<128x128xbf16>
    %cst_23 = arith.constant dense<0.000000e+00> : vector<78x128xf32>
    %36 = tpu.matmul %33, %35, %cst_23 {dimension_numbers = #tpu.dot_dimension_numbers<[1], [0], [0], [1], [0, 0, 1, 1], [], []>} : vector<78x128xbf16>, vector<128x128xbf16>, vector<78x128xf32> -> vector<78x128xf32>
    %37 = arith.addf %32, %36 : vector<78x128xf32>
    %38 = vector.extract_strided_slice %1 {offsets = [21, 0], sizes = [78, 128], strides = [1, 1]} : vector<100x128xbf16> to vector<78x128xbf16>
    %c7 = arith.constant 7 : index
    %c0_24 = arith.constant 0 : index
    %c0_25 = arith.constant 0 : index
    %39 = vector.load %arg2[%c7, %c0_24, %c0_25] : memref<9x128x128xbf16, #tpu.memory_space<vmem>>, vector<1x128x128xbf16>
    %40 = vector.shape_cast %39 : vector<1x128x128xbf16> to vector<128x128xbf16>
    %cst_26 = arith.constant dense<0.000000e+00> : vector<78x128xf32>
    %41 = tpu.matmul %38, %40, %cst_26 {dimension_numbers = #tpu.dot_dimension_numbers<[1], [0], [0], [1], [0, 0, 1, 1], [], []>} : vector<78x128xbf16>, vector<128x128xbf16>, vector<78x128xf32> -> vector<78x128xf32>
    %42 = arith.addf %37, %41 : vector<78x128xf32>
    %43 = vector.extract_strided_slice %1 {offsets = [22, 0], sizes = [78, 128], strides = [1, 1]} : vector<100x128xbf16> to vector<78x128xbf16>
    %c8 = arith.constant 8 : index
    %c0_27 = arith.constant 0 : index
    %c0_28 = arith.constant 0 : index
    %44 = vector.load %arg2[%c8, %c0_27, %c0_28] : memref<9x128x128xbf16, #tpu.memory_space<vmem>>, vector<1x128x128xbf16>
    %45 = vector.shape_cast %44 : vector<1x128x128xbf16> to vector<128x128xbf16>
    %cst_29 = arith.constant dense<0.000000e+00> : vector<78x128xf32>
    %46 = tpu.matmul %43, %45, %cst_29 {dimension_numbers = #tpu.dot_dimension_numbers<[1], [0], [0], [1], [0, 0, 1, 1], [], []>} : vector<78x128xbf16>, vector<128x128xbf16>, vector<78x128xf32> -> vector<78x128xf32>
    %47 = arith.addf %42, %46 : vector<78x128xf32>
    %c0_30 = arith.constant 0 : index
    %c0_31 = arith.constant 0 : index
    %48 = vector.load %arg3[%c0_30, %c0_31] : memref<1x128xf32, #tpu.memory_space<vmem>>, vector<1x128xf32>
    %49 = vector.broadcast %48 : vector<1x128xf32> to vector<78x128xf32>
    %50 = arith.addf %47, %49 : vector<78x128xf32>
    %cst_32 = arith.constant 0.000000e+00 : f32
    %51 = vector.broadcast %cst_32 : f32 to vector<78x128xf32>
    %52 = arith.maximumf %50, %51 : vector<78x128xf32>
    %53 = arith.truncf %52 : vector<78x128xf32> to vector<78x128xbf16>
    %c0_33 = arith.constant 0 : index
    %c0_34 = arith.constant 0 : index
    %c0_35 = arith.constant 0 : index
    %54 = vector.load %arg4[%c0_33, %c0_34, %c0_35] : memref<1x78x128xbf16, #tpu.memory_space<vmem>>, vector<1x78x128xbf16>
    %55 = vector.shape_cast %54 : vector<1x78x128xbf16> to vector<78x128xbf16>
    %56 = vector.shape_cast %53 : vector<78x128xbf16> to vector<1x78x128xbf16>
    tpu.vector_store %arg4[%c0_33, %c0_34, %c0_35], %56 {strides = array<i32>} : memref<1x78x128xbf16, #tpu.memory_space<vmem>>, vector<1x78x128xbf16>,
    return
  }
  func.func @transform_0(%arg0: i32) -> (i32, i32, i32) {
    %c0_i32 = arith.constant 0 : i32
    %c0_i32_0 = arith.constant 0 : i32
    %c0_i32_1 = arith.constant 0 : i32
    return %arg0, %c0_i32, %c0_i32_0 : i32, i32, i32
  }
  func.func @transform_1(%arg0: i32) -> (i32, i32, i32) {
    %c0_i32 = arith.constant 0 : i32
    %c0_i32_0 = arith.constant 0 : i32
    %c0_i32_1 = arith.constant 0 : i32
    %c0_i32_2 = arith.constant 0 : i32
    return %c0_i32, %c0_i32_0, %c0_i32_1 : i32, i32, i32
  }
  func.func @transform_2(%arg0: i32) -> (i32, i32) {
    %c0_i32 = arith.constant 0 : i32
    %c0_i32_0 = arith.constant 0 : i32
    %c0_i32_1 = arith.constant 0 : i32
    return %c0_i32, %c0_i32_0 : i32, i32
  }
  func.func @transform_3(%arg0: i32) -> (i32, i32, i32) {
    %c0_i32 = arith.constant 0 : i32
    %c0_i32_0 = arith.constant 0 : i32
    %c0_i32_1 = arith.constant 0 : i32
    return %arg0, %c0_i32, %c0_i32_0 : i32, i32, i32
  }
}

module attributes {stable_mosaic.version = 11 : i64} {
  func.func @_img_head_kernel(%arg0: memref<4x16x128xbf16, #tpu.memory_space<vmem>>, %arg1: memref<1x128xf32, #tpu.memory_space<vmem>>, %arg2: memref<4x128xf32, #tpu.memory_space<vmem>>, %arg3: memref<1x1xf32, #tpu.memory_space<smem>>, %arg4: memref<4x128xbf16, #tpu.memory_space<vmem>>, %arg5: memref<4x1xf32, #tpu.memory_space<vmem>>) attributes {dimension_semantics = [], scalar_prefetch = 0 : i64, scratch_operands = 0 : i64, tpu.core_type = #tpu.core_type<tc>} {
    %c0 = arith.constant 0 : index
    %c0_0 = arith.constant 0 : index
    %c0_1 = arith.constant 0 : index
    %0 = vector.load %arg0[%c0, %c0_0, %c0_1] : memref<4x16x128xbf16, #tpu.memory_space<vmem>>, vector<4x16x128xbf16>
    %1 = arith.extf %0 : vector<4x16x128xbf16> to vector<4x16x128xf32>
    %cst = arith.constant dense<0.000000e+00> : vector<4x128xf32>
    %2 = vector.multi_reduction <add>, %1, %cst [1] : vector<4x16x128xf32> to vector<4x128xf32>
    %c0_2 = arith.constant 0 : index
    %c0_3 = arith.constant 0 : index
    %3 = vector.load %arg1[%c0_2, %c0_3] : memref<1x128xf32, #tpu.memory_space<vmem>>, vector<1x128xf32>
    %4 = vector.broadcast %3 : vector<1x128xf32> to vector<4x128xf32>
    %5 = arith.mulf %2, %4 : vector<4x128xf32>
    %cst_4 = arith.constant dense<0.000000e+00> : vector<4xf32>
    %6 = vector.multi_reduction <add>, %5, %cst_4 [1] : vector<4x128xf32> to vector<4xf32>
    %7 = vector.shape_cast %6 : vector<4xf32> to vector<4x1xf32>
    %c0_5 = arith.constant 0 : index
    %c0_6 = arith.constant 0 : index
    %8 = vector.load %arg2[%c0_5, %c0_6] : memref<4x128xf32, #tpu.memory_space<vmem>>, vector<4x128xf32>
    %9 = arith.mulf %2, %8 : vector<4x128xf32>
    %cst_7 = arith.constant dense<0.000000e+00> : vector<4xf32>
    %10 = vector.multi_reduction <add>, %9, %cst_7 [1] : vector<4x128xf32> to vector<4xf32>
    %11 = vector.shape_cast %10 : vector<4xf32> to vector<4x1xf32>
    %12 = arith.addf %7, %11 : vector<4x1xf32>
    %c0_8 = arith.constant 0 : index
    %c0_9 = arith.constant 0 : index
    %13 = memref.load %arg3[%c0_8, %c0_9] : memref<1x1xf32, #tpu.memory_space<smem>>
    %14 = vector.broadcast %13 : f32 to vector<4x1xf32>
    %15 = arith.addf %12, %14 : vector<4x1xf32>
    %c0_10 = arith.constant 0 : index
    %c0_11 = arith.constant 0 : index
    %16 = vector.load %arg5[%c0_10, %c0_11] : memref<4x1xf32, #tpu.memory_space<vmem>>, vector<4x1xf32>
    tpu.vector_store %arg5[%c0_10, %c0_11], %15 {strides = array<i32>} : memref<4x1xf32, #tpu.memory_space<vmem>>, vector<4x1xf32>,
    %17 = arith.truncf %2 : vector<4x128xf32> to vector<4x128xbf16>
    %c0_12 = arith.constant 0 : index
    %c0_13 = arith.constant 0 : index
    %18 = vector.load %arg4[%c0_12, %c0_13] : memref<4x128xbf16, #tpu.memory_space<vmem>>, vector<4x128xbf16>
    tpu.vector_store %arg4[%c0_12, %c0_13], %17 {strides = array<i32>} : memref<4x128xbf16, #tpu.memory_space<vmem>>, vector<4x128xbf16>,
    return
  }
}

module attributes {stable_mosaic.version = 11 : i64} {
  func.func @_mlp_head_kernel(%arg0: memref<4x32xbf16, #tpu.memory_space<vmem>>, %arg1: memref<32x128xbf16, #tpu.memory_space<vmem>>, %arg2: memref<1x128xf32, #tpu.memory_space<vmem>>, %arg3: memref<128x128xbf16, #tpu.memory_space<vmem>>, %arg4: memref<1x128xf32, #tpu.memory_space<vmem>>, %arg5: memref<1x128xf32, #tpu.memory_space<vmem>>, %arg6: memref<1x1xf32, #tpu.memory_space<smem>>, %arg7: memref<4x128xbf16, #tpu.memory_space<vmem>>, %arg8: memref<4x1xf32, #tpu.memory_space<vmem>>) attributes {dimension_semantics = [], scalar_prefetch = 0 : i64, scratch_operands = 0 : i64, tpu.core_type = #tpu.core_type<tc>} {
    %c0 = arith.constant 0 : index
    %c0_0 = arith.constant 0 : index
    %0 = vector.load %arg0[%c0, %c0_0] : memref<4x32xbf16, #tpu.memory_space<vmem>>, vector<4x32xbf16>
    %c0_1 = arith.constant 0 : index
    %c0_2 = arith.constant 0 : index
    %1 = vector.load %arg1[%c0_1, %c0_2] : memref<32x128xbf16, #tpu.memory_space<vmem>>, vector<32x128xbf16>
    %cst = arith.constant dense<0.000000e+00> : vector<4x128xf32>
    %2 = tpu.matmul %0, %1, %cst {dimension_numbers = #tpu.dot_dimension_numbers<[1], [0], [0], [1], [0, 0, 1, 1], [], []>} : vector<4x32xbf16>, vector<32x128xbf16>, vector<4x128xf32> -> vector<4x128xf32>
    %c0_3 = arith.constant 0 : index
    %c0_4 = arith.constant 0 : index
    %3 = vector.load %arg2[%c0_3, %c0_4] : memref<1x128xf32, #tpu.memory_space<vmem>>, vector<1x128xf32>
    %4 = vector.broadcast %3 : vector<1x128xf32> to vector<4x128xf32>
    %5 = arith.addf %2, %4 : vector<4x128xf32>
    %cst_5 = arith.constant 0.000000e+00 : f32
    %6 = vector.broadcast %cst_5 : f32 to vector<4x128xf32>
    %7 = arith.maximumf %5, %6 : vector<4x128xf32>
    %8 = arith.truncf %7 : vector<4x128xf32> to vector<4x128xbf16>
    %c0_6 = arith.constant 0 : index
    %c0_7 = arith.constant 0 : index
    %9 = vector.load %arg3[%c0_6, %c0_7] : memref<128x128xbf16, #tpu.memory_space<vmem>>, vector<128x128xbf16>
    %cst_8 = arith.constant dense<0.000000e+00> : vector<4x128xf32>
    %10 = tpu.matmul %8, %9, %cst_8 {dimension_numbers = #tpu.dot_dimension_numbers<[1], [0], [0], [1], [0, 0, 1, 1], [], []>} : vector<4x128xbf16>, vector<128x128xbf16>, vector<4x128xf32> -> vector<4x128xf32>
    %c0_9 = arith.constant 0 : index
    %c0_10 = arith.constant 0 : index
    %11 = vector.load %arg4[%c0_9, %c0_10] : memref<1x128xf32, #tpu.memory_space<vmem>>, vector<1x128xf32>
    %12 = vector.broadcast %11 : vector<1x128xf32> to vector<4x128xf32>
    %13 = arith.addf %10, %12 : vector<4x128xf32>
    %cst_11 = arith.constant 0.000000e+00 : f32
    %14 = vector.broadcast %cst_11 : f32 to vector<4x128xf32>
    %15 = arith.maximumf %13, %14 : vector<4x128xf32>
    %c0_12 = arith.constant 0 : index
    %c0_13 = arith.constant 0 : index
    %16 = vector.load %arg5[%c0_12, %c0_13] : memref<1x128xf32, #tpu.memory_space<vmem>>, vector<1x128xf32>
    %17 = vector.broadcast %16 : vector<1x128xf32> to vector<4x128xf32>
    %18 = arith.mulf %15, %17 : vector<4x128xf32>
    %cst_14 = arith.constant dense<0.000000e+00> : vector<4xf32>
    %19 = vector.multi_reduction <add>, %18, %cst_14 [1] : vector<4x128xf32> to vector<4xf32>
    %20 = vector.shape_cast %19 : vector<4xf32> to vector<4x1xf32>
    %c0_15 = arith.constant 0 : index
    %c0_16 = arith.constant 0 : index
    %21 = memref.load %arg6[%c0_15, %c0_16] : memref<1x1xf32, #tpu.memory_space<smem>>
    %22 = vector.broadcast %21 : f32 to vector<4x1xf32>
    %23 = arith.addf %20, %22 : vector<4x1xf32>
    %c0_17 = arith.constant 0 : index
    %c0_18 = arith.constant 0 : index
    %24 = vector.load %arg8[%c0_17, %c0_18] : memref<4x1xf32, #tpu.memory_space<vmem>>, vector<4x1xf32>
    tpu.vector_store %arg8[%c0_17, %c0_18], %23 {strides = array<i32>} : memref<4x1xf32, #tpu.memory_space<vmem>>, vector<4x1xf32>,
    %25 = arith.truncf %15 : vector<4x128xf32> to vector<4x128xbf16>
    %c0_19 = arith.constant 0 : index
    %c0_20 = arith.constant 0 : index
    %26 = vector.load %arg7[%c0_19, %c0_20] : memref<4x128xbf16, #tpu.memory_space<vmem>>, vector<4x128xbf16>
    tpu.vector_store %arg7[%c0_19, %c0_20], %25 {strides = array<i32>} : memref<4x128xbf16, #tpu.memory_space<vmem>>, vector<4x128xbf16>,
    return
  }
}

module attributes {stable_mosaic.version = 11 : i64} {
  func.func @_mlp_head_kernel(%arg0: memref<4x256xbf16, #tpu.memory_space<vmem>>, %arg1: memref<256x128xbf16, #tpu.memory_space<vmem>>, %arg2: memref<1x128xf32, #tpu.memory_space<vmem>>, %arg3: memref<128x128xbf16, #tpu.memory_space<vmem>>, %arg4: memref<1x128xf32, #tpu.memory_space<vmem>>, %arg5: memref<1x128xf32, #tpu.memory_space<vmem>>, %arg6: memref<1x1xf32, #tpu.memory_space<smem>>, %arg7: memref<4x128xbf16, #tpu.memory_space<vmem>>, %arg8: memref<4x1xf32, #tpu.memory_space<vmem>>) attributes {dimension_semantics = [], scalar_prefetch = 0 : i64, scratch_operands = 0 : i64, tpu.core_type = #tpu.core_type<tc>} {
    %c0 = arith.constant 0 : index
    %c0_0 = arith.constant 0 : index
    %0 = vector.load %arg0[%c0, %c0_0] : memref<4x256xbf16, #tpu.memory_space<vmem>>, vector<4x256xbf16>
    %c0_1 = arith.constant 0 : index
    %c0_2 = arith.constant 0 : index
    %1 = vector.load %arg1[%c0_1, %c0_2] : memref<256x128xbf16, #tpu.memory_space<vmem>>, vector<256x128xbf16>
    %cst = arith.constant dense<0.000000e+00> : vector<4x128xf32>
    %2 = tpu.matmul %0, %1, %cst {dimension_numbers = #tpu.dot_dimension_numbers<[1], [0], [0], [1], [0, 0, 1, 1], [], []>} : vector<4x256xbf16>, vector<256x128xbf16>, vector<4x128xf32> -> vector<4x128xf32>
    %c0_3 = arith.constant 0 : index
    %c0_4 = arith.constant 0 : index
    %3 = vector.load %arg2[%c0_3, %c0_4] : memref<1x128xf32, #tpu.memory_space<vmem>>, vector<1x128xf32>
    %4 = vector.broadcast %3 : vector<1x128xf32> to vector<4x128xf32>
    %5 = arith.addf %2, %4 : vector<4x128xf32>
    %cst_5 = arith.constant 0.000000e+00 : f32
    %6 = vector.broadcast %cst_5 : f32 to vector<4x128xf32>
    %7 = arith.maximumf %5, %6 : vector<4x128xf32>
    %8 = arith.truncf %7 : vector<4x128xf32> to vector<4x128xbf16>
    %c0_6 = arith.constant 0 : index
    %c0_7 = arith.constant 0 : index
    %9 = vector.load %arg3[%c0_6, %c0_7] : memref<128x128xbf16, #tpu.memory_space<vmem>>, vector<128x128xbf16>
    %cst_8 = arith.constant dense<0.000000e+00> : vector<4x128xf32>
    %10 = tpu.matmul %8, %9, %cst_8 {dimension_numbers = #tpu.dot_dimension_numbers<[1], [0], [0], [1], [0, 0, 1, 1], [], []>} : vector<4x128xbf16>, vector<128x128xbf16>, vector<4x128xf32> -> vector<4x128xf32>
    %c0_9 = arith.constant 0 : index
    %c0_10 = arith.constant 0 : index
    %11 = vector.load %arg4[%c0_9, %c0_10] : memref<1x128xf32, #tpu.memory_space<vmem>>, vector<1x128xf32>
    %12 = vector.broadcast %11 : vector<1x128xf32> to vector<4x128xf32>
    %13 = arith.addf %10, %12 : vector<4x128xf32>
    %cst_11 = arith.constant 0.000000e+00 : f32
    %14 = vector.broadcast %cst_11 : f32 to vector<4x128xf32>
    %15 = arith.maximumf %13, %14 : vector<4x128xf32>
    %c0_12 = arith.constant 0 : index
    %c0_13 = arith.constant 0 : index
    %16 = vector.load %arg5[%c0_12, %c0_13] : memref<1x128xf32, #tpu.memory_space<vmem>>, vector<1x128xf32>
    %17 = vector.broadcast %16 : vector<1x128xf32> to vector<4x128xf32>
    %18 = arith.mulf %15, %17 : vector<4x128xf32>
    %cst_14 = arith.constant dense<0.000000e+00> : vector<4xf32>
    %19 = vector.multi_reduction <add>, %18, %cst_14 [1] : vector<4x128xf32> to vector<4xf32>
    %20 = vector.shape_cast %19 : vector<4xf32> to vector<4x1xf32>
    %c0_15 = arith.constant 0 : index
    %c0_16 = arith.constant 0 : index
    %21 = memref.load %arg6[%c0_15, %c0_16] : memref<1x1xf32, #tpu.memory_space<smem>>
    %22 = vector.broadcast %21 : f32 to vector<4x1xf32>
    %23 = arith.addf %20, %22 : vector<4x1xf32>
    %c0_17 = arith.constant 0 : index
    %c0_18 = arith.constant 0 : index
    %24 = vector.load %arg8[%c0_17, %c0_18] : memref<4x1xf32, #tpu.memory_space<vmem>>, vector<4x1xf32>
    tpu.vector_store %arg8[%c0_17, %c0_18], %23 {strides = array<i32>} : memref<4x1xf32, #tpu.memory_space<vmem>>, vector<4x1xf32>,
    %25 = arith.truncf %15 : vector<4x128xf32> to vector<4x128xbf16>
    %c0_19 = arith.constant 0 : index
    %c0_20 = arith.constant 0 : index
    %26 = vector.load %arg7[%c0_19, %c0_20] : memref<4x128xbf16, #tpu.memory_space<vmem>>, vector<4x128xbf16>
    tpu.vector_store %arg7[%c0_19, %c0_20], %25 {strides = array<i32>} : memref<4x128xbf16, #tpu.memory_space<vmem>>, vector<4x128xbf16>,
    return
  }
}

</mosaic_0001>

<llo_original>
// kernel: bigbigan_forward.6
$region0: #{bigbigan_forward.6}
  #allocation0 [shape = 'u32[]', space=smem, size = 0x4, offset = 0x4, fixed_abs, tag = 'smem constant byte address 0x4 - core index']
  #allocation1 [shape = 'u32[144,128]{1,0:T(1,128)}', space=vmem, size = 0x12000, scoped, tag = 'internal scratch']
  %s0 = inlined_call_operand.vmem [shape: bf16[4,324,3], index: 0, kind: input, shape index: {}]
  %s1 = inlined_call_operand.vmem [shape: bf16[9,3,128], index: 1, kind: input, shape index: {}]
  %s2 = inlined_call_operand.vmem [shape: f32[1,128], index: 2, kind: input, shape index: {}]
  %s3 = inlined_call_operand.vmem [shape: bf16[4,286,128], index: 3, kind: output, shape index: {}]
  %s4 = sld [smem:[#allocation0]]
  $region45: #{bigbigan_forward.6} parent=0
    _
  %s6 = ssub.s32 1, %s4
  %s7 = scalar_select 0, %s6, %s4
  loop: start=0, step=1, limit=6
  $region2: #{bigbigan_forward.6} parent=0 // loop_pre_header
    _
  $region3: #{bigbigan_forward.6} parent=0 // loop_header
    %s9 = sphi 0, %s13
    %p10 = scmp.ge.s32.totalorder %s9, 6
    %s19 = sphi 0, %s21
    %s22 = sphi 0, %s19
    %s23 = sphi 0, %s22
    %s39 = sphi 0, %s23
    %s43 = sphi 0, %s43
    %s45 = sphi 0, %s43
    %s46 = sphi 0, %s45
    %s60 = sphi 0, %s46
    %s64 = sphi 0, %s64
    %s66 = sphi 0, %s64
    %s67 = sphi 0, %s66
    %s81 = sphi 0, %s67
    %s87 = sphi 0, %s89
    %s90 = sphi 0, %s87
    %s91 = sphi 0, %s90
    %s107 = sphi 0, %s91
  $region4: #{bigbigan_forward.6} parent=0 // loop_header_branch
    %12 = sbr.rel (%p10) target = $region8
  $region5: #{bigbigan_forward.6} parent=0 // loop_body
    %s14 = ssub.s32 %s9, 1
    %s15 = ssub.s32 %s9, 2
    %s16 = sadd.s32 %s9, 1
    %s17 = ssub.s32 %s9, %s16
    %p18 = scmp.eq.s32.totalorder %s17, 0
    %s20 = sadd.s32 %s19, 1
    %s21 = scalar_select %p18, %s19, %s20
    %p24 = pneg %p18
    %p25 = scmp.eq.s32.totalorder %s9, 3
    %p26 = por %p24, %p25
    %p27 = scmp.ne.s32.totalorder %s19, %s22
    %p28 = scmp.eq.s32.totalorder %s9, 0
    %p29 = por %p27, %p28
    %p30 = scmp.ne.s32.totalorder %s19, %s22
    %p31 = scmp.eq.s32.totalorder %s14, 3
    %p32 = por %p30, %p31
    %p33 = scmp.ne.s32.totalorder %s22, %s23
    %p34 = scmp.eq.s32.totalorder %s14, 0
    %p35 = por %p33, %p34
    %p36 = scmp.ne.s32.totalorder %s22, %s23
    %p37 = scmp.eq.s32.totalorder %s15, 3
    %p38 = por %p36, %p37
    %p40 = scmp.ne.s32.totalorder %s23, %s39
    %p41 = scmp.eq.s32.totalorder %s15, 0
    %p42 = por %p40, %p41
    %s44 = sadd.s32 %s43, 1
    %p47 = scmp.eq.s32.totalorder %s9, 3
    %p48 = scmp.ne.s32.totalorder %s43, %s45
    %p49 = scmp.eq.s32.totalorder %s9, 0
    %p50 = por %p48, %p49
    %p51 = scmp.ne.s32.totalorder %s43, %s45
    %p52 = scmp.eq.s32.totalorder %s14, 3
    %p53 = por %p51, %p52
    %p54 = scmp.ne.s32.totalorder %s45, %s46
    %p55 = scmp.eq.s32.totalorder %s14, 0
    %p56 = por %p54, %p55
    %p57 = scmp.ne.s32.totalorder %s45, %s46
    %p58 = scmp.eq.s32.totalorder %s15, 3
    %p59 = por %p57, %p58
    %p61 = scmp.ne.s32.totalorder %s46, %s60
    %p62 = scmp.eq.s32.totalorder %s15, 0
    %p63 = por %p61, %p62
    %s65 = sadd.s32 %s64, 1
    %p68 = scmp.eq.s32.totalorder %s9, 3
    %p69 = scmp.ne.s32.totalorder %s64, %s66
    %p70 = scmp.eq.s32.totalorder %s9, 0
    %p71 = por %p69, %p70
    %p72 = scmp.ne.s32.totalorder %s64, %s66
    %p73 = scmp.eq.s32.totalorder %s14, 3
    %p74 = por %p72, %p73
    %p75 = scmp.ne.s32.totalorder %s66, %s67
    %p76 = scmp.eq.s32.totalorder %s14, 0
    %p77 = por %p75, %p76
    %p78 = scmp.ne.s32.totalorder %s66, %s67
    %p79 = scmp.eq.s32.totalorder %s15, 3
    %p80 = por %p78, %p79
    %p82 = scmp.ne.s32.totalorder %s67, %s81
    %p83 = scmp.eq.s32.totalorder %s15, 0
    %p84 = por %p82, %p83
    %s85 = ssub.s32 %s9, %s16
    %p86 = scmp.eq.s32.totalorder %s85, 0
    %s88 = sadd.s32 %s87, 1
    %s89 = scalar_select %p86, %s87, %s88
    %p92 = pneg %p86
    %p93 = scmp.eq.s32.totalorder %s9, 3
    %p94 = por %p92, %p93
    %p95 = scmp.ne.s32.totalorder %s87, %s90
    %p96 = scmp.eq.s32.totalorder %s9, 0
    %p97 = por %p95, %p96
    %p98 = scmp.ne.s32.totalorder %s87, %s90
    %p99 = scmp.eq.s32.totalorder %s14, 3
    %p100 = por %p98, %p99
    %p101 = scmp.ne.s32.totalorder %s90, %s91
    %p102 = scmp.eq.s32.totalorder %s14, 0
    %p103 = por %p101, %p102
    %p104 = scmp.ne.s32.totalorder %s90, %s91
    %p105 = scmp.eq.s32.totalorder %s15, 3
    %p106 = por %p104, %p105
    %p108 = scmp.ne.s32.totalorder %s91, %s107
    %p109 = scmp.eq.s32.totalorder %s15, 0
    %p110 = por %p108, %p109
    %p111 = scmp.le.s32.totalorder 1, %s9
    %p112 = scmp.lt.s32.totalorder %s9, 5
    %p113 = pnand %p111, %p112
    %p114 = pneg %p113
    // Predicated region
    $region9: #{bigbigan_forward.6} parent=5 // pred_check
      _
    $region10: #{bigbigan_forward.6} parent=5 // pred_check_branch
      %116 = sbr.rel (%p113) target = $region12
    $region11: #{bigbigan_forward.6} parent=5 // pred_region
      %s117 = ssub.s32 %s9, 1
      // Predicated region
      $region13: #{bigbigan_forward.6} parent=11 // pred_check
        %p118 = pneg %p56
      $region14: #{bigbigan_forward.6} parent=11 // pred_check_branch
        %120 = sbr.rel (%p118) target = $region16
      $region15: #{bigbigan_forward.6} parent=11 // pred_region
        _
      $region16: #{bigbigan_forward.6} parent=11 // pred_fallthru
        _
      // Predicated region
      $region17: #{bigbigan_forward.6} parent=11 // pred_check
        %p121 = pneg %p77
      $region18: #{bigbigan_forward.6} parent=11 // pred_check_branch
        %123 = sbr.rel (%p121) target = $region20
      $region19: #{bigbigan_forward.6} parent=11 // pred_region
        _
      $region20: #{bigbigan_forward.6} parent=11 // pred_fallthru
        _
    $region12: #{bigbigan_forward.6} parent=5 // pred_fallthru
      _
    %p124 = scmp.lt.s32.totalorder %s9, 4
    // Predicated region
    $region21: #{bigbigan_forward.6} parent=5 // pred_check
      %p125 = pneg %p124
    $region22: #{bigbigan_forward.6} parent=5 // pred_check_branch
      %127 = sbr.rel (%p125) target = $region24
    $region23: #{bigbigan_forward.6} parent=5 // pred_region
      // Predicated region
      $region25: #{bigbigan_forward.6} parent=23 // pred_check
        %p128 = pneg %p29
      $region26: #{bigbigan_forward.6} parent=23 // pred_check_branch
        %130 = sbr.rel (%p128) target = $region28
      $region27: #{bigbigan_forward.6} parent=23 // pred_region
        %p131 = scmp.lt.s32.totalorder %s9, 3
        %s132 = scalar_select %p131, %s9, 3
        %s133 = smul.addr %s132, 41
        %s134 = smul.addr %s133, 4
        %s135 = scalar_lea.vmem %s0, %s134
      $region28: #{bigbigan_forward.6} parent=23 // pred_fallthru
        _
    $region24: #{bigbigan_forward.6} parent=5 // pred_fallthru
      _
    %p136 = scmp.le.s32.totalorder 1, %s9
    %p137 = scmp.lt.s32.totalorder %s9, 5
    %p138 = pnand %p136, %p137
    %p139 = pneg %p138
    // Predicated region
    $region29: #{bigbigan_forward.6} parent=5 // pred_check
      _
    $region30: #{bigbigan_forward.6} parent=5 // pred_check_branch
      %141 = sbr.rel (%p138) target = $region32
    $region31: #{bigbigan_forward.6} parent=5 // pred_region
      %s142 = ssub.s32 %s9, 1
      %p143 = scmp.lt.s32.totalorder %s14, 3
      %s144 = scalar_select %p143, %s14, 3
      %s145 = smul.addr %s144, 41
      %s146 = smul.addr %s145, 4
      %s147 = scalar_lea.vmem %s0, %s146
      %p148 = pneg %p35
      %p149 = pneg %p32
      %p150 = pneg %p56
      %p151 = pneg %p53
      %p152 = pneg %p77
      %p153 = pneg %p74
      %p154 = pneg %p103
      %p155 = pneg %p100
      %p156 = scmp.lt.s32.totalorder %s14, 3
      %s157 = scalar_select %p156, %s14, 3
      %s158 = smul.addr %s157, 36
      %s159 = smul.addr %s158, 4
      %s160 = scalar_lea.vmem %s3, %s159
      %p161 = scmp.lt.s32.totalorder %s14, 3
      %s162 = scalar_select %p161, %s14, 3
      %s163 = smul.addr %s162, 41
      %s164 = smul.addr %s163, 4
      %s165 = scalar_lea.vmem %s0, %s164
      %p166 = scmp.lt.s32.totalorder %s14, 3
      %s167 = scalar_select %p166, %s14, 3
      %s168 = smul.addr %s167, 36
      %s169 = smul.addr %s168, 4
      %s170 = scalar_lea.vmem %s3, %s169
      %v172 = vld [vmem:[%s165] sm:$0xf]
      %v173 = vld [vmem:[%s165 + $0x4] sm:$0xf]
      %v174 = vld [vmem:[%s165 + $0x8] sm:$0xf]
      %v175 = vld [vmem:[%s165 + $0xc] sm:$0xf]
      %v176 = vld [vmem:[%s165 + $0x10] sm:$0xf]
      %v177 = vld [vmem:[%s165 + $0x14] sm:$0xf]
      %v178 = vld [vmem:[%s165 + $0x18] sm:$0xf]
      %v179 = vld [vmem:[%s165 + $0x1c] sm:$0xf]
      %v180 = vld [vmem:[%s165 + $0x20] sm:$0xf]
      %v181 = vld [vmem:[%s165 + $0x24] sm:$0xf]
      %v182 = vld [vmem:[%s165 + $0x28] sm:$0xf]
      %v183 = vld [vmem:[%s165 + $0x2c] sm:$0xf]
      %v184 = vld [vmem:[%s165 + $0x30] sm:$0xf]
      %v185 = vld [vmem:[%s165 + $0x34] sm:$0xf]
      %v186 = vld [vmem:[%s165 + $0x38] sm:$0xf]
      %v187 = vld [vmem:[%s165 + $0x3c] sm:$0xf]
      %v188 = vld [vmem:[%s165 + $0x40] sm:$0xf]
      %v189 = vld [vmem:[%s165 + $0x44] sm:$0xf]
      %v190 = vld [vmem:[%s165 + $0x48] sm:$0xf]
      %v191 = vld [vmem:[%s165 + $0x4c] sm:$0xf]
      %v192 = vld [vmem:[%s165 + $0x50] sm:$0xf]
      %v193 = vld [vmem:[%s165 + $0x54] sm:$0xf]
      %v194 = vld [vmem:[%s165 + $0x58] sm:$0xf]
      %v195 = vld [vmem:[%s165 + $0x5c] sm:$0xf]
      %v196 = vld [vmem:[%s165 + $0x60] sm:$0xf]
      %v197 = vld [vmem:[%s165 + $0x64] sm:$0xf]
      %v198 = vld [vmem:[%s165 + $0x68] sm:$0xf]
      %v199 = vld [vmem:[%s165 + $0x6c] sm:$0xf]
      %v200 = vld [vmem:[%s165 + $0x70] sm:$0xf]
      %v201 = vld [vmem:[%s165 + $0x74] sm:$0xf]
      %v202 = vld [vmem:[%s165 + $0x78] sm:$0xf]
      %v203 = vld [vmem:[%s165 + $0x7c] sm:$0xf]
      %v204 = vld [vmem:[%s165 + $0x80] sm:$0xf]
      %v205 = vld [vmem:[%s165 + $0x84] sm:$0xf]
      %v206 = vld [vmem:[%s165 + $0x88] sm:$0xf]
      %v207 = vld [vmem:[%s165 + $0x8c] sm:$0xf]
      %v208 = vld [vmem:[%s165 + $0x90] sm:$0xf]
      %v209 = vld [vmem:[%s165 + $0x94] sm:$0xf]
      %v210 = vld [vmem:[%s165 + $0x98] sm:$0xf]
      %v211 = vld [vmem:[%s165 + $0x9c] sm:$0xf]
      %v212 = vld [vmem:[%s165 + $0xa0] sm:$0x3]
      %v213 = vld [vmem:[%s1] sm:$0x3]
      %s214 = scalar_lea.vmem %s1, 2
      %v215 = vld [vmem:[%s214] sm:$0x3]
      %v252 = vunpack.c.l.b16 %v172
      %v253 = vunpack.c.l.b16 %v173
      %v254 = vunpack.c.l.b16 %v174
      %v255 = vunpack.c.l.b16 %v175
      %v256 = vunpack.c.l.b16 %v176
      %v257 = vunpack.c.l.b16 %v177
      %v258 = vunpack.c.l.b16 %v178
      %v259 = vunpack.c.l.b16 %v179
      %v260 = vunpack.c.l.b16 %v180
      %v261 = vunpack.c.l.b16 %v181
      %v262 = vunpack.c.l.b16 %v182
      %v263 = vunpack.c.l.b16 %v183
      %v264 = vunpack.c.l.b16 %v184
      %v265 = vunpack.c.l.b16 %v185
      %v266 = vunpack.c.l.b16 %v186
      %v267 = vunpack.c.l.b16 %v187
      %v268 = vunpack.c.l.b16 %v188
      %v269 = vunpack.c.l.b16 %v189
      %v270 = vunpack.c.l.b16 %v190
      %v271 = vunpack.c.l.b16 %v191
      %v272 = vunpack.c.l.b16 %v192
      %v273 = vunpack.c.l.b16 %v193
      %v274 = vunpack.c.l.b16 %v194
      %v275 = vunpack.c.l.b16 %v195
      %v276 = vunpack.c.l.b16 %v196
      %v277 = vunpack.c.l.b16 %v197
      %v278 = vunpack.c.l.b16 %v198
      %v279 = vunpack.c.l.b16 %v199
      %v280 = vunpack.c.l.b16 %v200
      %v281 = vunpack.c.l.b16 %v201
      %v282 = vunpack.c.l.b16 %v202
      %v283 = vunpack.c.l.b16 %v203
      %v284 = vunpack.c.l.b16 %v204
      %v285 = vunpack.c.l.b16 %v205
      %v286 = vunpack.c.l.b16 %v206
      %v287 = vunpack.c.l.b16 %v207
      %v288 = vpack.c.b16 %v253, %v252
      %v289 = vpack.c.b16 %v255, %v254
      %v290 = vpack.c.b16 %v257, %v256
      %v291 = vpack.c.b16 %v259, %v258
      %v292 = vpack.c.b16 %v261, %v260
      %v293 = vpack.c.b16 %v263, %v262
      %v294 = vpack.c.b16 %v265, %v264
      %v295 = vpack.c.b16 %v267, %v266
      %v296 = vpack.c.b16 %v269, %v268
      %v297 = vpack.c.b16 %v271, %v270
      %v298 = vpack.c.b16 %v273, %v272
      %v299 = vpack.c.b16 %v275, %v274
      %v300 = vpack.c.b16 %v277, %v276
      %v301 = vpack.c.b16 %v279, %v278
      %v302 = vpack.c.b16 %v281, %v280
      %v303 = vpack.c.b16 %v283, %v282
      %v304 = vpack.c.b16 %v285, %v284
      %v305 = vpack.c.b16 %v287, %v286
      %vm306 = vsmask.f32 7424
      %v308 = vshrl.u32 %v288, 16
      %v310 = vshll.u32 %v288, 16
      %v312 = vrot.slane %v310, 1
      %v313 = vor.u32 %v308, %v312
      %v315 = vshll.u32 %v289, 16
      %v317 = vrot.slane %v315, 1
      %v318 = vsel %vm306, %v313, %v317
      %v319 = vshrl.u32 %v289, 16
      %v321 = vor.u32 %v319, %v317
      %v323 = vshll.u32 %v290, 16
      %v325 = vrot.slane %v323, 1
      %v326 = vsel %vm306, %v321, %v325
      %v327 = vshrl.u32 %v290, 16
      %v329 = vor.u32 %v327, %v325
      %v331 = vshll.u32 %v291, 16
      %v333 = vrot.slane %v331, 1
      %v334 = vsel %vm306, %v329, %v333
      %v335 = vshrl.u32 %v291, 16
      %v337 = vor.u32 %v335, %v333
      %v339 = vshll.u32 %v292, 16
      %v341 = vrot.slane %v339, 1
      %v342 = vsel %vm306, %v337, %v341
      %v343 = vshrl.u32 %v292, 16
      %v345 = vor.u32 %v343, %v341
      %v347 = vshll.u32 %v293, 16
      %v349 = vrot.slane %v347, 1
      %v350 = vsel %vm306, %v345, %v349
      %v351 = vshrl.u32 %v293, 16
      %v353 = vor.u32 %v351, %v349
      %v355 = vshll.u32 %v294, 16
      %v357 = vrot.slane %v355, 1
      %v358 = vsel %vm306, %v353, %v357
      %v359 = vshrl.u32 %v294, 16
      %v361 = vor.u32 %v359, %v357
      %v363 = vshll.u32 %v295, 16
      %v365 = vrot.slane %v363, 1
      %v366 = vsel %vm306, %v361, %v365
      %v367 = vshrl.u32 %v295, 16
      %v369 = vor.u32 %v367, %v365
      %v371 = vshll.u32 %v296, 16
      %v373 = vrot.slane %v371, 1
      %v374 = vsel %vm306, %v369, %v373
      %v375 = vshrl.u32 %v296, 16
      %v377 = vor.u32 %v375, %v373
      %v379 = vshll.u32 %v297, 16
      %v381 = vrot.slane %v379, 1
      %v382 = vsel %vm306, %v377, %v381
      %v383 = vshrl.u32 %v297, 16
      %v385 = vor.u32 %v383, %v381
      %v387 = vshll.u32 %v298, 16
      %v389 = vrot.slane %v387, 1
      %v390 = vsel %vm306, %v385, %v389
      %v391 = vshrl.u32 %v298, 16
      %v393 = vor.u32 %v391, %v389
      %v395 = vshll.u32 %v299, 16
      %v397 = vrot.slane %v395, 1
      %v398 = vsel %vm306, %v393, %v397
      %v399 = vshrl.u32 %v299, 16
      %v401 = vor.u32 %v399, %v397
      %v403 = vshll.u32 %v300, 16
      %v405 = vrot.slane %v403, 1
      %v406 = vsel %vm306, %v401, %v405
      %v407 = vshrl.u32 %v300, 16
      %v409 = vor.u32 %v407, %v405
      %v411 = vshll.u32 %v301, 16
      %v413 = vrot.slane %v411, 1
      %v414 = vsel %vm306, %v409, %v413
      %v415 = vshrl.u32 %v301, 16
      %v417 = vor.u32 %v415, %v413
      %v419 = vshll.u32 %v302, 16
      %v421 = vrot.slane %v419, 1
      %v422 = vsel %vm306, %v417, %v421
      %v423 = vshrl.u32 %v302, 16
      %v425 = vor.u32 %v423, %v421
      %v427 = vshll.u32 %v303, 16
      %v429 = vrot.slane %v427, 1
      %v430 = vsel %vm306, %v425, %v429
      %v431 = vshrl.u32 %v303, 16
      %v433 = vor.u32 %v431, %v429
      %v435 = vshll.u32 %v304, 16
      %v437 = vrot.slane %v435, 1
      %v438 = vsel %vm306, %v433, %v437
      %v439 = vshrl.u32 %v304, 16
      %v441 = vor.u32 %v439, %v437
      %v443 = vshll.u32 %v305, 16
      %v445 = vrot.slane %v443, 1
      %v446 = vsel %vm306, %v441, %v445
      %v447 = vshrl.u32 %v305, 16
      %v449 = vor.u32 %v447, %v445
      %vm450 = vcmask 23552
      %v452 = vsel %vm450, %v318, 0
      %v455 = vsel %vm450, %v326, 0
      %v458 = vsel %vm450, %v334, 0
      %v461 = vsel %vm450, %v342, 0
      %v464 = vsel %vm450, %v350, 0
      %v467 = vsel %vm450, %v358, 0
      %v470 = vsel %vm450, %v366, 0
      %v473 = vsel %vm450, %v374, 0
      %v476 = vsel %vm450, %v382, 0
      %v479 = vsel %vm450, %v390, 0
      %v482 = vsel %vm450, %v398, 0
      %v485 = vsel %vm450, %v406, 0
      %v488 = vsel %vm450, %v414, 0
      %v491 = vsel %vm450, %v422, 0
      %v494 = vsel %vm450, %v430, 0
      %v497 = vsel %vm450, %v438, 0
      %v500 = vsel %vm450, %v446, 0
      %v503 = vsel %vm450, %v449, 0
      %vm505 = vcmask 1040384
      %vm506 = vcmask 1041408
      %v507 = vsel %vm505, 4294967295, 65535
      %v508 = vsel %vm506, %v507, 0
      %v510 = vand.u32 %v215, %v508
      %512 = vmatprep.subr.bf16.mxu0 0
      %513 = vmatpush1.bf16.msra.mxu0 0
      %514 = vmatprep.subr.bf16.mxu0 0
      %515 = vmatpush1.bf16.msra.mxu0 0
      %516 = vmatprep.subr.bf16.mxu0 0
      %517 = vmatpush1.bf16.msra.mxu0 0
      %518 = vmatprep.subr.bf16.mxu0 0
      %519 = vmatpush1.bf16.msra.mxu0 0
      %520 = vmatprep.subr.bf16.mxu0 0
      %521 = vmatpush1.bf16.msra.mxu0 0
      %522 = vmatprep.subr.bf16.mxu0 0
      %523 = vmatpush1.bf16.msra.mxu0 0
      %524 = vmatprep.subr.bf16.mxu0 0
      %525 = vmatpush1.bf16.msra.mxu0 0
      %526 = vmatprep.subr.bf16.mxu0 0
      %527 = vmatpush1.bf16.msra.mxu0 %v510
      %528 = vmatprep.subr.bf16.mxu0 0
      %529 = vmatpush2.bf16.msra.mxu0 0
      %530 = vmatprep.subr.bf16.mxu0 0
      %531 = vmatpush2.bf16.msra.mxu0 0
      %532 = vmatprep.subr.bf16.mxu0 0
      %533 = vmatpush2.bf16.msra.mxu0 0
      %534 = vmatprep.subr.bf16.mxu0 0
      %535 = vmatpush2.bf16.msra.mxu0 0
      %536 = vmatprep.subr.bf16.mxu0 0
      %537 = vmatpush2.bf16.msra.mxu0 0
      %538 = vmatprep.subr.bf16.mxu0 0
      %539 = vmatpush2.bf16.msra.mxu0 0
      %540 = vmatprep.subr.bf16.mxu0 0
      %541 = vmatpush2.bf16.msra.mxu0 0
      %542 = vmatprep.subr.bf16.mxu0 0
      %543 = vmatpush2.bf16.msra.mxu0 0
      %544 = vmatprep.mubr.bf16.mxu0 0
      %545 = vmatmul.mubr.bf16.gmra.mxu0 %v452
      %v546 = vpop.f32.mrf.mxu0
      %v547 = vadd.f32 0.0, %v546
      %v548 = vpop.f32.mrf.mxu0
      %v549 = vpop.f32.mrf.mxu0
      %v550 = vadd.f32 0.0, %v549
      %v551 = vpop.f32.mrf.mxu0
      %552 = vmatprep.mubr.bf16.mxu0 0
      %553 = vmatmul.mubr.bf16.gmra.mxu0 %v455
      %v554 = vpop.f32.mrf.mxu0
      %v555 = vadd.f32 0.0, %v554
      %v556 = vpop.f32.mrf.mxu0
      %v557 = vpop.f32.mrf.mxu0
      %v558 = vadd.f32 0.0, %v557
      %v559 = vpop.f32.mrf.mxu0
      %560 = vmatprep.mubr.bf16.mxu0 0
      %561 = vmatmul.mubr.bf16.gmra.mxu0 %v458
      %v562 = vpop.f32.mrf.mxu0
      %v563 = vadd.f32 0.0, %v562
      %v564 = vpop.f32.mrf.mxu0
      %v565 = vpop.f32.mrf.mxu0
      %v566 = vadd.f32 0.0, %v565
      %v567 = vpop.f32.mrf.mxu0
      %568 = vmatprep.mubr.bf16.mxu0 0
      %569 = vmatmul.mubr.bf16.gmra.mxu0 %v461
      %v570 = vpop.f32.mrf.mxu0
      %v571 = vadd.f32 0.0, %v570
      %v572 = vpop.f32.mrf.mxu0
      %v573 = vpop.f32.mrf.mxu0
      %v574 = vadd.f32 0.0, %v573
      %v575 = vpop.f32.mrf.mxu0
      %576 = vmatprep.mubr.bf16.mxu0 0
      %577 = vmatmul.mubr.bf16.gmra.mxu0 %v464
      %v578 = vpop.f32.mrf.mxu0
      %v579 = vadd.f32 0.0, %v578
      %v580 = vpop.f32.mrf.mxu0
      %v581 = vpop.f32.mrf.mxu0
      %v582 = vadd.f32 0.0, %v581
      %v583 = vpop.f32.mrf.mxu0
      %584 = vmatprep.mubr.bf16.mxu0 0
      %585 = vmatmul.mubr.bf16.gmra.mxu0 %v467
      %v586 = vpop.f32.mrf.mxu0
      %v587 = vadd.f32 0.0, %v586
      %v588 = vpop.f32.mrf.mxu0
      %v589 = vpop.f32.mrf.mxu0
      %v590 = vadd.f32 0.0, %v589
      %v591 = vpop.f32.mrf.mxu0
      %592 = vmatprep.mubr.bf16.mxu0 0
      %593 = vmatmul.mubr.bf16.gmra.mxu0 %v470
      %v594 = vpop.f32.mrf.mxu0
      %v595 = vadd.f32 0.0, %v594
      %v596 = vpop.f32.mrf.mxu0
      %v597 = vpop.f32.mrf.mxu0
      %v598 = vadd.f32 0.0, %v597
      %v599 = vpop.f32.mrf.mxu0
      %600 = vmatprep.mubr.bf16.mxu0 0
      %601 = vmatmul.mubr.bf16.gmra.mxu0 %v473
      %v602 = vpop.f32.mrf.mxu0
      %v603 = vadd.f32 0.0, %v602
      %v604 = vpop.f32.mrf.mxu0
      %v605 = vpop.f32.mrf.mxu0
      %v606 = vadd.f32 0.0, %v605
      %v607 = vpop.f32.mrf.mxu0
      %608 = vmatprep.mubr.bf16.mxu0 0
      %609 = vmatmul.mubr.bf16.gmra.mxu0 %v476
      %v610 = vpop.f32.mrf.mxu0
      %v611 = vadd.f32 0.0, %v610
      %v612 = vpop.f32.mrf.mxu0
      %v613 = vpop.f32.mrf.mxu0
      %v614 = vadd.f32 0.0, %v613
      %v615 = vpop.f32.mrf.mxu0
      %616 = vmatprep.mubr.bf16.mxu0 0
      %617 = vmatmul.mubr.bf16.gmra.mxu0 %v479
      %v618 = vpop.f32.mrf.mxu0
      %v619 = vadd.f32 0.0, %v618
      %v620 = vpop.f32.mrf.mxu0
      %v621 = vpop.f32.mrf.mxu0
      %v622 = vadd.f32 0.0, %v621
      %v623 = vpop.f32.mrf.mxu0
      %624 = vmatprep.mubr.bf16.mxu0 0
      %625 = vmatmul.mubr.bf16.gmra.mxu0 %v482
      %v626 = vpop.f32.mrf.mxu0
      %v627 = vadd.f32 0.0, %v626
      %v628 = vpop.f32.mrf.mxu0
      %v629 = vpop.f32.mrf.mxu0
      %v630 = vadd.f32 0.0, %v629
      %v631 = vpop.f32.mrf.mxu0
      %632 = vmatprep.mubr.bf16.mxu0 0
      %633 = vmatmul.mubr.bf16.gmra.mxu0 %v485
      %v634 = vpop.f32.mrf.mxu0
      %v635 = vadd.f32 0.0, %v634
      %v636 = vpop.f32.mrf.mxu0
      %v637 = vpop.f32.mrf.mxu0
      %v638 = vadd.f32 0.0, %v637
      %v639 = vpop.f32.mrf.mxu0
      %640 = vmatprep.mubr.bf16.mxu0 0
      %641 = vmatmul.mubr.bf16.gmra.mxu0 %v488
      %v642 = vpop.f32.mrf.mxu0
      %v643 = vadd.f32 0.0, %v642
      %v644 = vpop.f32.mrf.mxu0
      %v645 = vpop.f32.mrf.mxu0
      %v646 = vadd.f32 0.0, %v645
      %v647 = vpop.f32.mrf.mxu0
      %648 = vmatprep.mubr.bf16.mxu0 0
      %649 = vmatmul.mubr.bf16.gmra.mxu0 %v491
      %v650 = vpop.f32.mrf.mxu0
      %v651 = vadd.f32 0.0, %v650
      %v652 = vpop.f32.mrf.mxu0
      %v653 = vpop.f32.mrf.mxu0
      %v654 = vadd.f32 0.0, %v653
      %v655 = vpop.f32.mrf.mxu0
      %656 = vmatprep.mubr.bf16.mxu0 0
      %657 = vmatmul.mubr.bf16.gmra.mxu0 %v494
      %v658 = vpop.f32.mrf.mxu0
      %v659 = vadd.f32 0.0, %v658
      %v660 = vpop.f32.mrf.mxu0
      %v661 = vpop.f32.mrf.mxu0
      %v662 = vadd.f32 0.0, %v661
      %v663 = vpop.f32.mrf.mxu0
      %664 = vmatprep.mubr.bf16.mxu0 0
      %665 = vmatmul.mubr.bf16.gmra.mxu0 %v497
      %v666 = vpop.f32.mrf.mxu0
      %v667 = vadd.f32 0.0, %v666
      %v668 = vpop.f32.mrf.mxu0
      %v669 = vpop.f32.mrf.mxu0
      %v670 = vadd.f32 0.0, %v669
      %v671 = vpop.f32.mrf.mxu0
      %672 = vmatprep.mubr.bf16.mxu0 0
      %673 = vmatmul.mubr.bf16.gmra.mxu0 %v500
      %v674 = vpop.f32.mrf.mxu0
      %v675 = vadd.f32 0.0, %v674
      %v676 = vpop.f32.mrf.mxu0
      %v677 = vpop.f32.mrf.mxu0
      %v678 = vadd.f32 0.0, %v677
      %v679 = vpop.f32.mrf.mxu0
      %680 = vmatprep.mubr.bf16.mxu0 0
      %681 = vmatmul.mubr.bf16.gmra.mxu0 %v503
      %v682 = vpop.f32.mrf.mxu0
      %v683 = vadd.f32 0.0, %v682
      %v684 = vpop.f32.mrf.mxu0
      %v685 = vpop.f32.mrf.mxu0
      %v686 = vadd.f32 0.0, %v685
      %v687 = vpop.f32.mrf.mxu0
      %688 = vdwg.mxu0
      %v689 = vsel %vm450, %v288, 0
      %v691 = vsel %vm450, %v289, 0
      %v693 = vsel %vm450, %v290, 0
      %v695 = vsel %vm450, %v291, 0
      %v697 = vsel %vm450, %v292, 0
      %v699 = vsel %vm450, %v293, 0
      %v701 = vsel %vm450, %v294, 0
      %v703 = vsel %vm450, %v295, 0
      %v705 = vsel %vm450, %v296, 0
      %v707 = vsel %vm450, %v297, 0
      %v709 = vsel %vm450, %v298, 0
      %v711 = vsel %vm450, %v299, 0
      %v713 = vsel %vm450, %v300, 0
      %v715 = vsel %vm450, %v301, 0
      %v717 = vsel %vm450, %v302, 0
      %v719 = vsel %vm450, %v303, 0
      %v721 = vsel %vm450, %v304, 0
      %v723 = vsel %vm450, %v305, 0
      %v726 = vand.u32 %v213, %v508
      %728 = vmatprep.subr.bf16.mxu0 0
      %729 = vmatpush1.bf16.msra.mxu0 0
      %730 = vmatprep.subr.bf16.mxu0 0
      %731 = vmatpush1.bf16.msra.mxu0 0
      %732 = vmatprep.subr.bf16.mxu0 0
      %733 = vmatpush1.bf16.msra.mxu0 0
      %734 = vmatprep.subr.bf16.mxu0 0
      %735 = vmatpush1.bf16.msra.mxu0 0
      %736 = vmatprep.subr.bf16.mxu0 0
      %737 = vmatpush1.bf16.msra.mxu0 0
      %738 = vmatprep.subr.bf16.mxu0 0
      %739 = vmatpush1.bf16.msra.mxu0 0
      %740 = vmatprep.subr.bf16.mxu0 0
      %741 = vmatpush1.bf16.msra.mxu0 0
      %742 = vmatprep.subr.bf16.mxu0 0
      %743 = vmatpush1.bf16.msra.mxu0 %v726
      %744 = vmatprep.subr.bf16.mxu0 0
      %745 = vmatpush2.bf16.msra.mxu0 0
      %746 = vmatprep.subr.bf16.mxu0 0
      %747 = vmatpush2.bf16.msra.mxu0 0
      %748 = vmatprep.subr.bf16.mxu0 0
      %749 = vmatpush2.bf16.msra.mxu0 0
      %750 = vmatprep.subr.bf16.mxu0 0
      %751 = vmatpush2.bf16.msra.mxu0 0
      %752 = vmatprep.subr.bf16.mxu0 0
      %753 = vmatpush2.bf16.msra.mxu0 0
      %754 = vmatprep.subr.bf16.mxu0 0
      %755 = vmatpush2.bf16.msra.mxu0 0
      %756 = vmatprep.subr.bf16.mxu0 0
      %757 = vmatpush2.bf16.msra.mxu0 0
      %758 = vmatprep.subr.bf16.mxu0 0
      %759 = vmatpush2.bf16.msra.mxu0 0
      %760 = vmatprep.mubr.bf16.mxu0 0
      %761 = vmatmul.mubr.bf16.gmra.mxu0 %v689
      %v762 = vpop.f32.mrf.mxu0
      %v763 = vadd.f32 %v547, %v762
      %v764 = vpop.f32.mrf.mxu0
      %v765 = vpop.f32.mrf.mxu0
      %v766 = vadd.f32 %v550, %v765
      %v767 = vpop.f32.mrf.mxu0
      %768 = vmatprep.mubr.bf16.mxu0 0
      %769 = vmatmul.mubr.bf16.gmra.mxu0 %v691
      %v770 = vpop.f32.mrf.mxu0
      %v771 = vadd.f32 %v555, %v770
      %v772 = vpop.f32.mrf.mxu0
      %v773 = vpop.f32.mrf.mxu0
      %v774 = vadd.f32 %v558, %v773
      %v775 = vpop.f32.mrf.mxu0
      %776 = vmatprep.mubr.bf16.mxu0 0
      %777 = vmatmul.mubr.bf16.gmra.mxu0 %v693
      %v778 = vpop.f32.mrf.mxu0
      %v779 = vadd.f32 %v563, %v778
      %v780 = vpop.f32.mrf.mxu0
      %v781 = vpop.f32.mrf.mxu0
      %v782 = vadd.f32 %v566, %v781
      %v783 = vpop.f32.mrf.mxu0
      %784 = vmatprep.mubr.bf16.mxu0 0
      %785 = vmatmul.mubr.bf16.gmra.mxu0 %v695
      %v786 = vpop.f32.mrf.mxu0
      %v787 = vadd.f32 %v571, %v786
      %v788 = vpop.f32.mrf.mxu0
      %v789 = vpop.f32.mrf.mxu0
      %v790 = vadd.f32 %v574, %v789
      %v791 = vpop.f32.mrf.mxu0
      %792 = vmatprep.mubr.bf16.mxu0 0
      %793 = vmatmul.mubr.bf16.gmra.mxu0 %v697
      %v794 = vpop.f32.mrf.mxu0
      %v795 = vadd.f32 %v579, %v794
      %v796 = vpop.f32.mrf.mxu0
      %v797 = vpop.f32.mrf.mxu0
      %v798 = vadd.f32 %v582, %v797
      %v799 = vpop.f32.mrf.mxu0
      %800 = vmatprep.mubr.bf16.mxu0 0
      %801 = vmatmul.mubr.bf16.gmra.mxu0 %v699
      %v802 = vpop.f32.mrf.mxu0
      %v803 = vadd.f32 %v587, %v802
      %v804 = vpop.f32.mrf.mxu0
      %v805 = vpop.f32.mrf.mxu0
      %v806 = vadd.f32 %v590, %v805
      %v807 = vpop.f32.mrf.mxu0
      %808 = vmatprep.mubr.bf16.mxu0 0
      %809 = vmatmul.mubr.bf16.gmra.mxu0 %v701
      %v810 = vpop.f32.mrf.mxu0
      %v811 = vadd.f32 %v595, %v810
      %v812 = vpop.f32.mrf.mxu0
      %v813 = vpop.f32.mrf.mxu0
      %v814 = vadd.f32 %v598, %v813
      %v815 = vpop.f32.mrf.mxu0
      %816 = vmatprep.mubr.bf16.mxu0 0
      %817 = vmatmul.mubr.bf16.gmra.mxu0 %v703
      %v818 = vpop.f32.mrf.mxu0
      %v819 = vadd.f32 %v603, %v818
      %v820 = vpop.f32.mrf.mxu0
      %v821 = vpop.f32.mrf.mxu0
      %v822 = vadd.f32 %v606, %v821
      %v823 = vpop.f32.mrf.mxu0
      %824 = vmatprep.mubr.bf16.mxu0 0
      %825 = vmatmul.mubr.bf16.gmra.mxu0 %v705
      %v826 = vpop.f32.mrf.mxu0
      %v827 = vadd.f32 %v611, %v826
      %v828 = vpop.f32.mrf.mxu0
      %v829 = vpop.f32.mrf.mxu0
      %v830 = vadd.f32 %v614, %v829
      %v831 = vpop.f32.mrf.mxu0
      %832 = vmatprep.mubr.bf16.mxu0 0
      %833 = vmatmul.mubr.bf16.gmra.mxu0 %v707
      %v834 = vpop.f32.mrf.mxu0
      %v835 = vadd.f32 %v619, %v834
      %v836 = vpop.f32.mrf.mxu0
      %v837 = vpop.f32.mrf.mxu0
      %v838 = vadd.f32 %v622, %v837
      %v839 = vpop.f32.mrf.mxu0
      %840 = vmatprep.mubr.bf16.mxu0 0
      %841 = vmatmul.mubr.bf16.gmra.mxu0 %v709
      %v842 = vpop.f32.mrf.mxu0
      %v843 = vadd.f32 %v627, %v842
      %v844 = vpop.f32.mrf.mxu0
      %v845 = vpop.f32.mrf.mxu0
      %v846 = vadd.f32 %v630, %v845
      %v847 = vpop.f32.mrf.mxu0
      %848 = vmatprep.mubr.bf16.mxu0 0
      %849 = vmatmul.mubr.bf16.gmra.mxu0 %v711
      %v850 = vpop.f32.mrf.mxu0
      %v851 = vadd.f32 %v635, %v850
      %v852 = vpop.f32.mrf.mxu0
      %v853 = vpop.f32.mrf.mxu0
      %v854 = vadd.f32 %v638, %v853
      %v855 = vpop.f32.mrf.mxu0
      %856 = vmatprep.mubr.bf16.mxu0 0
      %857 = vmatmul.mubr.bf16.gmra.mxu0 %v713
      %v858 = vpop.f32.mrf.mxu0
      %v859 = vadd.f32 %v643, %v858
      %v860 = vpop.f32.mrf.mxu0
      %v861 = vpop.f32.mrf.mxu0
      %v862 = vadd.f32 %v646, %v861
      %v863 = vpop.f32.mrf.mxu0
      %864 = vmatprep.mubr.bf16.mxu0 0
      %865 = vmatmul.mubr.bf16.gmra.mxu0 %v715
      %v866 = vpop.f32.mrf.mxu0
      %v867 = vadd.f32 %v651, %v866
      %v868 = vpop.f32.mrf.mxu0
      %v869 = vpop.f32.mrf.mxu0
      %v870 = vadd.f32 %v654, %v869
      %v871 = vpop.f32.mrf.mxu0
      %872 = vmatprep.mubr.bf16.mxu0 0
      %873 = vmatmul.mubr.bf16.gmra.mxu0 %v717
      %v874 = vpop.f32.mrf.mxu0
      %v875 = vadd.f32 %v659, %v874
      %v876 = vpop.f32.mrf.mxu0
      %v877 = vpop.f32.mrf.mxu0
      %v878 = vadd.f32 %v662, %v877
      %v879 = vpop.f32.mrf.mxu0
      %880 = vmatprep.mubr.bf16.mxu0 0
      %881 = vmatmul.mubr.bf16.gmra.mxu0 %v719
      %v882 = vpop.f32.mrf.mxu0
      %v883 = vadd.f32 %v667, %v882
      %v884 = vpop.f32.mrf.mxu0
      %v885 = vpop.f32.mrf.mxu0
      %v886 = vadd.f32 %v670, %v885
      %v887 = vpop.f32.mrf.mxu0
      %888 = vmatprep.mubr.bf16.mxu0 0
      %889 = vmatmul.mubr.bf16.gmra.mxu0 %v721
      %v890 = vpop.f32.mrf.mxu0
      %v891 = vadd.f32 %v675, %v890
      %v892 = vpop.f32.mrf.mxu0
      %v893 = vpop.f32.mrf.mxu0
      %v894 = vadd.f32 %v678, %v893
      %v895 = vpop.f32.mrf.mxu0
      %896 = vmatprep.mubr.bf16.mxu0 0
      %897 = vmatmul.mubr.bf16.gmra.mxu0 %v723
      %v898 = vpop.f32.mrf.mxu0
      %v899 = vadd.f32 %v683, %v898
      %v900 = vpop.f32.mrf.mxu0
      %v901 = vpop.f32.mrf.mxu0
      %v902 = vadd.f32 %v686, %v901
      %v903 = vpop.f32.mrf.mxu0
      %904 = vdwg.mxu0
      %s905 = scalar_lea.vmem %s1, 4
      %v906 = vld [vmem:[%s905] sm:$0x3]
      %vm907 = vcmask 1046528
      %v908 = vrot.slane %v288, 1
      %v909 = vrot.slane %v289, 1
      %v910 = vsel %vm907, %v908, %v909
      %v911 = vrot.slane %v290, 1
      %v912 = vsel %vm907, %v909, %v911
      %v913 = vrot.slane %v291, 1
      %v914 = vsel %vm907, %v911, %v913
      %v915 = vrot.slane %v292, 1
      %v916 = vsel %vm907, %v913, %v915
      %v917 = vrot.slane %v293, 1
      %v918 = vsel %vm907, %v915, %v917
      %v919 = vrot.slane %v294, 1
      %v920 = vsel %vm907, %v917, %v919
      %v921 = vrot.slane %v295, 1
      %v922 = vsel %vm907, %v919, %v921
      %v923 = vrot.slane %v296, 1
      %v924 = vsel %vm907, %v921, %v923
      %v925 = vrot.slane %v297, 1
      %v926 = vsel %vm907, %v923, %v925
      %v927 = vrot.slane %v298, 1
      %v928 = vsel %vm907, %v925, %v927
      %v929 = vrot.slane %v299, 1
      %v930 = vsel %vm907, %v927, %v929
      %v931 = vrot.slane %v300, 1
      %v932 = vsel %vm907, %v929, %v931
      %v933 = vrot.slane %v301, 1
      %v934 = vsel %vm907, %v931, %v933
      %v935 = vrot.slane %v302, 1
      %v936 = vsel %vm907, %v933, %v935
      %v937 = vrot.slane %v303, 1
      %v938 = vsel %vm907, %v935, %v937
      %v939 = vrot.slane %v304, 1
      %v940 = vsel %vm907, %v937, %v939
      %v941 = vrot.slane %v305, 1
      %v942 = vsel %vm907, %v939, %v941
      %v944 = vsel %vm450, %v910, 0
      %v947 = vsel %vm450, %v912, 0
      %v950 = vsel %vm450, %v914, 0
      %v953 = vsel %vm450, %v916, 0
      %v956 = vsel %vm450, %v918, 0
      %v959 = vsel %vm450, %v920, 0
      %v962 = vsel %vm450, %v922, 0
      %v965 = vsel %vm450, %v924, 0
      %v968 = vsel %vm450, %v926, 0
      %v971 = vsel %vm450, %v928, 0
      %v974 = vsel %vm450, %v930, 0
      %v977 = vsel %vm450, %v932, 0
      %v980 = vsel %vm450, %v934, 0
      %v983 = vsel %vm450, %v936, 0
      %v986 = vsel %vm450, %v938, 0
      %v989 = vsel %vm450, %v940, 0
      %v992 = vsel %vm450, %v942, 0
      %v995 = vsel %vm450, %v941, 0
      %v998 = vand.u32 %v906, %v508
      %1000 = vmatprep.subr.bf16.mxu0 0
      %1001 = vmatpush1.bf16.msra.mxu0 0
      %1002 = vmatprep.subr.bf16.mxu0 0
      %1003 = vmatpush1.bf16.msra.mxu0 0
      %1004 = vmatprep.subr.bf16.mxu0 0
      %1005 = vmatpush1.bf16.msra.mxu0 0
      %1006 = vmatprep.subr.bf16.mxu0 0
      %1007 = vmatpush1.bf16.msra.mxu0 0
      %1008 = vmatprep.subr.bf16.mxu0 0
      %1009 = vmatpush1.bf16.msra.mxu0 0
      %1010 = vmatprep.subr.bf16.mxu0 0
      %1011 = vmatpush1.bf16.msra.mxu0 0
      %1012 = vmatprep.subr.bf16.mxu0 0
      %1013 = vmatpush1.bf16.msra.mxu0 0
      %1014 = vmatprep.subr.bf16.mxu0 0
      %1015 = vmatpush1.bf16.msra.mxu0 %v998
      %1016 = vmatprep.subr.bf16.mxu0 0
      %1017 = vmatpush2.bf16.msra.mxu0 0
      %1018 = vmatprep.subr.bf16.mxu0 0
      %1019 = vmatpush2.bf16.msra.mxu0 0
      %1020 = vmatprep.subr.bf16.mxu0 0
      %1021 = vmatpush2.bf16.msra.mxu0 0
      %1022 = vmatprep.subr.bf16.mxu0 0
      %1023 = vmatpush2.bf16.msra.mxu0 0
      %1024 = vmatprep.subr.bf16.mxu0 0
      %1025 = vmatpush2.bf16.msra.mxu0 0
      %1026 = vmatprep.subr.bf16.mxu0 0
      %1027 = vmatpush2.bf16.msra.mxu0 0
      %1028 = vmatprep.subr.bf16.mxu0 0
      %1029 = vmatpush2.bf16.msra.mxu0 0
      %1030 = vmatprep.subr.bf16.mxu0 0
      %1031 = vmatpush2.bf16.msra.mxu0 0
      %1032 = vmatprep.mubr.bf16.mxu0 0
      %1033 = vmatmul.mubr.bf16.gmra.mxu0 %v944
      %v1034 = vpop.f32.mrf.mxu0
      %v1035 = vadd.f32 0.0, %v1034
      %v1036 = vpop.f32.mrf.mxu0
      %v1037 = vpop.f32.mrf.mxu0
      %v1038 = vadd.f32 0.0, %v1037
      %v1039 = vpop.f32.mrf.mxu0
      %1040 = vmatprep.mubr.bf16.mxu0 0
      %1041 = vmatmul.mubr.bf16.gmra.mxu0 %v947
      %v1042 = vpop.f32.mrf.mxu0
      %v1043 = vadd.f32 0.0, %v1042
      %v1044 = vpop.f32.mrf.mxu0
      %v1045 = vpop.f32.mrf.mxu0
      %v1046 = vadd.f32 0.0, %v1045
      %v1047 = vpop.f32.mrf.mxu0
      %1048 = vmatprep.mubr.bf16.mxu0 0
      %1049 = vmatmul.mubr.bf16.gmra.mxu0 %v950
      %v1050 = vpop.f32.mrf.mxu0
      %v1051 = vadd.f32 0.0, %v1050
      %v1052 = vpop.f32.mrf.mxu0
      %v1053 = vpop.f32.mrf.mxu0
      %v1054 = vadd.f32 0.0, %v1053
      %v1055 = vpop.f32.mrf.mxu0
      %1056 = vmatprep.mubr.bf16.mxu0 0
      %1057 = vmatmul.mubr.bf16.gmra.mxu0 %v953
      %v1058 = vpop.f32.mrf.mxu0
      %v1059 = vadd.f32 0.0, %v1058
      %v1060 = vpop.f32.mrf.mxu0
      %v1061 = vpop.f32.mrf.mxu0
      %v1062 = vadd.f32 0.0, %v1061
      %v1063 = vpop.f32.mrf.mxu0
      %1064 = vmatprep.mubr.bf16.mxu0 0
      %1065 = vmatmul.mubr.bf16.gmra.mxu0 %v956
      %v1066 = vpop.f32.mrf.mxu0
      %v1067 = vadd.f32 0.0, %v1066
      %v1068 = vpop.f32.mrf.mxu0
      %v1069 = vpop.f32.mrf.mxu0
      %v1070 = vadd.f32 0.0, %v1069
      %v1071 = vpop.f32.mrf.mxu0
      %1072 = vmatprep.mubr.bf16.mxu0 0
      %1073 = vmatmul.mubr.bf16.gmra.mxu0 %v959
      %v1074 = vpop.f32.mrf.mxu0
      %v1075 = vadd.f32 0.0, %v1074
      %v1076 = vpop.f32.mrf.mxu0
      %v1077 = vpop.f32.mrf.mxu0
      %v1078 = vadd.f32 0.0, %v1077
      %v1079 = vpop.f32.mrf.mxu0
      %1080 = vmatprep.mubr.bf16.mxu0 0
      %1081 = vmatmul.mubr.bf16.gmra.mxu0 %v962
      %v1082 = vpop.f32.mrf.mxu0
      %v1083 = vadd.f32 0.0, %v1082
      %v1084 = vpop.f32.mrf.mxu0
      %v1085 = vpop.f32.mrf.mxu0
      %v1086 = vadd.f32 0.0, %v1085
      %v1087 = vpop.f32.mrf.mxu0
      %1088 = vmatprep.mubr.bf16.mxu0 0
      %1089 = vmatmul.mubr.bf16.gmra.mxu0 %v965
      %v1090 = vpop.f32.mrf.mxu0
      %v1091 = vadd.f32 0.0, %v1090
      %v1092 = vpop.f32.mrf.mxu0
      %v1093 = vpop.f32.mrf.mxu0
      %v1094 = vadd.f32 0.0, %v1093
      %v1095 = vpop.f32.mrf.mxu0
      %1096 = vmatprep.mubr.bf16.mxu0 0
      %1097 = vmatmul.mubr.bf16.gmra.mxu0 %v968
      %v1098 = vpop.f32.mrf.mxu0
      %v1099 = vadd.f32 0.0, %v1098
      %v1100 = vpop.f32.mrf.mxu0
      %v1101 = vpop.f32.mrf.mxu0
      %v1102 = vadd.f32 0.0, %v1101
      %v1103 = vpop.f32.mrf.mxu0
      %1104 = vmatprep.mubr.bf16.mxu0 0
      %1105 = vmatmul.mubr.bf16.gmra.mxu0 %v971
      %v1106 = vpop.f32.mrf.mxu0
      %v1107 = vadd.f32 0.0, %v1106
      %v1108 = vpop.f32.mrf.mxu0
      %v1109 = vpop.f32.mrf.mxu0
      %v1110 = vadd.f32 0.0, %v1109
      %v1111 = vpop.f32.mrf.mxu0
      %1112 = vmatprep.mubr.bf16.mxu0 0
      %1113 = vmatmul.mubr.bf16.gmra.mxu0 %v974
      %v1114 = vpop.f32.mrf.mxu0
      %v1115 = vadd.f32 0.0, %v1114
      %v1116 = vpop.f32.mrf.mxu0
      %v1117 = vpop.f32.mrf.mxu0
      %v1118 = vadd.f32 0.0, %v1117
      %v1119 = vpop.f32.mrf.mxu0
      %1120 = vmatprep.mubr.bf16.mxu0 0
      %1121 = vmatmul.mubr.bf16.gmra.mxu0 %v977
      %v1122 = vpop.f32.mrf.mxu0
      %v1123 = vadd.f32 0.0, %v1122
      %v1124 = vpop.f32.mrf.mxu0
      %v1125 = vpop.f32.mrf.mxu0
      %v1126 = vadd.f32 0.0, %v1125
      %v1127 = vpop.f32.mrf.mxu0
      %1128 = vmatprep.mubr.bf16.mxu0 0
      %1129 = vmatmul.mubr.bf16.gmra.mxu0 %v980
      %v1130 = vpop.f32.mrf.mxu0
      %v1131 = vadd.f32 0.0, %v1130
      %v1132 = vpop.f32.mrf.mxu0
      %v1133 = vpop.f32.mrf.mxu0
      %v1134 = vadd.f32 0.0, %v1133
      %v1135 = vpop.f32.mrf.mxu0
      %1136 = vmatprep.mubr.bf16.mxu0 0
      %1137 = vmatmul.mubr.bf16.gmra.mxu0 %v983
      %v1138 = vpop.f32.mrf.mxu0
      %v1139 = vadd.f32 0.0, %v1138
      %v1140 = vpop.f32.mrf.mxu0
      %v1141 = vpop.f32.mrf.mxu0
      %v1142 = vadd.f32 0.0, %v1141
      %v1143 = vpop.f32.mrf.mxu0
      %1144 = vmatprep.mubr.bf16.mxu0 0
      %1145 = vmatmul.mubr.bf16.gmra.mxu0 %v986
      %v1146 = vpop.f32.mrf.mxu0
      %v1147 = vadd.f32 0.0, %v1146
      %v1148 = vpop.f32.mrf.mxu0
      %v1149 = vpop.f32.mrf.mxu0
      %v1150 = vadd.f32 0.0, %v1149
      %v1151 = vpop.f32.mrf.mxu0
      %1152 = vmatprep.mubr.bf16.mxu0 0
      %1153 = vmatmul.mubr.bf16.gmra.mxu0 %v989
      %v1154 = vpop.f32.mrf.mxu0
      %v1155 = vadd.f32 0.0, %v1154
      %v1156 = vpop.f32.mrf.mxu0
      %v1157 = vpop.f32.mrf.mxu0
      %v1158 = vadd.f32 0.0, %v1157
      %v1159 = vpop.f32.mrf.mxu0
      %1160 = vmatprep.mubr.bf16.mxu0 0
      %1161 = vmatmul.mubr.bf16.gmra.mxu0 %v992
      %v1162 = vpop.f32.mrf.mxu0
      %v1163 = vadd.f32 0.0, %v1162
      %v1164 = vpop.f32.mrf.mxu0
      %v1165 = vpop.f32.mrf.mxu0
      %v1166 = vadd.f32 0.0, %v1165
      %v1167 = vpop.f32.mrf.mxu0
      %1168 = vmatprep.mubr.bf16.mxu0 0
      %1169 = vmatmul.mubr.bf16.gmra.mxu0 %v995
      %v1170 = vpop.f32.mrf.mxu0
      %v1171 = vadd.f32 0.0, %v1170
      %v1172 = vpop.f32.mrf.mxu0
      %v1173 = vpop.f32.mrf.mxu0
      %v1174 = vadd.f32 0.0, %v1173
      %v1175 = vpop.f32.mrf.mxu0
      %1176 = vdwg.mxu0
      %v1177 = vadd.f32 %v763, %v1035
      %v1178 = vadd.f32 %v766, %v1038
      %v1179 = vadd.f32 %v771, %v1043
      %v1180 = vadd.f32 %v774, %v1046
      %v1181 = vadd.f32 %v779, %v1051
      %v1182 = vadd.f32 %v782, %v1054
      %v1183 = vadd.f32 %v787, %v1059
      %v1184 = vadd.f32 %v790, %v1062
      %v1185 = vadd.f32 %v795, %v1067
      %v1186 = vadd.f32 %v798, %v1070
      %v1187 = vadd.f32 %v803, %v1075
      %v1188 = vadd.f32 %v806, %v1078
      %v1189 = vadd.f32 %v811, %v1083
      %v1190 = vadd.f32 %v814, %v1086
      %v1191 = vadd.f32 %v819, %v1091
      %v1192 = vadd.f32 %v822, %v1094
      %v1193 = vadd.f32 %v827, %v1099
      %v1194 = vadd.f32 %v830, %v1102
      %v1195 = vadd.f32 %v835, %v1107
      %v1196 = vadd.f32 %v838, %v1110
      %v1197 = vadd.f32 %v843, %v1115
      %v1198 = vadd.f32 %v846, %v1118
      %v1199 = vadd.f32 %v851, %v1123
      %v1200 = vadd.f32 %v854, %v1126
      %v1201 = vadd.f32 %v859, %v1131
      %v1202 = vadd.f32 %v862, %v1134
      %v1203 = vadd.f32 %v867, %v1139
      %v1204 = vadd.f32 %v870, %v1142
      %v1205 = vadd.f32 %v875, %v1147
      %v1206 = vadd.f32 %v878, %v1150
      %v1207 = vadd.f32 %v883, %v1155
      %v1208 = vadd.f32 %v886, %v1158
      %v1209 = vadd.f32 %v891, %v1163
      %v1210 = vadd.f32 %v894, %v1166
      %v1211 = vadd.f32 %v899, %v1171
      %v1212 = vadd.f32 %v902, %v1174
      %s1213 = scalar_lea.vmem %s1, 6
      %v1214 = vld [vmem:[%s1213] sm:$0x3]
      %v1217 = vunpack.c.l.b16 %v208
      %v1218 = vunpack.c.l.b16 %v209
      %v1219 = vpack.c.b16 %v1218, %v1217
      %v1220 = vrot.slane %v1219, 1
      %v1221 = vsel %vm907, %v941, %v1220
      %v1223 = vsel %vm450, %v1221, 0
      %v1226 = vsel %vm450, %v1220, 0
      %v1229 = vand.u32 %v1214, %v508
      %1231 = vmatprep.subr.bf16.mxu0 0
      %1232 = vmatpush1.bf16.msra.mxu0 0
      %1233 = vmatprep.subr.bf16.mxu0 0
      %1234 = vmatpush1.bf16.msra.mxu0 0
      %1235 = vmatprep.subr.bf16.mxu0 0
      %1236 = vmatpush1.bf16.msra.mxu0 0
      %1237 = vmatprep.subr.bf16.mxu0 0
      %1238 = vmatpush1.bf16.msra.mxu0 0
      %1239 = vmatprep.subr.bf16.mxu0 0
      %1240 = vmatpush1.bf16.msra.mxu0 0
      %1241 = vmatprep.subr.bf16.mxu0 0
      %1242 = vmatpush1.bf16.msra.mxu0 0
      %1243 = vmatprep.subr.bf16.mxu0 0
      %1244 = vmatpush1.bf16.msra.mxu0 0
      %1245 = vmatprep.subr.bf16.mxu0 0
      %1246 = vmatpush1.bf16.msra.mxu0 %v1229
      %1247 = vmatprep.subr.bf16.mxu0 0
      %1248 = vmatpush2.bf16.msra.mxu0 0
      %1249 = vmatprep.subr.bf16.mxu0 0
      %1250 = vmatpush2.bf16.msra.mxu0 0
      %1251 = vmatprep.subr.bf16.mxu0 0
      %1252 = vmatpush2.bf16.msra.mxu0 0
      %1253 = vmatprep.subr.bf16.mxu0 0
      %1254 = vmatpush2.bf16.msra.mxu0 0
      %1255 = vmatprep.subr.bf16.mxu0 0
      %1256 = vmatpush2.bf16.msra.mxu0 0
      %1257 = vmatprep.subr.bf16.mxu0 0
      %1258 = vmatpush2.bf16.msra.mxu0 0
      %1259 = vmatprep.subr.bf16.mxu0 0
      %1260 = vmatpush2.bf16.msra.mxu0 0
      %1261 = vmatprep.subr.bf16.mxu0 0
      %1262 = vmatpush2.bf16.msra.mxu0 0
      %1263 = vmatprep.mubr.bf16.mxu0 0
      %1264 = vmatmul.mubr.bf16.gmra.mxu0 %v947
      %v1265 = vpop.f32.mrf.mxu0
      %v1266 = vadd.f32 0.0, %v1265
      %v1267 = vpop.f32.mrf.mxu0
      %v1268 = vpop.f32.mrf.mxu0
      %v1269 = vadd.f32 0.0, %v1268
      %v1270 = vpop.f32.mrf.mxu0
      %1271 = vmatprep.mubr.bf16.mxu0 0
      %1272 = vmatmul.mubr.bf16.gmra.mxu0 %v950
      %v1273 = vpop.f32.mrf.mxu0
      %v1274 = vadd.f32 0.0, %v1273
      %v1275 = vpop.f32.mrf.mxu0
      %v1276 = vpop.f32.mrf.mxu0
      %v1277 = vadd.f32 0.0, %v1276
      %v1278 = vpop.f32.mrf.mxu0
      %1279 = vmatprep.mubr.bf16.mxu0 0
      %1280 = vmatmul.mubr.bf16.gmra.mxu0 %v953
      %v1281 = vpop.f32.mrf.mxu0
      %v1282 = vadd.f32 0.0, %v1281
      %v1283 = vpop.f32.mrf.mxu0
      %v1284 = vpop.f32.mrf.mxu0
      %v1285 = vadd.f32 0.0, %v1284
      %v1286 = vpop.f32.mrf.mxu0
      %1287 = vmatprep.mubr.bf16.mxu0 0
      %1288 = vmatmul.mubr.bf16.gmra.mxu0 %v956
      %v1289 = vpop.f32.mrf.mxu0
      %v1290 = vadd.f32 0.0, %v1289
      %v1291 = vpop.f32.mrf.mxu0
      %v1292 = vpop.f32.mrf.mxu0
      %v1293 = vadd.f32 0.0, %v1292
      %v1294 = vpop.f32.mrf.mxu0
      %1295 = vmatprep.mubr.bf16.mxu0 0
      %1296 = vmatmul.mubr.bf16.gmra.mxu0 %v959
      %v1297 = vpop.f32.mrf.mxu0
      %v1298 = vadd.f32 0.0, %v1297
      %v1299 = vpop.f32.mrf.mxu0
      %v1300 = vpop.f32.mrf.mxu0
      %v1301 = vadd.f32 0.0, %v1300
      %v1302 = vpop.f32.mrf.mxu0
      %1303 = vmatprep.mubr.bf16.mxu0 0
      %1304 = vmatmul.mubr.bf16.gmra.mxu0 %v962
      %v1305 = vpop.f32.mrf.mxu0
      %v1306 = vadd.f32 0.0, %v1305
      %v1307 = vpop.f32.mrf.mxu0
      %v1308 = vpop.f32.mrf.mxu0
      %v1309 = vadd.f32 0.0, %v1308
      %v1310 = vpop.f32.mrf.mxu0
      %1311 = vmatprep.mubr.bf16.mxu0 0
      %1312 = vmatmul.mubr.bf16.gmra.mxu0 %v965
      %v1313 = vpop.f32.mrf.mxu0
      %v1314 = vadd.f32 0.0, %v1313
      %v1315 = vpop.f32.mrf.mxu0
      %v1316 = vpop.f32.mrf.mxu0
      %v1317 = vadd.f32 0.0, %v1316
      %v1318 = vpop.f32.mrf.mxu0
      %1319 = vmatprep.mubr.bf16.mxu0 0
      %1320 = vmatmul.mubr.bf16.gmra.mxu0 %v968
      %v1321 = vpop.f32.mrf.mxu0
      %v1322 = vadd.f32 0.0, %v1321
      %v1323 = vpop.f32.mrf.mxu0
      %v1324 = vpop.f32.mrf.mxu0
      %v1325 = vadd.f32 0.0, %v1324
      %v1326 = vpop.f32.mrf.mxu0
      %1327 = vmatprep.mubr.bf16.mxu0 0
      %1328 = vmatmul.mubr.bf16.gmra.mxu0 %v971
      %v1329 = vpop.f32.mrf.mxu0
      %v1330 = vadd.f32 0.0, %v1329
      %v1331 = vpop.f32.mrf.mxu0
      %v1332 = vpop.f32.mrf.mxu0
      %v1333 = vadd.f32 0.0, %v1332
      %v1334 = vpop.f32.mrf.mxu0
      %1335 = vmatprep.mubr.bf16.mxu0 0
      %1336 = vmatmul.mubr.bf16.gmra.mxu0 %v974
      %v1337 = vpop.f32.mrf.mxu0
      %v1338 = vadd.f32 0.0, %v1337
      %v1339 = vpop.f32.mrf.mxu0
      %v1340 = vpop.f32.mrf.mxu0
      %v1341 = vadd.f32 0.0, %v1340
      %v1342 = vpop.f32.mrf.mxu0
      %1343 = vmatprep.mubr.bf16.mxu0 0
      %1344 = vmatmul.mubr.bf16.gmra.mxu0 %v977
      %v1345 = vpop.f32.mrf.mxu0
      %v1346 = vadd.f32 0.0, %v1345
      %v1347 = vpop.f32.mrf.mxu0
      %v1348 = vpop.f32.mrf.mxu0
      %v1349 = vadd.f32 0.0, %v1348
      %v1350 = vpop.f32.mrf.mxu0
      %1351 = vmatprep.mubr.bf16.mxu0 0
      %1352 = vmatmul.mubr.bf16.gmra.mxu0 %v980
      %v1353 = vpop.f32.mrf.mxu0
      %v1354 = vadd.f32 0.0, %v1353
      %v1355 = vpop.f32.mrf.mxu0
      %v1356 = vpop.f32.mrf.mxu0
      %v1357 = vadd.f32 0.0, %v1356
      %v1358 = vpop.f32.mrf.mxu0
      %1359 = vmatprep.mubr.bf16.mxu0 0
      %1360 = vmatmul.mubr.bf16.gmra.mxu0 %v983
      %v1361 = vpop.f32.mrf.mxu0
      %v1362 = vadd.f32 0.0, %v1361
      %v1363 = vpop.f32.mrf.mxu0
      %v1364 = vpop.f32.mrf.mxu0
      %v1365 = vadd.f32 0.0, %v1364
      %v1366 = vpop.f32.mrf.mxu0
      %1367 = vmatprep.mubr.bf16.mxu0 0
      %1368 = vmatmul.mubr.bf16.gmra.mxu0 %v986
      %v1369 = vpop.f32.mrf.mxu0
      %v1370 = vadd.f32 0.0, %v1369
      %v1371 = vpop.f32.mrf.mxu0
      %v1372 = vpop.f32.mrf.mxu0
      %v1373 = vadd.f32 0.0, %v1372
      %v1374 = vpop.f32.mrf.mxu0
      %1375 = vmatprep.mubr.bf16.mxu0 0
      %1376 = vmatmul.mubr.bf16.gmra.mxu0 %v989
      %v1377 = vpop.f32.mrf.mxu0
      %v1378 = vadd.f32 0.0, %v1377
      %v1379 = vpop.f32.mrf.mxu0
      %v1380 = vpop.f32.mrf.mxu0
      %v1381 = vadd.f32 0.0, %v1380
      %v1382 = vpop.f32.mrf.mxu0
      %1383 = vmatprep.mubr.bf16.mxu0 0
      %1384 = vmatmul.mubr.bf16.gmra.mxu0 %v992
      %v1385 = vpop.f32.mrf.mxu0
      %v1386 = vadd.f32 0.0, %v1385
      %v1387 = vpop.f32.mrf.mxu0
      %v1388 = vpop.f32.mrf.mxu0
      %v1389 = vadd.f32 0.0, %v1388
      %v1390 = vpop.f32.mrf.mxu0
      %1391 = vmatprep.mubr.bf16.mxu0 0
      %1392 = vmatmul.mubr.bf16.gmra.mxu0 %v1223
      %v1393 = vpop.f32.mrf.mxu0
      %v1394 = vadd.f32 0.0, %v1393
      %v1395 = vpop.f32.mrf.mxu0
      %v1396 = vpop.f32.mrf.mxu0
      %v1397 = vadd.f32 0.0, %v1396
      %v1398 = vpop.f32.mrf.mxu0
      %1399 = vmatprep.mubr.bf16.mxu0 0
      %1400 = vmatmul.mubr.bf16.gmra.mxu0 %v1226
      %v1401 = vpop.f32.mrf.mxu0
      %v1402 = vadd.f32 0.0, %v1401
      %v1403 = vpop.f32.mrf.mxu0
      %v1404 = vpop.f32.mrf.mxu0
      %v1405 = vadd.f32 0.0, %v1404
      %v1406 = vpop.f32.mrf.mxu0
      %1407 = vdwg.mxu0
      %v1408 = vadd.f32 %v1177, %v1266
      %v1409 = vadd.f32 %v1178, %v1269
      %v1410 = vadd.f32 %v1179, %v1274
      %v1411 = vadd.f32 %v1180, %v1277
      %v1412 = vadd.f32 %v1181, %v1282
      %v1413 = vadd.f32 %v1182, %v1285
      %v1414 = vadd.f32 %v1183, %v1290
      %v1415 = vadd.f32 %v1184, %v1293
      %v1416 = vadd.f32 %v1185, %v1298
      %v1417 = vadd.f32 %v1186, %v1301
      %v1418 = vadd.f32 %v1187, %v1306
      %v1419 = vadd.f32 %v1188, %v1309
      %v1420 = vadd.f32 %v1189, %v1314
      %v1421 = vadd.f32 %v1190, %v1317
      %v1422 = vadd.f32 %v1191, %v1322
      %v1423 = vadd.f32 %v1192, %v1325
      %v1424 = vadd.f32 %v1193, %v1330
      %v1425 = vadd.f32 %v1194, %v1333
      %v1426 = vadd.f32 %v1195, %v1338
      %v1427 = vadd.f32 %v1196, %v1341
      %v1428 = vadd.f32 %v1197, %v1346
      %v1429 = vadd.f32 %v1198, %v1349
      %v1430 = vadd.f32 %v1199, %v1354
      %v1431 = vadd.f32 %v1200, %v1357
      %v1432 = vadd.f32 %v1201, %v1362
      %v1433 = vadd.f32 %v1202, %v1365
      %v1434 = vadd.f32 %v1203, %v1370
      %v1435 = vadd.f32 %v1204, %v1373
      %v1436 = vadd.f32 %v1205, %v1378
      %v1437 = vadd.f32 %v1206, %v1381
      %v1438 = vadd.f32 %v1207, %v1386
      %v1439 = vadd.f32 %v1208, %v1389
      %v1440 = vadd.f32 %v1209, %v1394
      %v1441 = vadd.f32 %v1210, %v1397
      %v1442 = vadd.f32 %v1211, %v1402
      %v1443 = vadd.f32 %v1212, %v1405
      %s1444 = scalar_lea.vmem %s1, 8
      %v1445 = vld [vmem:[%s1444] sm:$0x3]
      %v1447 = vunpack.c.l.b16 %v210
      %v1448 = vpack.c.b16 %v1447, %v1447
      %vm1449 = vsmask.f32 6400
      %v1450 = vrot.slane %v319, 1
      %v1451 = vrot.slane %v315, 2
      %v1452 = vor.u32 %v1450, %v1451
      %v1453 = vrot.slane %v327, 1
      %v1454 = vrot.slane %v323, 2
      %v1455 = vor.u32 %v1453, %v1454
      %v1456 = vsel %vm1449, %v1452, %v1455
      %v1457 = vrot.slane %v335, 1
      %v1458 = vrot.slane %v331, 2
      %v1459 = vor.u32 %v1457, %v1458
      %v1460 = vsel %vm1449, %v1455, %v1459
      %v1461 = vrot.slane %v343, 1
      %v1462 = vrot.slane %v339, 2
      %v1463 = vor.u32 %v1461, %v1462
      %v1464 = vsel %vm1449, %v1459, %v1463
      %v1465 = vrot.slane %v351, 1
      %v1466 = vrot.slane %v347, 2
      %v1467 = vor.u32 %v1465, %v1466
      %v1468 = vsel %vm1449, %v1463, %v1467
      %v1469 = vrot.slane %v359, 1
      %v1470 = vrot.slane %v355, 2
      %v1471 = vor.u32 %v1469, %v1470
      %v1472 = vsel %vm1449, %v1467, %v1471
      %v1473 = vrot.slane %v367, 1
      %v1474 = vrot.slane %v363, 2
      %v1475 = vor.u32 %v1473, %v1474
      %v1476 = vsel %vm1449, %v1471, %v1475
      %v1477 = vrot.slane %v375, 1
      %v1478 = vrot.slane %v371, 2
      %v1479 = vor.u32 %v1477, %v1478
      %v1480 = vsel %vm1449, %v1475, %v1479
      %v1481 = vrot.slane %v383, 1
      %v1482 = vrot.slane %v379, 2
      %v1483 = vor.u32 %v1481, %v1482
      %v1484 = vsel %vm1449, %v1479, %v1483
      %v1485 = vrot.slane %v391, 1
      %v1486 = vrot.slane %v387, 2
      %v1487 = vor.u32 %v1485, %v1486
      %v1488 = vsel %vm1449, %v1483, %v1487
      %v1489 = vrot.slane %v399, 1
      %v1490 = vrot.slane %v395, 2
      %v1491 = vor.u32 %v1489, %v1490
      %v1492 = vsel %vm1449, %v1487, %v1491
      %v1493 = vrot.slane %v407, 1
      %v1494 = vrot.slane %v403, 2
      %v1495 = vor.u32 %v1493, %v1494
      %v1496 = vsel %vm1449, %v1491, %v1495
      %v1497 = vrot.slane %v415, 1
      %v1498 = vrot.slane %v411, 2
      %v1499 = vor.u32 %v1497, %v1498
      %v1500 = vsel %vm1449, %v1495, %v1499
      %v1501 = vrot.slane %v423, 1
      %v1502 = vrot.slane %v419, 2
      %v1503 = vor.u32 %v1501, %v1502
      %v1504 = vsel %vm1449, %v1499, %v1503
      %v1505 = vrot.slane %v431, 1
      %v1506 = vrot.slane %v427, 2
      %v1507 = vor.u32 %v1505, %v1506
      %v1508 = vsel %vm1449, %v1503, %v1507
      %v1509 = vrot.slane %v439, 1
      %v1510 = vrot.slane %v435, 2
      %v1511 = vor.u32 %v1509, %v1510
      %v1512 = vsel %vm1449, %v1507, %v1511
      %v1513 = vrot.slane %v447, 1
      %v1514 = vrot.slane %v443, 2
      %v1515 = vor.u32 %v1513, %v1514
      %v1516 = vsel %vm1449, %v1511, %v1515
      %v1518 = vshrl.u32 %v1219, 16
      %v1520 = vrot.slane %v1518, 1
      %v1521 = vshll.u32 %v1219, 16
      %v1523 = vrot.slane %v1521, 2
      %v1524 = vor.u32 %v1520, %v1523
      %v1525 = vsel %vm1449, %v1515, %v1524
      %v1527 = vshll.u32 %v1448, 16
      %v1529 = vrot.slane %v1527, 2
      %v1530 = vsel %vm1449, %v1524, %v1529
      %v1532 = vsel %vm450, %v1456, 0
      %v1535 = vsel %vm450, %v1460, 0
      %v1538 = vsel %vm450, %v1464, 0
      %v1541 = vsel %vm450, %v1468, 0
      %v1544 = vsel %vm450, %v1472, 0
      %v1547 = vsel %vm450, %v1476, 0
      %v1550 = vsel %vm450, %v1480, 0
      %v1553 = vsel %vm450, %v1484, 0
      %v1556 = vsel %vm450, %v1488, 0
      %v1559 = vsel %vm450, %v1492, 0
      %v1562 = vsel %vm450, %v1496, 0
      %v1565 = vsel %vm450, %v1500, 0
      %v1568 = vsel %vm450, %v1504, 0
      %v1571 = vsel %vm450, %v1508, 0
      %v1574 = vsel %vm450, %v1512, 0
      %v1577 = vsel %vm450, %v1516, 0
      %v1580 = vsel %vm450, %v1525, 0
      %v1583 = vsel %vm450, %v1530, 0
      %v1586 = vand.u32 %v1445, %v508
      %1588 = vmatprep.subr.bf16.mxu0 0
      %1589 = vmatpush1.bf16.msra.mxu0 0
      %1590 = vmatprep.subr.bf16.mxu0 0
      %1591 = vmatpush1.bf16.msra.mxu0 0
      %1592 = vmatprep.subr.bf16.mxu0 0
      %1593 = vmatpush1.bf16.msra.mxu0 0
      %1594 = vmatprep.subr.bf16.mxu0 0
      %1595 = vmatpush1.bf16.msra.mxu0 0
      %1596 = vmatprep.subr.bf16.mxu0 0
      %1597 = vmatpush1.bf16.msra.mxu0 0
      %1598 = vmatprep.subr.bf16.mxu0 0
      %1599 = vmatpush1.bf16.msra.mxu0 0
      %1600 = vmatprep.subr.bf16.mxu0 0
      %1601 = vmatpush1.bf16.msra.mxu0 0
      %1602 = vmatprep.subr.bf16.mxu0 0
      %1603 = vmatpush1.bf16.msra.mxu0 %v1586
      %1604 = vmatprep.subr.bf16.mxu0 0
      %1605 = vmatpush2.bf16.msra.mxu0 0
      %1606 = vmatprep.subr.bf16.mxu0 0
      %1607 = vmatpush2.bf16.msra.mxu0 0
      %1608 = vmatprep.subr.bf16.mxu0 0
      %1609 = vmatpush2.bf16.msra.mxu0 0
      %1610 = vmatprep.subr.bf16.mxu0 0
      %1611 = vmatpush2.bf16.msra.mxu0 0
      %1612 = vmatprep.subr.bf16.mxu0 0
      %1613 = vmatpush2.bf16.msra.mxu0 0
      %1614 = vmatprep.subr.bf16.mxu0 0
      %1615 = vmatpush2.bf16.msra.mxu0 0
      %1616 = vmatprep.subr.bf16.mxu0 0
      %1617 = vmatpush2.bf16.msra.mxu0 0
      %1618 = vmatprep.subr.bf16.mxu0 0
      %1619 = vmatpush2.bf16.msra.mxu0 0
      %1620 = vmatprep.mubr.bf16.mxu0 0
      %1621 = vmatmul.mubr.bf16.gmra.mxu0 %v1532
      %v1622 = vpop.f32.mrf.mxu0
      %v1623 = vadd.f32 0.0, %v1622
      %v1624 = vpop.f32.mrf.mxu0
      %v1625 = vpop.f32.mrf.mxu0
      %v1626 = vadd.f32 0.0, %v1625
      %v1627 = vpop.f32.mrf.mxu0
      %1628 = vmatprep.mubr.bf16.mxu0 0
      %1629 = vmatmul.mubr.bf16.gmra.mxu0 %v1535
      %v1630 = vpop.f32.mrf.mxu0
      %v1631 = vadd.f32 0.0, %v1630
      %v1632 = vpop.f32.mrf.mxu0
      %v1633 = vpop.f32.mrf.mxu0
      %v1634 = vadd.f32 0.0, %v1633
      %v1635 = vpop.f32.mrf.mxu0
      %1636 = vmatprep.mubr.bf16.mxu0 0
      %1637 = vmatmul.mubr.bf16.gmra.mxu0 %v1538
      %v1638 = vpop.f32.mrf.mxu0
      %v1639 = vadd.f32 0.0, %v1638
      %v1640 = vpop.f32.mrf.mxu0
      %v1641 = vpop.f32.mrf.mxu0
      %v1642 = vadd.f32 0.0, %v1641
      %v1643 = vpop.f32.mrf.mxu0
      %1644 = vmatprep.mubr.bf16.mxu0 0
      %1645 = vmatmul.mubr.bf16.gmra.mxu0 %v1541
      %v1646 = vpop.f32.mrf.mxu0
      %v1647 = vadd.f32 0.0, %v1646
      %v1648 = vpop.f32.mrf.mxu0
      %v1649 = vpop.f32.mrf.mxu0
      %v1650 = vadd.f32 0.0, %v1649
      %v1651 = vpop.f32.mrf.mxu0
      %1652 = vmatprep.mubr.bf16.mxu0 0
      %1653 = vmatmul.mubr.bf16.gmra.mxu0 %v1544
      %v1654 = vpop.f32.mrf.mxu0
      %v1655 = vadd.f32 0.0, %v1654
      %v1656 = vpop.f32.mrf.mxu0
      %v1657 = vpop.f32.mrf.mxu0
      %v1658 = vadd.f32 0.0, %v1657
      %v1659 = vpop.f32.mrf.mxu0
      %1660 = vmatprep.mubr.bf16.mxu0 0
      %1661 = vmatmul.mubr.bf16.gmra.mxu0 %v1547
      %v1662 = vpop.f32.mrf.mxu0
      %v1663 = vadd.f32 0.0, %v1662
      %v1664 = vpop.f32.mrf.mxu0
      %v1665 = vpop.f32.mrf.mxu0
      %v1666 = vadd.f32 0.0, %v1665
      %v1667 = vpop.f32.mrf.mxu0
      %1668 = vmatprep.mubr.bf16.mxu0 0
      %1669 = vmatmul.mubr.bf16.gmra.mxu0 %v1550
      %v1670 = vpop.f32.mrf.mxu0
      %v1671 = vadd.f32 0.0, %v1670
      %v1672 = vpop.f32.mrf.mxu0
      %v1673 = vpop.f32.mrf.mxu0
      %v1674 = vadd.f32 0.0, %v1673
      %v1675 = vpop.f32.mrf.mxu0
      %1676 = vmatprep.mubr.bf16.mxu0 0
      %1677 = vmatmul.mubr.bf16.gmra.mxu0 %v1553
      %v1678 = vpop.f32.mrf.mxu0
      %v1679 = vadd.f32 0.0, %v1678
      %v1680 = vpop.f32.mrf.mxu0
      %v1681 = vpop.f32.mrf.mxu0
      %v1682 = vadd.f32 0.0, %v1681
      %v1683 = vpop.f32.mrf.mxu0
      %1684 = vmatprep.mubr.bf16.mxu0 0
      %1685 = vmatmul.mubr.bf16.gmra.mxu0 %v1556
      %v1686 = vpop.f32.mrf.mxu0
      %v1687 = vadd.f32 0.0, %v1686
      %v1688 = vpop.f32.mrf.mxu0
      %v1689 = vpop.f32.mrf.mxu0
      %v1690 = vadd.f32 0.0, %v1689
      %v1691 = vpop.f32.mrf.mxu0
      %1692 = vmatprep.mubr.bf16.mxu0 0
      %1693 = vmatmul.mubr.bf16.gmra.mxu0 %v1559
      %v1694 = vpop.f32.mrf.mxu0
      %v1695 = vadd.f32 0.0, %v1694
      %v1696 = vpop.f32.mrf.mxu0
      %v1697 = vpop.f32.mrf.mxu0
      %v1698 = vadd.f32 0.0, %v1697
      %v1699 = vpop.f32.mrf.mxu0
      %1700 = vmatprep.mubr.bf16.mxu0 0
      %1701 = vmatmul.mubr.bf16.gmra.mxu0 %v1562
      %v1702 = vpop.f32.mrf.mxu0
      %v1703 = vadd.f32 0.0, %v1702
      %v1704 = vpop.f32.mrf.mxu0
      %v1705 = vpop.f32.mrf.mxu0
      %v1706 = vadd.f32 0.0, %v1705
      %v1707 = vpop.f32.mrf.mxu0
      %1708 = vmatprep.mubr.bf16.mxu0 0
      %1709 = vmatmul.mubr.bf16.gmra.mxu0 %v1565
      %v1710 = vpop.f32.mrf.mxu0
      %v1711 = vadd.f32 0.0, %v1710
      %v1712 = vpop.f32.mrf.mxu0
      %v1713 = vpop.f32.mrf.mxu0
      %v1714 = vadd.f32 0.0, %v1713
      %v1715 = vpop.f32.mrf.mxu0
      %1716 = vmatprep.mubr.bf16.mxu0 0
      %1717 = vmatmul.mubr.bf16.gmra.mxu0 %v1568
      %v1718 = vpop.f32.mrf.mxu0
      %v1719 = vadd.f32 0.0, %v1718
      %v1720 = vpop.f32.mrf.mxu0
      %v1721 = vpop.f32.mrf.mxu0
      %v1722 = vadd.f32 0.0, %v1721
      %v1723 = vpop.f32.mrf.mxu0
      %1724 = vmatprep.mubr.bf16.mxu0 0
      %1725 = vmatmul.mubr.bf16.gmra.mxu0 %v1571
      %v1726 = vpop.f32.mrf.mxu0
      %v1727 = vadd.f32 0.0, %v1726
      %v1728 = vpop.f32.mrf.mxu0
      %v1729 = vpop.f32.mrf.mxu0
      %v1730 = vadd.f32 0.0, %v1729
      %v1731 = vpop.f32.mrf.mxu0
      %1732 = vmatprep.mubr.bf16.mxu0 0
      %1733 = vmatmul.mubr.bf16.gmra.mxu0 %v1574
      %v1734 = vpop.f32.mrf.mxu0
      %v1735 = vadd.f32 0.0, %v1734
      %v1736 = vpop.f32.mrf.mxu0
      %v1737 = vpop.f32.mrf.mxu0
      %v1738 = vadd.f32 0.0, %v1737
      %v1739 = vpop.f32.mrf.mxu0
      %1740 = vmatprep.mubr.bf16.mxu0 0
      %1741 = vmatmul.mubr.bf16.gmra.mxu0 %v1577
      %v1742 = vpop.f32.mrf.mxu0
      %v1743 = vadd.f32 0.0, %v1742
      %v1744 = vpop.f32.mrf.mxu0
      %v1745 = vpop.f32.mrf.mxu0
      %v1746 = vadd.f32 0.0, %v1745
      %v1747 = vpop.f32.mrf.mxu0
      %1748 = vmatprep.mubr.bf16.mxu0 0
      %1749 = vmatmul.mubr.bf16.gmra.mxu0 %v1580
      %v1750 = vpop.f32.mrf.mxu0
      %v1751 = vadd.f32 0.0, %v1750
      %v1752 = vpop.f32.mrf.mxu0
      %v1753 = vpop.f32.mrf.mxu0
      %v1754 = vadd.f32 0.0, %v1753
      %v1755 = vpop.f32.mrf.mxu0
      %1756 = vmatprep.mubr.bf16.mxu0 0
      %1757 = vmatmul.mubr.bf16.gmra.mxu0 %v1583
      %v1758 = vpop.f32.mrf.mxu0
      %v1759 = vadd.f32 0.0, %v1758
      %v1760 = vpop.f32.mrf.mxu0
      %v1761 = vpop.f32.mrf.mxu0
      %v1762 = vadd.f32 0.0, %v1761
      %v1763 = vpop.f32.mrf.mxu0
      %1764 = vdwg.mxu0
      %v1765 = vadd.f32 %v1408, %v1623
      %v1766 = vadd.f32 %v1409, %v1626
      %v1767 = vadd.f32 %v1410, %v1631
      %v1768 = vadd.f32 %v1411, %v1634
      %v1769 = vadd.f32 %v1412, %v1639
      %v1770 = vadd.f32 %v1413, %v1642
      %v1771 = vadd.f32 %v1414, %v1647
      %v1772 = vadd.f32 %v1415, %v1650
      %v1773 = vadd.f32 %v1416, %v1655
      %v1774 = vadd.f32 %v1417, %v1658
      %v1775 = vadd.f32 %v1418, %v1663
      %v1776 = vadd.f32 %v1419, %v1666
      %v1777 = vadd.f32 %v1420, %v1671
      %v1778 = vadd.f32 %v1421, %v1674
      %v1779 = vadd.f32 %v1422, %v1679
      %v1780 = vadd.f32 %v1423, %v1682
      %v1781 = vadd.f32 %v1424, %v1687
      %v1782 = vadd.f32 %v1425, %v1690
      %v1783 = vadd.f32 %v1426, %v1695
      %v1784 = vadd.f32 %v1427, %v1698
      %v1785 = vadd.f32 %v1428, %v1703
      %v1786 = vadd.f32 %v1429, %v1706
      %v1787 = vadd.f32 %v1430, %v1711
      %v1788 = vadd.f32 %v1431, %v1714
      %v1789 = vadd.f32 %v1432, %v1719
      %v1790 = vadd.f32 %v1433, %v1722
      %v1791 = vadd.f32 %v1434, %v1727
      %v1792 = vadd.f32 %v1435, %v1730
      %v1793 = vadd.f32 %v1436, %v1735
      %v1794 = vadd.f32 %v1437, %v1738
      %v1795 = vadd.f32 %v1438, %v1743
      %v1796 = vadd.f32 %v1439, %v1746
      %v1797 = vadd.f32 %v1440, %v1751
      %v1798 = vadd.f32 %v1441, %v1754
      %v1799 = vadd.f32 %v1442, %v1759
      %v1800 = vadd.f32 %v1443, %v1762
      %s1801 = scalar_lea.vmem %s1, 10
      %v1802 = vld [vmem:[%s1801] sm:$0x3]
      %vm1803 = vcmask 1045504
      %v1804 = vrot.slane %v289, 2
      %v1805 = vrot.slane %v290, 2
      %v1806 = vsel %vm1803, %v1804, %v1805
      %v1807 = vrot.slane %v291, 2
      %v1808 = vsel %vm1803, %v1805, %v1807
      %v1809 = vrot.slane %v292, 2
      %v1810 = vsel %vm1803, %v1807, %v1809
      %v1811 = vrot.slane %v293, 2
      %v1812 = vsel %vm1803, %v1809, %v1811
      %v1813 = vrot.slane %v294, 2
      %v1814 = vsel %vm1803, %v1811, %v1813
      %v1815 = vrot.slane %v295, 2
      %v1816 = vsel %vm1803, %v1813, %v1815
      %v1817 = vrot.slane %v296, 2
      %v1818 = vsel %vm1803, %v1815, %v1817
      %v1819 = vrot.slane %v297, 2
      %v1820 = vsel %vm1803, %v1817, %v1819
      %v1821 = vrot.slane %v298, 2
      %v1822 = vsel %vm1803, %v1819, %v1821
      %v1823 = vrot.slane %v299, 2
      %v1824 = vsel %vm1803, %v1821, %v1823
      %v1825 = vrot.slane %v300, 2
      %v1826 = vsel %vm1803, %v1823, %v1825
      %v1827 = vrot.slane %v301, 2
      %v1828 = vsel %vm1803, %v1825, %v1827
      %v1829 = vrot.slane %v302, 2
      %v1830 = vsel %vm1803, %v1827, %v1829
      %v1831 = vrot.slane %v303, 2
      %v1832 = vsel %vm1803, %v1829, %v1831
      %v1833 = vrot.slane %v304, 2
      %v1834 = vsel %vm1803, %v1831, %v1833
      %v1835 = vrot.slane %v305, 2
      %v1836 = vsel %vm1803, %v1833, %v1835
      %v1837 = vrot.slane %v1219, 2
      %v1838 = vsel %vm1803, %v1835, %v1837
      %v1839 = vrot.slane %v1448, 2
      %v1840 = vsel %vm1803, %v1837, %v1839
      %v1842 = vsel %vm450, %v1806, 0
      %v1845 = vsel %vm450, %v1808, 0
      %v1848 = vsel %vm450, %v1810, 0
      %v1851 = vsel %vm450, %v1812, 0
      %v1854 = vsel %vm450, %v1814, 0
      %v1857 = vsel %vm450, %v1816, 0
      %v1860 = vsel %vm450, %v1818, 0
      %v1863 = vsel %vm450, %v1820, 0
      %v1866 = vsel %vm450, %v1822, 0
      %v1869 = vsel %vm450, %v1824, 0
      %v1872 = vsel %vm450, %v1826, 0
      %v1875 = vsel %vm450, %v1828, 0
      %v1878 = vsel %vm450, %v1830, 0
      %v1881 = vsel %vm450, %v1832, 0
      %v1884 = vsel %vm450, %v1834, 0
      %v1887 = vsel %vm450, %v1836, 0
      %v1890 = vsel %vm450, %v1838, 0
      %v1893 = vsel %vm450, %v1840, 0
      %v1896 = vand.u32 %v1802, %v508
      %1898 = vmatprep.subr.bf16.mxu0 0
      %1899 = vmatpush1.bf16.msra.mxu0 0
      %1900 = vmatprep.subr.bf16.mxu0 0
      %1901 = vmatpush1.bf16.msra.mxu0 0
      %1902 = vmatprep.subr.bf16.mxu0 0
      %1903 = vmatpush1.bf16.msra.mxu0 0
      %1904 = vmatprep.subr.bf16.mxu0 0
      %1905 = vmatpush1.bf16.msra.mxu0 0
      %1906 = vmatprep.subr.bf16.mxu0 0
      %1907 = vmatpush1.bf16.msra.mxu0 0
      %1908 = vmatprep.subr.bf16.mxu0 0
      %1909 = vmatpush1.bf16.msra.mxu0 0
      %1910 = vmatprep.subr.bf16.mxu0 0
      %1911 = vmatpush1.bf16.msra.mxu0 0
      %1912 = vmatprep.subr.bf16.mxu0 0
      %1913 = vmatpush1.bf16.msra.mxu0 %v1896
      %1914 = vmatprep.subr.bf16.mxu0 0
      %1915 = vmatpush2.bf16.msra.mxu0 0
      %1916 = vmatprep.subr.bf16.mxu0 0
      %1917 = vmatpush2.bf16.msra.mxu0 0
      %1918 = vmatprep.subr.bf16.mxu0 0
      %1919 = vmatpush2.bf16.msra.mxu0 0
      %1920 = vmatprep.subr.bf16.mxu0 0
      %1921 = vmatpush2.bf16.msra.mxu0 0
      %1922 = vmatprep.subr.bf16.mxu0 0
      %1923 = vmatpush2.bf16.msra.mxu0 0
      %1924 = vmatprep.subr.bf16.mxu0 0
      %1925 = vmatpush2.bf16.msra.mxu0 0
      %1926 = vmatprep.subr.bf16.mxu0 0
      %1927 = vmatpush2.bf16.msra.mxu0 0
      %1928 = vmatprep.subr.bf16.mxu0 0
      %1929 = vmatpush2.bf16.msra.mxu0 0
      %1930 = vmatprep.mubr.bf16.mxu0 0
      %1931 = vmatmul.mubr.bf16.gmra.mxu0 %v1842
      %v1932 = vpop.f32.mrf.mxu0
      %v1933 = vadd.f32 0.0, %v1932
      %v1934 = vpop.f32.mrf.mxu0
      %v1935 = vpop.f32.mrf.mxu0
      %v1936 = vadd.f32 0.0, %v1935
      %v1937 = vpop.f32.mrf.mxu0
      %1938 = vmatprep.mubr.bf16.mxu0 0
      %1939 = vmatmul.mubr.bf16.gmra.mxu0 %v1845
      %v1940 = vpop.f32.mrf.mxu0
      %v1941 = vadd.f32 0.0, %v1940
      %v1942 = vpop.f32.mrf.mxu0
      %v1943 = vpop.f32.mrf.mxu0
      %v1944 = vadd.f32 0.0, %v1943
      %v1945 = vpop.f32.mrf.mxu0
      %1946 = vmatprep.mubr.bf16.mxu0 0
      %1947 = vmatmul.mubr.bf16.gmra.mxu0 %v1848
      %v1948 = vpop.f32.mrf.mxu0
      %v1949 = vadd.f32 0.0, %v1948
      %v1950 = vpop.f32.mrf.mxu0
      %v1951 = vpop.f32.mrf.mxu0
      %v1952 = vadd.f32 0.0, %v1951
      %v1953 = vpop.f32.mrf.mxu0
      %1954 = vmatprep.mubr.bf16.mxu0 0
      %1955 = vmatmul.mubr.bf16.gmra.mxu0 %v1851
      %v1956 = vpop.f32.mrf.mxu0
      %v1957 = vadd.f32 0.0, %v1956
      %v1958 = vpop.f32.mrf.mxu0
      %v1959 = vpop.f32.mrf.mxu0
      %v1960 = vadd.f32 0.0, %v1959
      %v1961 = vpop.f32.mrf.mxu0
      %1962 = vmatprep.mubr.bf16.mxu0 0
      %1963 = vmatmul.mubr.bf16.gmra.mxu0 %v1854
      %v1964 = vpop.f32.mrf.mxu0
      %v1965 = vadd.f32 0.0, %v1964
      %v1966 = vpop.f32.mrf.mxu0
      %v1967 = vpop.f32.mrf.mxu0
      %v1968 = vadd.f32 0.0, %v1967
      %v1969 = vpop.f32.mrf.mxu0
      %1970 = vmatprep.mubr.bf16.mxu0 0
      %1971 = vmatmul.mubr.bf16.gmra.mxu0 %v1857
      %v1972 = vpop.f32.mrf.mxu0
      %v1973 = vadd.f32 0.0, %v1972
      %v1974 = vpop.f32.mrf.mxu0
      %v1975 = vpop.f32.mrf.mxu0
      %v1976 = vadd.f32 0.0, %v1975
      %v1977 = vpop.f32.mrf.mxu0
      %1978 = vmatprep.mubr.bf16.mxu0 0
      %1979 = vmatmul.mubr.bf16.gmra.mxu0 %v1860
      %v1980 = vpop.f32.mrf.mxu0
      %v1981 = vadd.f32 0.0, %v1980
      %v1982 = vpop.f32.mrf.mxu0
      %v1983 = vpop.f32.mrf.mxu0
      %v1984 = vadd.f32 0.0, %v1983
      %v1985 = vpop.f32.mrf.mxu0
      %1986 = vmatprep.mubr.bf16.mxu0 0
      %1987 = vmatmul.mubr.bf16.gmra.mxu0 %v1863
      %v1988 = vpop.f32.mrf.mxu0
      %v1989 = vadd.f32 0.0, %v1988
      %v1990 = vpop.f32.mrf.mxu0
      %v1991 = vpop.f32.mrf.mxu0
      %v1992 = vadd.f32 0.0, %v1991
      %v1993 = vpop.f32.mrf.mxu0
      %1994 = vmatprep.mubr.bf16.mxu0 0
      %1995 = vmatmul.mubr.bf16.gmra.mxu0 %v1866
      %v1996 = vpop.f32.mrf.mxu0
      %v1997 = vadd.f32 0.0, %v1996
      %v1998 = vpop.f32.mrf.mxu0
      %v1999 = vpop.f32.mrf.mxu0
      %v2000 = vadd.f32 0.0, %v1999
      %v2001 = vpop.f32.mrf.mxu0
      %2002 = vmatprep.mubr.bf16.mxu0 0
      %2003 = vmatmul.mubr.bf16.gmra.mxu0 %v1869
      %v2004 = vpop.f32.mrf.mxu0
      %v2005 = vadd.f32 0.0, %v2004
      %v2006 = vpop.f32.mrf.mxu0
      %v2007 = vpop.f32.mrf.mxu0
      %v2008 = vadd.f32 0.0, %v2007
      %v2009 = vpop.f32.mrf.mxu0
      %2010 = vmatprep.mubr.bf16.mxu0 0
      %2011 = vmatmul.mubr.bf16.gmra.mxu0 %v1872
      %v2012 = vpop.f32.mrf.mxu0
      %v2013 = vadd.f32 0.0, %v2012
      %v2014 = vpop.f32.mrf.mxu0
      %v2015 = vpop.f32.mrf.mxu0
      %v2016 = vadd.f32 0.0, %v2015
      %v2017 = vpop.f32.mrf.mxu0
      %2018 = vmatprep.mubr.bf16.mxu0 0
      %2019 = vmatmul.mubr.bf16.gmra.mxu0 %v1875
      %v2020 = vpop.f32.mrf.mxu0
      %v2021 = vadd.f32 0.0, %v2020
      %v2022 = vpop.f32.mrf.mxu0
      %v2023 = vpop.f32.mrf.mxu0
      %v2024 = vadd.f32 0.0, %v2023
      %v2025 = vpop.f32.mrf.mxu0
      %2026 = vmatprep.mubr.bf16.mxu0 0
      %2027 = vmatmul.mubr.bf16.gmra.mxu0 %v1878
      %v2028 = vpop.f32.mrf.mxu0
      %v2029 = vadd.f32 0.0, %v2028
      %v2030 = vpop.f32.mrf.mxu0
      %v2031 = vpop.f32.mrf.mxu0
      %v2032 = vadd.f32 0.0, %v2031
      %v2033 = vpop.f32.mrf.mxu0
      %2034 = vmatprep.mubr.bf16.mxu0 0
      %2035 = vmatmul.mubr.bf16.gmra.mxu0 %v1881
      %v2036 = vpop.f32.mrf.mxu0
      %v2037 = vadd.f32 0.0, %v2036
      %v2038 = vpop.f32.mrf.mxu0
      %v2039 = vpop.f32.mrf.mxu0
      %v2040 = vadd.f32 0.0, %v2039
      %v2041 = vpop.f32.mrf.mxu0
      %2042 = vmatprep.mubr.bf16.mxu0 0
      %2043 = vmatmul.mubr.bf16.gmra.mxu0 %v1884
      %v2044 = vpop.f32.mrf.mxu0
      %v2045 = vadd.f32 0.0, %v2044
      %v2046 = vpop.f32.mrf.mxu0
      %v2047 = vpop.f32.mrf.mxu0
      %v2048 = vadd.f32 0.0, %v2047
      %v2049 = vpop.f32.mrf.mxu0
      %2050 = vmatprep.mubr.bf16.mxu0 0
      %2051 = vmatmul.mubr.bf16.gmra.mxu0 %v1887
      %v2052 = vpop.f32.mrf.mxu0
      %v2053 = vadd.f32 0.0, %v2052
      %v2054 = vpop.f32.mrf.mxu0
      %v2055 = vpop.f32.mrf.mxu0
      %v2056 = vadd.f32 0.0, %v2055
      %v2057 = vpop.f32.mrf.mxu0
      %2058 = vmatprep.mubr.bf16.mxu0 0
      %2059 = vmatmul.mubr.bf16.gmra.mxu0 %v1890
      %v2060 = vpop.f32.mrf.mxu0
      %v2061 = vadd.f32 0.0, %v2060
      %v2062 = vpop.f32.mrf.mxu0
      %v2063 = vpop.f32.mrf.mxu0
      %v2064 = vadd.f32 0.0, %v2063
      %v2065 = vpop.f32.mrf.mxu0
      %2066 = vmatprep.mubr.bf16.mxu0 0
      %2067 = vmatmul.mubr.bf16.gmra.mxu0 %v1893
      %v2068 = vpop.f32.mrf.mxu0
      %v2069 = vadd.f32 0.0, %v2068
      %v2070 = vpop.f32.mrf.mxu0
      %v2071 = vpop.f32.mrf.mxu0
      %v2072 = vadd.f32 0.0, %v2071
      %v2073 = vpop.f32.mrf.mxu0
      %2074 = vdwg.mxu0
      %v2075 = vadd.f32 %v1765, %v1933
      %v2076 = vadd.f32 %v1766, %v1936
      %v2077 = vadd.f32 %v1767, %v1941
      %v2078 = vadd.f32 %v1768, %v1944
      %v2079 = vadd.f32 %v1769, %v1949
      %v2080 = vadd.f32 %v1770, %v1952
      %v2081 = vadd.f32 %v1771, %v1957
      %v2082 = vadd.f32 %v1772, %v1960
      %v2083 = vadd.f32 %v1773, %v1965
      %v2084 = vadd.f32 %v1774, %v1968
      %v2085 = vadd.f32 %v1775, %v1973
      %v2086 = vadd.f32 %v1776, %v1976
      %v2087 = vadd.f32 %v1777, %v1981
      %v2088 = vadd.f32 %v1778, %v1984
      %v2089 = vadd.f32 %v1779, %v1989
      %v2090 = vadd.f32 %v1780, %v1992
      %v2091 = vadd.f32 %v1781, %v1997
      %v2092 = vadd.f32 %v1782, %v2000
      %v2093 = vadd.f32 %v1783, %v2005
      %v2094 = vadd.f32 %v1784, %v2008
      %v2095 = vadd.f32 %v1785, %v2013
      %v2096 = vadd.f32 %v1786, %v2016
      %v2097 = vadd.f32 %v1787, %v2021
      %v2098 = vadd.f32 %v1788, %v2024
      %v2099 = vadd.f32 %v1789, %v2029
      %v2100 = vadd.f32 %v1790, %v2032
      %v2101 = vadd.f32 %v1791, %v2037
      %v2102 = vadd.f32 %v1792, %v2040
      %v2103 = vadd.f32 %v1793, %v2045
      %v2104 = vadd.f32 %v1794, %v2048
      %v2105 = vadd.f32 %v1795, %v2053
      %v2106 = vadd.f32 %v1796, %v2056
      %v2107 = vadd.f32 %v1797, %v2061
      %v2108 = vadd.f32 %v1798, %v2064
      %v2109 = vadd.f32 %v1799, %v2069
      %v2110 = vadd.f32 %v1800, %v2072
      %s2111 = scalar_lea.vmem %s1, 12
      %v2112 = vld [vmem:[%s2111] sm:$0x3]
      %v2115 = vunpack.c.l.b16 %v211
      %v2116 = vunpack.c.l.b16 %v212
      %v2117 = vpack.c.b16 %v2115, %v1447
      %v2118 = vpack.c.b16 %v2116, %v2116
      %v2119 = vrot.slane %v2117, 2
      %v2120 = vsel %vm1803, %v1837, %v2119
      %v2121 = vrot.slane %v2118, 2
      %v2122 = vsel %vm1803, %v2119, %v2121
      %v2124 = vsel %vm450, %v2120, 0
      %v2127 = vsel %vm450, %v2122, 0
      %v2130 = vand.u32 %v2112, %v508
      %2132 = vmatprep.subr.bf16.mxu0 0
      %2133 = vmatpush1.bf16.msra.mxu0 0
      %2134 = vmatprep.subr.bf16.mxu0 0
      %2135 = vmatpush1.bf16.msra.mxu0 0
      %2136 = vmatprep.subr.bf16.mxu0 0
      %2137 = vmatpush1.bf16.msra.mxu0 0
      %2138 = vmatprep.subr.bf16.mxu0 0
      %2139 = vmatpush1.bf16.msra.mxu0 0
      %2140 = vmatprep.subr.bf16.mxu0 0
      %2141 = vmatpush1.bf16.msra.mxu0 0
      %2142 = vmatprep.subr.bf16.mxu0 0
      %2143 = vmatpush1.bf16.msra.mxu0 0
      %2144 = vmatprep.subr.bf16.mxu0 0
      %2145 = vmatpush1.bf16.msra.mxu0 0
      %2146 = vmatprep.subr.bf16.mxu0 0
      %2147 = vmatpush1.bf16.msra.mxu0 %v2130
      %2148 = vmatprep.subr.bf16.mxu0 0
      %2149 = vmatpush2.bf16.msra.mxu0 0
      %2150 = vmatprep.subr.bf16.mxu0 0
      %2151 = vmatpush2.bf16.msra.mxu0 0
      %2152 = vmatprep.subr.bf16.mxu0 0
      %2153 = vmatpush2.bf16.msra.mxu0 0
      %2154 = vmatprep.subr.bf16.mxu0 0
      %2155 = vmatpush2.bf16.msra.mxu0 0
      %2156 = vmatprep.subr.bf16.mxu0 0
      %2157 = vmatpush2.bf16.msra.mxu0 0
      %2158 = vmatprep.subr.bf16.mxu0 0
      %2159 = vmatpush2.bf16.msra.mxu0 0
      %2160 = vmatprep.subr.bf16.mxu0 0
      %2161 = vmatpush2.bf16.msra.mxu0 0
      %2162 = vmatprep.subr.bf16.mxu0 0
      %2163 = vmatpush2.bf16.msra.mxu0 0
      %2164 = vmatprep.mubr.bf16.mxu0 0
      %2165 = vmatmul.mubr.bf16.gmra.mxu0 %v1845
      %v2166 = vpop.f32.mrf.mxu0
      %v2167 = vadd.f32 0.0, %v2166
      %v2168 = vpop.f32.mrf.mxu0
      %v2169 = vpop.f32.mrf.mxu0
      %v2170 = vadd.f32 0.0, %v2169
      %v2171 = vpop.f32.mrf.mxu0
      %2172 = vmatprep.mubr.bf16.mxu0 0
      %2173 = vmatmul.mubr.bf16.gmra.mxu0 %v1848
      %v2174 = vpop.f32.mrf.mxu0
      %v2175 = vadd.f32 0.0, %v2174
      %v2176 = vpop.f32.mrf.mxu0
      %v2177 = vpop.f32.mrf.mxu0
      %v2178 = vadd.f32 0.0, %v2177
      %v2179 = vpop.f32.mrf.mxu0
      %2180 = vmatprep.mubr.bf16.mxu0 0
      %2181 = vmatmul.mubr.bf16.gmra.mxu0 %v1851
      %v2182 = vpop.f32.mrf.mxu0
      %v2183 = vadd.f32 0.0, %v2182
      %v2184 = vpop.f32.mrf.mxu0
      %v2185 = vpop.f32.mrf.mxu0
      %v2186 = vadd.f32 0.0, %v2185
      %v2187 = vpop.f32.mrf.mxu0
      %2188 = vmatprep.mubr.bf16.mxu0 0
      %2189 = vmatmul.mubr.bf16.gmra.mxu0 %v1854
      %v2190 = vpop.f32.mrf.mxu0
      %v2191 = vadd.f32 0.0, %v2190
      %v2192 = vpop.f32.mrf.mxu0
      %v2193 = vpop.f32.mrf.mxu0
      %v2194 = vadd.f32 0.0, %v2193
      %v2195 = vpop.f32.mrf.mxu0
      %2196 = vmatprep.mubr.bf16.mxu0 0
      %2197 = vmatmul.mubr.bf16.gmra.mxu0 %v1857
      %v2198 = vpop.f32.mrf.mxu0
      %v2199 = vadd.f32 0.0, %v2198
      %v2200 = vpop.f32.mrf.mxu0
      %v2201 = vpop.f32.mrf.mxu0
      %v2202 = vadd.f32 0.0, %v2201
      %v2203 = vpop.f32.mrf.mxu0
      %2204 = vmatprep.mubr.bf16.mxu0 0
      %2205 = vmatmul.mubr.bf16.gmra.mxu0 %v1860
      %v2206 = vpop.f32.mrf.mxu0
      %v2207 = vadd.f32 0.0, %v2206
      %v2208 = vpop.f32.mrf.mxu0
      %v2209 = vpop.f32.mrf.mxu0
      %v2210 = vadd.f32 0.0, %v2209
      %v2211 = vpop.f32.mrf.mxu0
      %2212 = vmatprep.mubr.bf16.mxu0 0
      %2213 = vmatmul.mubr.bf16.gmra.mxu0 %v1863
      %v2214 = vpop.f32.mrf.mxu0
      %v2215 = vadd.f32 0.0, %v2214
      %v2216 = vpop.f32.mrf.mxu0
      %v2217 = vpop.f32.mrf.mxu0
      %v2218 = vadd.f32 0.0, %v2217
      %v2219 = vpop.f32.mrf.mxu0
      %2220 = vmatprep.mubr.bf16.mxu0 0
      %2221 = vmatmul.mubr.bf16.gmra.mxu0 %v1866
      %v2222 = vpop.f32.mrf.mxu0
      %v2223 = vadd.f32 0.0, %v2222
      %v2224 = vpop.f32.mrf.mxu0
      %v2225 = vpop.f32.mrf.mxu0
      %v2226 = vadd.f32 0.0, %v2225
      %v2227 = vpop.f32.mrf.mxu0
      %2228 = vmatprep.mubr.bf16.mxu0 0
      %2229 = vmatmul.mubr.bf16.gmra.mxu0 %v1869
      %v2230 = vpop.f32.mrf.mxu0
      %v2231 = vadd.f32 0.0, %v2230
      %v2232 = vpop.f32.mrf.mxu0
      %v2233 = vpop.f32.mrf.mxu0
      %v2234 = vadd.f32 0.0, %v2233
      %v2235 = vpop.f32.mrf.mxu0
      %2236 = vmatprep.mubr.bf16.mxu0 0
      %2237 = vmatmul.mubr.bf16.gmra.mxu0 %v1872
      %v2238 = vpop.f32.mrf.mxu0
      %v2239 = vadd.f32 0.0, %v2238
      %v2240 = vpop.f32.mrf.mxu0
      %v2241 = vpop.f32.mrf.mxu0
      %v2242 = vadd.f32 0.0, %v2241
      %v2243 = vpop.f32.mrf.mxu0
      %2244 = vmatprep.mubr.bf16.mxu0 0
      %2245 = vmatmul.mubr.bf16.gmra.mxu0 %v1875
      %v2246 = vpop.f32.mrf.mxu0
      %v2247 = vadd.f32 0.0, %v2246
      %v2248 = vpop.f32.mrf.mxu0
      %v2249 = vpop.f32.mrf.mxu0
      %v2250 = vadd.f32 0.0, %v2249
      %v2251 = vpop.f32.mrf.mxu0
      %2252 = vmatprep.mubr.bf16.mxu0 0
      %2253 = vmatmul.mubr.bf16.gmra.mxu0 %v1878
      %v2254 = vpop.f32.mrf.mxu0
      %v2255 = vadd.f32 0.0, %v2254
      %v2256 = vpop.f32.mrf.mxu0
      %v2257 = vpop.f32.mrf.mxu0
      %v2258 = vadd.f32 0.0, %v2257
      %v2259 = vpop.f32.mrf.mxu0
      %2260 = vmatprep.mubr.bf16.mxu0 0
      %2261 = vmatmul.mubr.bf16.gmra.mxu0 %v1881
      %v2262 = vpop.f32.mrf.mxu0
      %v2263 = vadd.f32 0.0, %v2262
      %v2264 = vpop.f32.mrf.mxu0
      %v2265 = vpop.f32.mrf.mxu0
      %v2266 = vadd.f32 0.0, %v2265
      %v2267 = vpop.f32.mrf.mxu0
      %2268 = vmatprep.mubr.bf16.mxu0 0
      %2269 = vmatmul.mubr.bf16.gmra.mxu0 %v1884
      %v2270 = vpop.f32.mrf.mxu0
      %v2271 = vadd.f32 0.0, %v2270
      %v2272 = vpop.f32.mrf.mxu0
      %v2273 = vpop.f32.mrf.mxu0
      %v2274 = vadd.f32 0.0, %v2273
      %v2275 = vpop.f32.mrf.mxu0
      %2276 = vmatprep.mubr.bf16.mxu0 0
      %2277 = vmatmul.mubr.bf16.gmra.mxu0 %v1887
      %v2278 = vpop.f32.mrf.mxu0
      %v2279 = vadd.f32 0.0, %v2278
      %v2280 = vpop.f32.mrf.mxu0
      %v2281 = vpop.f32.mrf.mxu0
      %v2282 = vadd.f32 0.0, %v2281
      %v2283 = vpop.f32.mrf.mxu0
      %2284 = vmatprep.mubr.bf16.mxu0 0
      %2285 = vmatmul.mubr.bf16.gmra.mxu0 %v1890
      %v2286 = vpop.f32.mrf.mxu0
      %v2287 = vadd.f32 0.0, %v2286
      %v2288 = vpop.f32.mrf.mxu0
      %v2289 = vpop.f32.mrf.mxu0
      %v2290 = vadd.f32 0.0, %v2289
      %v2291 = vpop.f32.mrf.mxu0
      %2292 = vmatprep.mubr.bf16.mxu0 0
      %2293 = vmatmul.mubr.bf16.gmra.mxu0 %v2124
      %v2294 = vpop.f32.mrf.mxu0
      %v2295 = vadd.f32 0.0, %v2294
      %v2296 = vpop.f32.mrf.mxu0
      %v2297 = vpop.f32.mrf.mxu0
      %v2298 = vadd.f32 0.0, %v2297
      %v2299 = vpop.f32.mrf.mxu0
      %2300 = vmatprep.mubr.bf16.mxu0 0
      %2301 = vmatmul.mubr.bf16.gmra.mxu0 %v2127
      %v2302 = vpop.f32.mrf.mxu0
      %v2303 = vadd.f32 0.0, %v2302
      %v2304 = vpop.f32.mrf.mxu0
      %v2305 = vpop.f32.mrf.mxu0
      %v2306 = vadd.f32 0.0, %v2305
      %v2307 = vpop.f32.mrf.mxu0
      %2308 = vdwg.mxu0
      %v2309 = vadd.f32 %v2075, %v2167
      %v2310 = vadd.f32 %v2076, %v2170
      %v2311 = vadd.f32 %v2077, %v2175
      %v2312 = vadd.f32 %v2078, %v2178
      %v2313 = vadd.f32 %v2079, %v2183
      %v2314 = vadd.f32 %v2080, %v2186
      %v2315 = vadd.f32 %v2081, %v2191
      %v2316 = vadd.f32 %v2082, %v2194
      %v2317 = vadd.f32 %v2083, %v2199
      %v2318 = vadd.f32 %v2084, %v2202
      %v2319 = vadd.f32 %v2085, %v2207
      %v2320 = vadd.f32 %v2086, %v2210
      %v2321 = vadd.f32 %v2087, %v2215
      %v2322 = vadd.f32 %v2088, %v2218
      %v2323 = vadd.f32 %v2089, %v2223
      %v2324 = vadd.f32 %v2090, %v2226
      %v2325 = vadd.f32 %v2091, %v2231
      %v2326 = vadd.f32 %v2092, %v2234
      %v2327 = vadd.f32 %v2093, %v2239
      %v2328 = vadd.f32 %v2094, %v2242
      %v2329 = vadd.f32 %v2095, %v2247
      %v2330 = vadd.f32 %v2096, %v2250
      %v2331 = vadd.f32 %v2097, %v2255
      %v2332 = vadd.f32 %v2098, %v2258
      %v2333 = vadd.f32 %v2099, %v2263
      %v2334 = vadd.f32 %v2100, %v2266
      %v2335 = vadd.f32 %v2101, %v2271
      %v2336 = vadd.f32 %v2102, %v2274
      %v2337 = vadd.f32 %v2103, %v2279
      %v2338 = vadd.f32 %v2104, %v2282
      %v2339 = vadd.f32 %v2105, %v2287
      %v2340 = vadd.f32 %v2106, %v2290
      %v2341 = vadd.f32 %v2107, %v2295
      %v2342 = vadd.f32 %v2108, %v2298
      %v2343 = vadd.f32 %v2109, %v2303
      %v2344 = vadd.f32 %v2110, %v2306
      %s2345 = scalar_lea.vmem %s1, 14
      %v2346 = vld [vmem:[%s2345] sm:$0x3]
      %vm2347 = vsmask.f32 5376
      %v2348 = vrot.slane %v327, 2
      %v2349 = vrot.slane %v323, 3
      %v2350 = vor.u32 %v2348, %v2349
      %v2351 = vrot.slane %v335, 2
      %v2352 = vrot.slane %v331, 3
      %v2353 = vor.u32 %v2351, %v2352
      %v2354 = vsel %vm2347, %v2350, %v2353
      %v2355 = vrot.slane %v343, 2
      %v2356 = vrot.slane %v339, 3
      %v2357 = vor.u32 %v2355, %v2356
      %v2358 = vsel %vm2347, %v2353, %v2357
      %v2359 = vrot.slane %v351, 2
      %v2360 = vrot.slane %v347, 3
      %v2361 = vor.u32 %v2359, %v2360
      %v2362 = vsel %vm2347, %v2357, %v2361
      %v2363 = vrot.slane %v359, 2
      %v2364 = vrot.slane %v355, 3
      %v2365 = vor.u32 %v2363, %v2364
      %v2366 = vsel %vm2347, %v2361, %v2365
      %v2367 = vrot.slane %v367, 2
      %v2368 = vrot.slane %v363, 3
      %v2369 = vor.u32 %v2367, %v2368
      %v2370 = vsel %vm2347, %v2365, %v2369
      %v2371 = vrot.slane %v375, 2
      %v2372 = vrot.slane %v371, 3
      %v2373 = vor.u32 %v2371, %v2372
      %v2374 = vsel %vm2347, %v2369, %v2373
      %v2375 = vrot.slane %v383, 2
      %v2376 = vrot.slane %v379, 3
      %v2377 = vor.u32 %v2375, %v2376
      %v2378 = vsel %vm2347, %v2373, %v2377
      %v2379 = vrot.slane %v391, 2
      %v2380 = vrot.slane %v387, 3
      %v2381 = vor.u32 %v2379, %v2380
      %v2382 = vsel %vm2347, %v2377, %v2381
      %v2383 = vrot.slane %v399, 2
      %v2384 = vrot.slane %v395, 3
      %v2385 = vor.u32 %v2383, %v2384
      %v2386 = vsel %vm2347, %v2381, %v2385
      %v2387 = vrot.slane %v407, 2
      %v2388 = vrot.slane %v403, 3
      %v2389 = vor.u32 %v2387, %v2388
      %v2390 = vsel %vm2347, %v2385, %v2389
      %v2391 = vrot.slane %v415, 2
      %v2392 = vrot.slane %v411, 3
      %v2393 = vor.u32 %v2391, %v2392
      %v2394 = vsel %vm2347, %v2389, %v2393
      %v2395 = vrot.slane %v423, 2
      %v2396 = vrot.slane %v419, 3
      %v2397 = vor.u32 %v2395, %v2396
      %v2398 = vsel %vm2347, %v2393, %v2397
      %v2399 = vrot.slane %v431, 2
      %v2400 = vrot.slane %v427, 3
      %v2401 = vor.u32 %v2399, %v2400
      %v2402 = vsel %vm2347, %v2397, %v2401
      %v2403 = vrot.slane %v439, 2
      %v2404 = vrot.slane %v435, 3
      %v2405 = vor.u32 %v2403, %v2404
      %v2406 = vsel %vm2347, %v2401, %v2405
      %v2407 = vrot.slane %v447, 2
      %v2408 = vrot.slane %v443, 3
      %v2409 = vor.u32 %v2407, %v2408
      %v2410 = vsel %vm2347, %v2405, %v2409
      %v2411 = vrot.slane %v1518, 2
      %v2412 = vrot.slane %v1521, 3
      %v2413 = vor.u32 %v2411, %v2412
      %v2414 = vsel %vm2347, %v2409, %v2413
      %v2416 = vshrl.u32 %v2117, 16
      %v2418 = vrot.slane %v2416, 2
      %v2419 = vshll.u32 %v2117, 16
      %v2421 = vrot.slane %v2419, 3
      %v2422 = vor.u32 %v2418, %v2421
      %v2423 = vsel %vm2347, %v2413, %v2422
      %v2425 = vshrl.u32 %v2118, 16
      %v2427 = vrot.slane %v2425, 2
      %v2428 = vshll.u32 %v2118, 16
      %v2430 = vrot.slane %v2428, 3
      %v2431 = vor.u32 %v2427, %v2430
      %v2432 = vsel %vm2347, %v2422, %v2431
      %v2434 = vsel %vm450, %v2354, 0
      %v2437 = vsel %vm450, %v2358, 0
      %v2440 = vsel %vm450, %v2362, 0
      %v2443 = vsel %vm450, %v2366, 0
      %v2446 = vsel %vm450, %v2370, 0
      %v2449 = vsel %vm450, %v2374, 0
      %v2452 = vsel %vm450, %v2378, 0
      %v2455 = vsel %vm450, %v2382, 0
      %v2458 = vsel %vm450, %v2386, 0
      %v2461 = vsel %vm450, %v2390, 0
      %v2464 = vsel %vm450, %v2394, 0
      %v2467 = vsel %vm450, %v2398, 0
      %v2470 = vsel %vm450, %v2402, 0
      %v2473 = vsel %vm450, %v2406, 0
      %v2476 = vsel %vm450, %v2410, 0
      %v2479 = vsel %vm450, %v2414, 0
      %v2482 = vsel %vm450, %v2423, 0
      %v2485 = vsel %vm450, %v2432, 0
      %v2488 = vand.u32 %v2346, %v508
      %2490 = vmatprep.subr.bf16.mxu0 0
      %2491 = vmatpush1.bf16.msra.mxu0 0
      %2492 = vmatprep.subr.bf16.mxu0 0
      %2493 = vmatpush1.bf16.msra.mxu0 0
      %2494 = vmatprep.subr.bf16.mxu0 0
      %2495 = vmatpush1.bf16.msra.mxu0 0
      %2496 = vmatprep.subr.bf16.mxu0 0
      %2497 = vmatpush1.bf16.msra.mxu0 0
      %2498 = vmatprep.subr.bf16.mxu0 0
      %2499 = vmatpush1.bf16.msra.mxu0 0
      %2500 = vmatprep.subr.bf16.mxu0 0
      %2501 = vmatpush1.bf16.msra.mxu0 0
      %2502 = vmatprep.subr.bf16.mxu0 0
      %2503 = vmatpush1.bf16.msra.mxu0 0
      %2504 = vmatprep.subr.bf16.mxu0 0
      %2505 = vmatpush1.bf16.msra.mxu0 %v2488
      %2506 = vmatprep.subr.bf16.mxu0 0
      %2507 = vmatpush2.bf16.msra.mxu0 0
      %2508 = vmatprep.subr.bf16.mxu0 0
      %2509 = vmatpush2.bf16.msra.mxu0 0
      %2510 = vmatprep.subr.bf16.mxu0 0
      %2511 = vmatpush2.bf16.msra.mxu0 0
      %2512 = vmatprep.subr.bf16.mxu0 0
      %2513 = vmatpush2.bf16.msra.mxu0 0
      %2514 = vmatprep.subr.bf16.mxu0 0
      %2515 = vmatpush2.bf16.msra.mxu0 0
      %2516 = vmatprep.subr.bf16.mxu0 0
      %2517 = vmatpush2.bf16.msra.mxu0 0
      %2518 = vmatprep.subr.bf16.mxu0 0
      %2519 = vmatpush2.bf16.msra.mxu0 0
      %2520 = vmatprep.subr.bf16.mxu0 0
      %2521 = vmatpush2.bf16.msra.mxu0 0
      %2522 = vmatprep.mubr.bf16.mxu0 0
      %2523 = vmatmul.mubr.bf16.gmra.mxu0 %v2434
      %v2524 = vpop.f32.mrf.mxu0
      %v2525 = vadd.f32 0.0, %v2524
      %v2526 = vpop.f32.mrf.mxu0
      %v2527 = vpop.f32.mrf.mxu0
      %v2528 = vadd.f32 0.0, %v2527
      %v2529 = vpop.f32.mrf.mxu0
      %2530 = vmatprep.mubr.bf16.mxu0 0
      %2531 = vmatmul.mubr.bf16.gmra.mxu0 %v2437
      %v2532 = vpop.f32.mrf.mxu0
      %v2533 = vadd.f32 0.0, %v2532
      %v2534 = vpop.f32.mrf.mxu0
      %v2535 = vpop.f32.mrf.mxu0
      %v2536 = vadd.f32 0.0, %v2535
      %v2537 = vpop.f32.mrf.mxu0
      %2538 = vmatprep.mubr.bf16.mxu0 0
      %2539 = vmatmul.mubr.bf16.gmra.mxu0 %v2440
      %v2540 = vpop.f32.mrf.mxu0
      %v2541 = vadd.f32 0.0, %v2540
      %v2542 = vpop.f32.mrf.mxu0
      %v2543 = vpop.f32.mrf.mxu0
      %v2544 = vadd.f32 0.0, %v2543
      %v2545 = vpop.f32.mrf.mxu0
      %2546 = vmatprep.mubr.bf16.mxu0 0
      %2547 = vmatmul.mubr.bf16.gmra.mxu0 %v2443
      %v2548 = vpop.f32.mrf.mxu0
      %v2549 = vadd.f32 0.0, %v2548
      %v2550 = vpop.f32.mrf.mxu0
      %v2551 = vpop.f32.mrf.mxu0
      %v2552 = vadd.f32 0.0, %v2551
      %v2553 = vpop.f32.mrf.mxu0
      %2554 = vmatprep.mubr.bf16.mxu0 0
      %2555 = vmatmul.mubr.bf16.gmra.mxu0 %v2446
      %v2556 = vpop.f32.mrf.mxu0
      %v2557 = vadd.f32 0.0, %v2556
      %v2558 = vpop.f32.mrf.mxu0
      %v2559 = vpop.f32.mrf.mxu0
      %v2560 = vadd.f32 0.0, %v2559
      %v2561 = vpop.f32.mrf.mxu0
      %2562 = vmatprep.mubr.bf16.mxu0 0
      %2563 = vmatmul.mubr.bf16.gmra.mxu0 %v2449
      %v2564 = vpop.f32.mrf.mxu0
      %v2565 = vadd.f32 0.0, %v2564
      %v2566 = vpop.f32.mrf.mxu0
      %v2567 = vpop.f32.mrf.mxu0
      %v2568 = vadd.f32 0.0, %v2567
      %v2569 = vpop.f32.mrf.mxu0
      %2570 = vmatprep.mubr.bf16.mxu0 0
      %2571 = vmatmul.mubr.bf16.gmra.mxu0 %v2452
      %v2572 = vpop.f32.mrf.mxu0
      %v2573 = vadd.f32 0.0, %v2572
      %v2574 = vpop.f32.mrf.mxu0
      %v2575 = vpop.f32.mrf.mxu0
      %v2576 = vadd.f32 0.0, %v2575
      %v2577 = vpop.f32.mrf.mxu0
      %2578 = vmatprep.mubr.bf16.mxu0 0
      %2579 = vmatmul.mubr.bf16.gmra.mxu0 %v2455
      %v2580 = vpop.f32.mrf.mxu0
      %v2581 = vadd.f32 0.0, %v2580
      %v2582 = vpop.f32.mrf.mxu0
      %v2583 = vpop.f32.mrf.mxu0
      %v2584 = vadd.f32 0.0, %v2583
      %v2585 = vpop.f32.mrf.mxu0
      %2586 = vmatprep.mubr.bf16.mxu0 0
      %2587 = vmatmul.mubr.bf16.gmra.mxu0 %v2458
      %v2588 = vpop.f32.mrf.mxu0
      %v2589 = vadd.f32 0.0, %v2588
      %v2590 = vpop.f32.mrf.mxu0
      %v2591 = vpop.f32.mrf.mxu0
      %v2592 = vadd.f32 0.0, %v2591
      %v2593 = vpop.f32.mrf.mxu0
      %2594 = vmatprep.mubr.bf16.mxu0 0
      %2595 = vmatmul.mubr.bf16.gmra.mxu0 %v2461
      %v2596 = vpop.f32.mrf.mxu0
      %v2597 = vadd.f32 0.0, %v2596
      %v2598 = vpop.f32.mrf.mxu0
      %v2599 = vpop.f32.mrf.mxu0
      %v2600 = vadd.f32 0.0, %v2599
      %v2601 = vpop.f32.mrf.mxu0
      %2602 = vmatprep.mubr.bf16.mxu0 0
      %2603 = vmatmul.mubr.bf16.gmra.mxu0 %v2464
      %v2604 = vpop.f32.mrf.mxu0
      %v2605 = vadd.f32 0.0, %v2604
      %v2606 = vpop.f32.mrf.mxu0
      %v2607 = vpop.f32.mrf.mxu0
      %v2608 = vadd.f32 0.0, %v2607
      %v2609 = vpop.f32.mrf.mxu0
      %2610 = vmatprep.mubr.bf16.mxu0 0
      %2611 = vmatmul.mubr.bf16.gmra.mxu0 %v2467
      %v2612 = vpop.f32.mrf.mxu0
      %v2613 = vadd.f32 0.0, %v2612
      %v2614 = vpop.f32.mrf.mxu0
      %v2615 = vpop.f32.mrf.mxu0
      %v2616 = vadd.f32 0.0, %v2615
      %v2617 = vpop.f32.mrf.mxu0
      %2618 = vmatprep.mubr.bf16.mxu0 0
      %2619 = vmatmul.mubr.bf16.gmra.mxu0 %v2470
      %v2620 = vpop.f32.mrf.mxu0
      %v2621 = vadd.f32 0.0, %v2620
      %v2622 = vpop.f32.mrf.mxu0
      %v2623 = vpop.f32.mrf.mxu0
      %v2624 = vadd.f32 0.0, %v2623
      %v2625 = vpop.f32.mrf.mxu0
      %2626 = vmatprep.mubr.bf16.mxu0 0
      %2627 = vmatmul.mubr.bf16.gmra.mxu0 %v2473
      %v2628 = vpop.f32.mrf.mxu0
      %v2629 = vadd.f32 0.0, %v2628
      %v2630 = vpop.f32.mrf.mxu0
      %v2631 = vpop.f32.mrf.mxu0
      %v2632 = vadd.f32 0.0, %v2631
      %v2633 = vpop.f32.mrf.mxu0
      %2634 = vmatprep.mubr.bf16.mxu0 0
      %2635 = vmatmul.mubr.bf16.gmra.mxu0 %v2476
      %v2636 = vpop.f32.mrf.mxu0
      %v2637 = vadd.f32 0.0, %v2636
      %v2638 = vpop.f32.mrf.mxu0
      %v2639 = vpop.f32.mrf.mxu0
      %v2640 = vadd.f32 0.0, %v2639
      %v2641 = vpop.f32.mrf.mxu0
      %2642 = vmatprep.mubr.bf16.mxu0 0
      %2643 = vmatmul.mubr.bf16.gmra.mxu0 %v2479
      %v2644 = vpop.f32.mrf.mxu0
      %v2645 = vadd.f32 0.0, %v2644
      %v2646 = vpop.f32.mrf.mxu0
      %v2647 = vpop.f32.mrf.mxu0
      %v2648 = vadd.f32 0.0, %v2647
      %v2649 = vpop.f32.mrf.mxu0
      %2650 = vmatprep.mubr.bf16.mxu0 0
      %2651 = vmatmul.mubr.bf16.gmra.mxu0 %v2482
      %v2652 = vpop.f32.mrf.mxu0
      %v2653 = vadd.f32 0.0, %v2652
      %v2654 = vpop.f32.mrf.mxu0
      %v2655 = vpop.f32.mrf.mxu0
      %v2656 = vadd.f32 0.0, %v2655
      %v2657 = vpop.f32.mrf.mxu0
      %2658 = vmatprep.mubr.bf16.mxu0 0
      %2659 = vmatmul.mubr.bf16.gmra.mxu0 %v2485
      %v2660 = vpop.f32.mrf.mxu0
      %v2661 = vadd.f32 0.0, %v2660
      %v2662 = vpop.f32.mrf.mxu0
      %v2663 = vpop.f32.mrf.mxu0
      %v2664 = vadd.f32 0.0, %v2663
      %v2665 = vpop.f32.mrf.mxu0
      %2666 = vdwg.mxu0
      %v2667 = vadd.f32 %v2309, %v2525
      %v2668 = vadd.f32 %v2310, %v2528
      %v2669 = vadd.f32 %v2311, %v2533
      %v2670 = vadd.f32 %v2312, %v2536
      %v2671 = vadd.f32 %v2313, %v2541
      %v2672 = vadd.f32 %v2314, %v2544
      %v2673 = vadd.f32 %v2315, %v2549
      %v2674 = vadd.f32 %v2316, %v2552
      %v2675 = vadd.f32 %v2317, %v2557
      %v2676 = vadd.f32 %v2318, %v2560
      %v2677 = vadd.f32 %v2319, %v2565
      %v2678 = vadd.f32 %v2320, %v2568
      %v2679 = vadd.f32 %v2321, %v2573
      %v2680 = vadd.f32 %v2322, %v2576
      %v2681 = vadd.f32 %v2323, %v2581
      %v2682 = vadd.f32 %v2324, %v2584
      %v2683 = vadd.f32 %v2325, %v2589
      %v2684 = vadd.f32 %v2326, %v2592
      %v2685 = vadd.f32 %v2327, %v2597
      %v2686 = vadd.f32 %v2328, %v2600
      %v2687 = vadd.f32 %v2329, %v2605
      %v2688 = vadd.f32 %v2330, %v2608
      %v2689 = vadd.f32 %v2331, %v2613
      %v2690 = vadd.f32 %v2332, %v2616
      %v2691 = vadd.f32 %v2333, %v2621
      %v2692 = vadd.f32 %v2334, %v2624
      %v2693 = vadd.f32 %v2335, %v2629
      %v2694 = vadd.f32 %v2336, %v2632
      %v2695 = vadd.f32 %v2337, %v2637
      %v2696 = vadd.f32 %v2338, %v2640
      %v2697 = vadd.f32 %v2339, %v2645
      %v2698 = vadd.f32 %v2340, %v2648
      %v2699 = vadd.f32 %v2341, %v2653
      %v2700 = vadd.f32 %v2342, %v2656
      %v2701 = vadd.f32 %v2343, %v2661
      %v2702 = vadd.f32 %v2344, %v2664
      %s2703 = scalar_lea.vmem %s1, 16
      %v2704 = vld [vmem:[%s2703] sm:$0x3]
      %vm2705 = vcmask 1044480
      %v2706 = vrot.slane %v290, 3
      %v2707 = vrot.slane %v291, 3
      %v2708 = vsel %vm2705, %v2706, %v2707
      %v2709 = vrot.slane %v292, 3
      %v2710 = vsel %vm2705, %v2707, %v2709
      %v2711 = vrot.slane %v293, 3
      %v2712 = vsel %vm2705, %v2709, %v2711
      %v2713 = vrot.slane %v294, 3
      %v2714 = vsel %vm2705, %v2711, %v2713
      %v2715 = vrot.slane %v295, 3
      %v2716 = vsel %vm2705, %v2713, %v2715
      %v2717 = vrot.slane %v296, 3
      %v2718 = vsel %vm2705, %v2715, %v2717
      %v2719 = vrot.slane %v297, 3
      %v2720 = vsel %vm2705, %v2717, %v2719
      %v2721 = vrot.slane %v298, 3
      %v2722 = vsel %vm2705, %v2719, %v2721
      %v2723 = vrot.slane %v299, 3
      %v2724 = vsel %vm2705, %v2721, %v2723
      %v2725 = vrot.slane %v300, 3
      %v2726 = vsel %vm2705, %v2723, %v2725
      %v2727 = vrot.slane %v301, 3
      %v2728 = vsel %vm2705, %v2725, %v2727
      %v2729 = vrot.slane %v302, 3
      %v2730 = vsel %vm2705, %v2727, %v2729
      %v2731 = vrot.slane %v303, 3
      %v2732 = vsel %vm2705, %v2729, %v2731
      %v2733 = vrot.slane %v304, 3
      %v2734 = vsel %vm2705, %v2731, %v2733
      %v2735 = vrot.slane %v305, 3
      %v2736 = vsel %vm2705, %v2733, %v2735
      %v2737 = vrot.slane %v1219, 3
      %v2738 = vsel %vm2705, %v2735, %v2737
      %v2739 = vrot.slane %v2117, 3
      %v2740 = vsel %vm2705, %v2737, %v2739
      %v2741 = vrot.slane %v2118, 3
      %v2742 = vsel %vm2705, %v2739, %v2741
      %v2744 = vsel %vm450, %v2708, 0
      %v2747 = vsel %vm450, %v2710, 0
      %v2750 = vsel %vm450, %v2712, 0
      %v2753 = vsel %vm450, %v2714, 0
      %v2756 = vsel %vm450, %v2716, 0
      %v2759 = vsel %vm450, %v2718, 0
      %v2762 = vsel %vm450, %v2720, 0
      %v2765 = vsel %vm450, %v2722, 0
      %v2768 = vsel %vm450, %v2724, 0
      %v2771 = vsel %vm450, %v2726, 0
      %v2774 = vsel %vm450, %v2728, 0
      %v2777 = vsel %vm450, %v2730, 0
      %v2780 = vsel %vm450, %v2732, 0
      %v2783 = vsel %vm450, %v2734, 0
      %v2786 = vsel %vm450, %v2736, 0
      %v2789 = vsel %vm450, %v2738, 0
      %v2792 = vsel %vm450, %v2740, 0
      %v2795 = vsel %vm450, %v2742, 0
      %v2798 = vand.u32 %v2704, %v508
      %2800 = vmatprep.subr.bf16.mxu0 0
      %2801 = vmatpush1.bf16.msra.mxu0 0
      %2802 = vmatprep.subr.bf16.mxu0 0
      %2803 = vmatpush1.bf16.msra.mxu0 0
      %2804 = vmatprep.subr.bf16.mxu0 0
      %2805 = vmatpush1.bf16.msra.mxu0 0
      %2806 = vmatprep.subr.bf16.mxu0 0
      %2807 = vmatpush1.bf16.msra.mxu0 0
      %2808 = vmatprep.subr.bf16.mxu0 0
      %2809 = vmatpush1.bf16.msra.mxu0 0
      %2810 = vmatprep.subr.bf16.mxu0 0
      %2811 = vmatpush1.bf16.msra.mxu0 0
      %2812 = vmatprep.subr.bf16.mxu0 0
      %2813 = vmatpush1.bf16.msra.mxu0 0
      %2814 = vmatprep.subr.bf16.mxu0 0
      %2815 = vmatpush1.bf16.msra.mxu0 %v2798
      %2816 = vmatprep.subr.bf16.mxu0 0
      %2817 = vmatpush2.bf16.msra.mxu0 0
      %2818 = vmatprep.subr.bf16.mxu0 0
      %2819 = vmatpush2.bf16.msra.mxu0 0
      %2820 = vmatprep.subr.bf16.mxu0 0
      %2821 = vmatpush2.bf16.msra.mxu0 0
      %2822 = vmatprep.subr.bf16.mxu0 0
      %2823 = vmatpush2.bf16.msra.mxu0 0
      %2824 = vmatprep.subr.bf16.mxu0 0
      %2825 = vmatpush2.bf16.msra.mxu0 0
      %2826 = vmatprep.subr.bf16.mxu0 0
      %2827 = vmatpush2.bf16.msra.mxu0 0
      %2828 = vmatprep.subr.bf16.mxu0 0
      %2829 = vmatpush2.bf16.msra.mxu0 0
      %2830 = vmatprep.subr.bf16.mxu0 0
      %2831 = vmatpush2.bf16.msra.mxu0 0
      %2832 = vmatprep.mubr.bf16.mxu0 0
      %2833 = vmatmul.mubr.bf16.gmra.mxu0 %v2744
      %v2834 = vpop.f32.mrf.mxu0
      %v2835 = vadd.f32 0.0, %v2834
      %v2836 = vpop.f32.mrf.mxu0
      %v2837 = vpop.f32.mrf.mxu0
      %v2838 = vadd.f32 0.0, %v2837
      %v2839 = vpop.f32.mrf.mxu0
      %2840 = vmatprep.mubr.bf16.mxu0 0
      %2841 = vmatmul.mubr.bf16.gmra.mxu0 %v2747
      %v2842 = vpop.f32.mrf.mxu0
      %v2843 = vadd.f32 0.0, %v2842
      %v2844 = vpop.f32.mrf.mxu0
      %v2845 = vpop.f32.mrf.mxu0
      %v2846 = vadd.f32 0.0, %v2845
      %v2847 = vpop.f32.mrf.mxu0
      %2848 = vmatprep.mubr.bf16.mxu0 0
      %2849 = vmatmul.mubr.bf16.gmra.mxu0 %v2750
      %v2850 = vpop.f32.mrf.mxu0
      %v2851 = vadd.f32 0.0, %v2850
      %v2852 = vpop.f32.mrf.mxu0
      %v2853 = vpop.f32.mrf.mxu0
      %v2854 = vadd.f32 0.0, %v2853
      %v2855 = vpop.f32.mrf.mxu0
      %2856 = vmatprep.mubr.bf16.mxu0 0
      %2857 = vmatmul.mubr.bf16.gmra.mxu0 %v2753
      %v2858 = vpop.f32.mrf.mxu0
      %v2859 = vadd.f32 0.0, %v2858
      %v2860 = vpop.f32.mrf.mxu0
      %v2861 = vpop.f32.mrf.mxu0
      %v2862 = vadd.f32 0.0, %v2861
      %v2863 = vpop.f32.mrf.mxu0
      %2864 = vmatprep.mubr.bf16.mxu0 0
      %2865 = vmatmul.mubr.bf16.gmra.mxu0 %v2756
      %v2866 = vpop.f32.mrf.mxu0
      %v2867 = vadd.f32 0.0, %v2866
      %v2868 = vpop.f32.mrf.mxu0
      %v2869 = vpop.f32.mrf.mxu0
      %v2870 = vadd.f32 0.0, %v2869
      %v2871 = vpop.f32.mrf.mxu0
      %2872 = vmatprep.mubr.bf16.mxu0 0
      %2873 = vmatmul.mubr.bf16.gmra.mxu0 %v2759
      %v2874 = vpop.f32.mrf.mxu0
      %v2875 = vadd.f32 0.0, %v2874
      %v2876 = vpop.f32.mrf.mxu0
      %v2877 = vpop.f32.mrf.mxu0
      %v2878 = vadd.f32 0.0, %v2877
      %v2879 = vpop.f32.mrf.mxu0
      %2880 = vmatprep.mubr.bf16.mxu0 0
      %2881 = vmatmul.mubr.bf16.gmra.mxu0 %v2762
      %v2882 = vpop.f32.mrf.mxu0
      %v2883 = vadd.f32 0.0, %v2882
      %v2884 = vpop.f32.mrf.mxu0
      %v2885 = vpop.f32.mrf.mxu0
      %v2886 = vadd.f32 0.0, %v2885
      %v2887 = vpop.f32.mrf.mxu0
      %2888 = vmatprep.mubr.bf16.mxu0 0
      %2889 = vmatmul.mubr.bf16.gmra.mxu0 %v2765
      %v2890 = vpop.f32.mrf.mxu0
      %v2891 = vadd.f32 0.0, %v2890
      %v2892 = vpop.f32.mrf.mxu0
      %v2893 = vpop.f32.mrf.mxu0
      %v2894 = vadd.f32 0.0, %v2893
      %v2895 = vpop.f32.mrf.mxu0
      %2896 = vmatprep.mubr.bf16.mxu0 0
      %2897 = vmatmul.mubr.bf16.gmra.mxu0 %v2768
      %v2898 = vpop.f32.mrf.mxu0
      %v2899 = vadd.f32 0.0, %v2898
      %v2900 = vpop.f32.mrf.mxu0
      %v2901 = vpop.f32.mrf.mxu0
      %v2902 = vadd.f32 0.0, %v2901
      %v2903 = vpop.f32.mrf.mxu0
      %2904 = vmatprep.mubr.bf16.mxu0 0
      %2905 = vmatmul.mubr.bf16.gmra.mxu0 %v2771
      %v2906 = vpop.f32.mrf.mxu0
      %v2907 = vadd.f32 0.0, %v2906
      %v2908 = vpop.f32.mrf.mxu0
      %v2909 = vpop.f32.mrf.mxu0
      %v2910 = vadd.f32 0.0, %v2909
      %v2911 = vpop.f32.mrf.mxu0
      %2912 = vmatprep.mubr.bf16.mxu0 0
      %2913 = vmatmul.mubr.bf16.gmra.mxu0 %v2774
      %v2914 = vpop.f32.mrf.mxu0
      %v2915 = vadd.f32 0.0, %v2914
      %v2916 = vpop.f32.mrf.mxu0
      %v2917 = vpop.f32.mrf.mxu0
      %v2918 = vadd.f32 0.0, %v2917
      %v2919 = vpop.f32.mrf.mxu0
      %2920 = vmatprep.mubr.bf16.mxu0 0
      %2921 = vmatmul.mubr.bf16.gmra.mxu0 %v2777
      %v2922 = vpop.f32.mrf.mxu0
      %v2923 = vadd.f32 0.0, %v2922
      %v2924 = vpop.f32.mrf.mxu0
      %v2925 = vpop.f32.mrf.mxu0
      %v2926 = vadd.f32 0.0, %v2925
      %v2927 = vpop.f32.mrf.mxu0
      %2928 = vmatprep.mubr.bf16.mxu0 0
      %2929 = vmatmul.mubr.bf16.gmra.mxu0 %v2780
      %v2930 = vpop.f32.mrf.mxu0
      %v2931 = vadd.f32 0.0, %v2930
      %v2932 = vpop.f32.mrf.mxu0
      %v2933 = vpop.f32.mrf.mxu0
      %v2934 = vadd.f32 0.0, %v2933
      %v2935 = vpop.f32.mrf.mxu0
      %2936 = vmatprep.mubr.bf16.mxu0 0
      %2937 = vmatmul.mubr.bf16.gmra.mxu0 %v2783
      %v2938 = vpop.f32.mrf.mxu0
      %v2939 = vadd.f32 0.0, %v2938
      %v2940 = vpop.f32.mrf.mxu0
      %v2941 = vpop.f32.mrf.mxu0
      %v2942 = vadd.f32 0.0, %v2941
      %v2943 = vpop.f32.mrf.mxu0
      %2944 = vmatprep.mubr.bf16.mxu0 0
      %2945 = vmatmul.mubr.bf16.gmra.mxu0 %v2786
      %v2946 = vpop.f32.mrf.mxu0
      %v2947 = vadd.f32 0.0, %v2946
      %v2948 = vpop.f32.mrf.mxu0
      %v2949 = vpop.f32.mrf.mxu0
      %v2950 = vadd.f32 0.0, %v2949
      %v2951 = vpop.f32.mrf.mxu0
      %2952 = vmatprep.mubr.bf16.mxu0 0
      %2953 = vmatmul.mubr.bf16.gmra.mxu0 %v2789
      %v2954 = vpop.f32.mrf.mxu0
      %v2955 = vadd.f32 0.0, %v2954
      %v2956 = vpop.f32.mrf.mxu0
      %v2957 = vpop.f32.mrf.mxu0
      %v2958 = vadd.f32 0.0, %v2957
      %v2959 = vpop.f32.mrf.mxu0
      %2960 = vmatprep.mubr.bf16.mxu0 0
      %2961 = vmatmul.mubr.bf16.gmra.mxu0 %v2792
      %v2962 = vpop.f32.mrf.mxu0
      %v2963 = vadd.f32 0.0, %v2962
      %v2964 = vpop.f32.mrf.mxu0
      %v2965 = vpop.f32.mrf.mxu0
      %v2966 = vadd.f32 0.0, %v2965
      %v2967 = vpop.f32.mrf.mxu0
      %2968 = vmatprep.mubr.bf16.mxu0 0
      %2969 = vmatmul.mubr.bf16.gmra.mxu0 %v2795
      %v2970 = vpop.f32.mrf.mxu0
      %v2971 = vadd.f32 0.0, %v2970
      %v2972 = vpop.f32.mrf.mxu0
      %v2973 = vpop.f32.mrf.mxu0
      %v2974 = vadd.f32 0.0, %v2973
      %v2975 = vpop.f32.mrf.mxu0
      %2976 = vdwg.mxu0
      %v2977 = vadd.f32 %v2667, %v2835
      %v2978 = vadd.f32 %v2668, %v2838
      %v2979 = vadd.f32 %v2669, %v2843
      %v2980 = vadd.f32 %v2670, %v2846
      %v2981 = vadd.f32 %v2671, %v2851
      %v2982 = vadd.f32 %v2672, %v2854
      %v2983 = vadd.f32 %v2673, %v2859
      %v2984 = vadd.f32 %v2674, %v2862
      %v2985 = vadd.f32 %v2675, %v2867
      %v2986 = vadd.f32 %v2676, %v2870
      %v2987 = vadd.f32 %v2677, %v2875
      %v2988 = vadd.f32 %v2678, %v2878
      %v2989 = vadd.f32 %v2679, %v2883
      %v2990 = vadd.f32 %v2680, %v2886
      %v2991 = vadd.f32 %v2681, %v2891
      %v2992 = vadd.f32 %v2682, %v2894
      %v2993 = vadd.f32 %v2683, %v2899
      %v2994 = vadd.f32 %v2684, %v2902
      %v2995 = vadd.f32 %v2685, %v2907
      %v2996 = vadd.f32 %v2686, %v2910
      %v2997 = vadd.f32 %v2687, %v2915
      %v2998 = vadd.f32 %v2688, %v2918
      %v2999 = vadd.f32 %v2689, %v2923
      %v3000 = vadd.f32 %v2690, %v2926
      %v3001 = vadd.f32 %v2691, %v2931
      %v3002 = vadd.f32 %v2692, %v2934
      %v3003 = vadd.f32 %v2693, %v2939
      %v3004 = vadd.f32 %v2694, %v2942
      %v3005 = vadd.f32 %v2695, %v2947
      %v3006 = vadd.f32 %v2696, %v2950
      %v3007 = vadd.f32 %v2697, %v2955
      %v3008 = vadd.f32 %v2698, %v2958
      %v3009 = vadd.f32 %v2699, %v2963
      %v3010 = vadd.f32 %v2700, %v2966
      %v3011 = vadd.f32 %v2701, %v2971
      %v3012 = vadd.f32 %v2702, %v2974
      %v3013 = vld [vmem:[%s2] sm:$0x1]
      %v3015 = vlaneseq
      %v3016 = vshrl.u32 %v3015, 7
      %v3017 = vsub.s32 0, %v3016
      %v3018 = vrot.slane %v3013, %v3017
      %v3020 = vadd.f32 %v2977, %v3018
      %v3021 = vadd.f32 %v2978, %v3018
      %v3022 = vadd.f32 %v2979, %v3018
      %v3023 = vadd.f32 %v2980, %v3018
      %v3024 = vadd.f32 %v2981, %v3018
      %v3025 = vadd.f32 %v2982, %v3018
      %v3026 = vadd.f32 %v2983, %v3018
      %v3027 = vadd.f32 %v2984, %v3018
      %v3028 = vadd.f32 %v2985, %v3018
      %v3029 = vadd.f32 %v2986, %v3018
      %v3030 = vadd.f32 %v2987, %v3018
      %v3031 = vadd.f32 %v2988, %v3018
      %v3032 = vadd.f32 %v2989, %v3018
      %v3033 = vadd.f32 %v2990, %v3018
      %v3034 = vadd.f32 %v2991, %v3018
      %v3035 = vadd.f32 %v2992, %v3018
      %v3036 = vadd.f32 %v2993, %v3018
      %v3037 = vadd.f32 %v2994, %v3018
      %v3038 = vadd.f32 %v2995, %v3018
      %v3039 = vadd.f32 %v2996, %v3018
      %v3040 = vadd.f32 %v2997, %v3018
      %v3041 = vadd.f32 %v2998, %v3018
      %v3042 = vadd.f32 %v2999, %v3018
      %v3043 = vadd.f32 %v3000, %v3018
      %v3044 = vadd.f32 %v3001, %v3018
      %v3045 = vadd.f32 %v3002, %v3018
      %v3046 = vadd.f32 %v3003, %v3018
      %v3047 = vadd.f32 %v3004, %v3018
      %v3048 = vadd.f32 %v3005, %v3018
      %v3049 = vadd.f32 %v3006, %v3018
      %v3050 = vadd.f32 %v3007, %v3018
      %v3051 = vadd.f32 %v3008, %v3018
      %v3052 = vadd.f32 %v3009, %v3018
      %v3053 = vadd.f32 %v3010, %v3018
      %v3054 = vadd.f32 %v3011, %v3018
      %v3055 = vadd.f32 %v3012, %v3018
      %v3056 = vmax.f32 %v3020, 0.0
      %v3057 = vmax.f32 %v3021, 0.0
      %v3058 = vmax.f32 %v3022, 0.0
      %v3059 = vmax.f32 %v3023, 0.0
      %v3060 = vmax.f32 %v3024, 0.0
      %v3061 = vmax.f32 %v3025, 0.0
      %v3062 = vmax.f32 %v3026, 0.0
      %v3063 = vmax.f32 %v3027, 0.0
      %v3064 = vmax.f32 %v3028, 0.0
      %v3065 = vmax.f32 %v3029, 0.0
      %v3066 = vmax.f32 %v3030, 0.0
      %v3067 = vmax.f32 %v3031, 0.0
      %v3068 = vmax.f32 %v3032, 0.0
      %v3069 = vmax.f32 %v3033, 0.0
      %v3070 = vmax.f32 %v3034, 0.0
      %v3071 = vmax.f32 %v3035, 0.0
      %v3072 = vmax.f32 %v3036, 0.0
      %v3073 = vmax.f32 %v3037, 0.0
      %v3074 = vmax.f32 %v3038, 0.0
      %v3075 = vmax.f32 %v3039, 0.0
      %v3076 = vmax.f32 %v3040, 0.0
      %v3077 = vmax.f32 %v3041, 0.0
      %v3078 = vmax.f32 %v3042, 0.0
      %v3079 = vmax.f32 %v3043, 0.0
      %v3080 = vmax.f32 %v3044, 0.0
      %v3081 = vmax.f32 %v3045, 0.0
      %v3082 = vmax.f32 %v3046, 0.0
      %v3083 = vmax.f32 %v3047, 0.0
      %v3084 = vmax.f32 %v3048, 0.0
      %v3085 = vmax.f32 %v3049, 0.0
      %v3086 = vmax.f32 %v3050, 0.0
      %v3087 = vmax.f32 %v3051, 0.0
      %v3088 = vmax.f32 %v3052, 0.0
      %v3089 = vmax.f32 %v3053, 0.0
      %v3090 = vmax.f32 %v3054, 0.0
      %v3091 = vmax.f32 %v3055, 0.0
      %v3092 = vpack.c.bf16 %v3057, %v3056
      %v3093 = vpack.c.bf16 %v3059, %v3058
      %v3094 = vpack.c.bf16 %v3061, %v3060
      %v3095 = vpack.c.bf16 %v3063, %v3062
      %v3096 = vpack.c.bf16 %v3065, %v3064
      %v3097 = vpack.c.bf16 %v3067, %v3066
      %v3098 = vpack.c.bf16 %v3069, %v3068
      %v3099 = vpack.c.bf16 %v3071, %v3070
      %v3100 = vpack.c.bf16 %v3073, %v3072
      %v3101 = vpack.c.bf16 %v3075, %v3074
      %v3102 = vpack.c.bf16 %v3077, %v3076
      %v3103 = vpack.c.bf16 %v3079, %v3078
      %v3104 = vpack.c.bf16 %v3081, %v3080
      %v3105 = vpack.c.bf16 %v3083, %v3082
      %v3106 = vpack.c.bf16 %v3085, %v3084
      %v3107 = vpack.c.bf16 %v3087, %v3086
      %v3108 = vpack.c.bf16 %v3089, %v3088
      %v3109 = vpack.c.bf16 %v3091, %v3090
      %v3128 = vunpack.c.l.b16 %v3092
      %v3129 = vunpack.c.h.b16 %v3092
      %v3130 = vunpack.c.l.b16 %v3093
      %v3131 = vunpack.c.h.b16 %v3093
      %v3132 = vunpack.c.l.b16 %v3094
      %v3133 = vunpack.c.h.b16 %v3094
      %v3134 = vunpack.c.l.b16 %v3095
      %v3135 = vunpack.c.h.b16 %v3095
      %v3136 = vunpack.c.l.b16 %v3096
      %v3137 = vunpack.c.h.b16 %v3096
      %v3138 = vunpack.c.l.b16 %v3097
      %v3139 = vunpack.c.h.b16 %v3097
      %v3140 = vunpack.c.l.b16 %v3098
      %v3141 = vunpack.c.h.b16 %v3098
      %v3142 = vunpack.c.l.b16 %v3099
      %v3143 = vunpack.c.h.b16 %v3099
      %v3144 = vunpack.c.l.b16 %v3100
      %v3145 = vunpack.c.h.b16 %v3100
      %v3146 = vunpack.c.l.b16 %v3101
      %v3147 = vunpack.c.h.b16 %v3101
      %v3148 = vunpack.c.l.b16 %v3102
      %v3149 = vunpack.c.h.b16 %v3102
      %v3150 = vunpack.c.l.b16 %v3103
      %v3151 = vunpack.c.h.b16 %v3103
      %v3152 = vunpack.c.l.b16 %v3104
      %v3153 = vunpack.c.h.b16 %v3104
      %v3154 = vunpack.c.l.b16 %v3105
      %v3155 = vunpack.c.h.b16 %v3105
      %v3156 = vunpack.c.l.b16 %v3106
      %v3157 = vunpack.c.h.b16 %v3106
      %v3158 = vunpack.c.l.b16 %v3107
      %v3159 = vunpack.c.h.b16 %v3107
      %v3160 = vunpack.c.l.b16 %v3108
      %v3161 = vunpack.c.h.b16 %v3108
      %v3162 = vunpack.c.l.b16 %v3109
      %v3163 = vunpack.c.h.b16 %v3109
      %v3164 = vpack.c.b16 %v3128, %v3128
      %v3165 = vpack.c.b16 %v3129, %v3129
      %v3166 = vpack.c.b16 %v3130, %v3130
      %v3167 = vpack.c.b16 %v3131, %v3131
      %v3168 = vpack.c.b16 %v3132, %v3132
      %v3169 = vpack.c.b16 %v3133, %v3133
      %v3170 = vpack.c.b16 %v3134, %v3134
      %v3171 = vpack.c.b16 %v3135, %v3135
      %v3172 = vpack.c.b16 %v3136, %v3136
      %v3173 = vpack.c.b16 %v3137, %v3137
      %v3174 = vpack.c.b16 %v3138, %v3138
      %v3175 = vpack.c.b16 %v3139, %v3139
      %v3176 = vpack.c.b16 %v3140, %v3140
      %v3177 = vpack.c.b16 %v3141, %v3141
      %v3178 = vpack.c.b16 %v3142, %v3142
      %v3179 = vpack.c.b16 %v3143, %v3143
      %v3180 = vpack.c.b16 %v3144, %v3144
      %v3181 = vpack.c.b16 %v3145, %v3145
      %v3182 = vpack.c.b16 %v3146, %v3146
      %v3183 = vpack.c.b16 %v3147, %v3147
      %v3184 = vpack.c.b16 %v3148, %v3148
      %v3185 = vpack.c.b16 %v3149, %v3149
      %v3186 = vpack.c.b16 %v3150, %v3150
      %v3187 = vpack.c.b16 %v3151, %v3151
      %v3188 = vpack.c.b16 %v3152, %v3152
      %v3189 = vpack.c.b16 %v3153, %v3153
      %v3190 = vpack.c.b16 %v3154, %v3154
      %v3191 = vpack.c.b16 %v3155, %v3155
      %v3192 = vpack.c.b16 %v3156, %v3156
      %v3193 = vpack.c.b16 %v3157, %v3157
      %v3194 = vpack.c.b16 %v3158, %v3158
      %v3195 = vpack.c.b16 %v3159, %v3159
      %v3196 = vpack.c.b16 %v3160, %v3160
      %v3197 = vpack.c.b16 %v3161, %v3161
      %v3198 = vpack.c.b16 %v3162, %v3162
      %v3199 = vpack.c.b16 %v3163, %v3163
      %3236 = vst [vmem:[%s170] sm:$0xf] %v3164
      %3237 = vst [vmem:[%s170 + $0x4] sm:$0xf] %v3165
      %3238 = vst [vmem:[%s170 + $0x8] sm:$0xf] %v3166
      %3239 = vst [vmem:[%s170 + $0xc] sm:$0xf] %v3167
      %3240 = vst [vmem:[%s170 + $0x10] sm:$0xf] %v3168
      %3241 = vst [vmem:[%s170 + $0x14] sm:$0xf] %v3169
      %3242 = vst [vmem:[%s170 + $0x18] sm:$0xf] %v3170
      %3243 = vst [vmem:[%s170 + $0x1c] sm:$0xf] %v3171
      %3244 = vst [vmem:[%s170 + $0x20] sm:$0xf] %v3172
      %3245 = vst [vmem:[%s170 + $0x24] sm:$0xf] %v3173
      %3246 = vst [vmem:[%s170 + $0x28] sm:$0xf] %v3174
      %3247 = vst [vmem:[%s170 + $0x2c] sm:$0xf] %v3175
      %3248 = vst [vmem:[%s170 + $0x30] sm:$0xf] %v3176
      %3249 = vst [vmem:[%s170 + $0x34] sm:$0xf] %v3177
      %3250 = vst [vmem:[%s170 + $0x38] sm:$0xf] %v3178
      %3251 = vst [vmem:[%s170 + $0x3c] sm:$0xf] %v3179
      %3252 = vst [vmem:[%s170 + $0x40] sm:$0xf] %v3180
      %3253 = vst [vmem:[%s170 + $0x44] sm:$0xf] %v3181
      %3254 = vst [vmem:[%s170 + $0x48] sm:$0xf] %v3182
      %3255 = vst [vmem:[%s170 + $0x4c] sm:$0xf] %v3183
      %3256 = vst [vmem:[%s170 + $0x50] sm:$0xf] %v3184
      %3257 = vst [vmem:[%s170 + $0x54] sm:$0xf] %v3185
      %3258 = vst [vmem:[%s170 + $0x58] sm:$0xf] %v3186
      %3259 = vst [vmem:[%s170 + $0x5c] sm:$0xf] %v3187
      %3260 = vst [vmem:[%s170 + $0x60] sm:$0xf] %v3188
      %3261 = vst [vmem:[%s170 + $0x64] sm:$0xf] %v3189
      %3262 = vst [vmem:[%s170 + $0x68] sm:$0xf] %v3190
      %3263 = vst [vmem:[%s170 + $0x6c] sm:$0xf] %v3191
      %3264 = vst [vmem:[%s170 + $0x70] sm:$0xf] %v3192
      %3265 = vst [vmem:[%s170 + $0x74] sm:$0xf] %v3193
      %3266 = vst [vmem:[%s170 + $0x78] sm:$0xf] %v3194
      %3267 = vst [vmem:[%s170 + $0x7c] sm:$0xf] %v3195
      %3268 = vst [vmem:[%s170 + $0x80] sm:$0xf] %v3196
      %3269 = vst [vmem:[%s170 + $0x84] sm:$0xf] %v3197
      %3270 = vst [vmem:[%s170 + $0x88] sm:$0xf] %v3198
      %3271 = vst [vmem:[%s170 + $0x8c] sm:$0x7] %v3199
      %p3272 = scmp.lt.s32.totalorder %s14, 3
      %s3273 = scalar_select %p3272, %s14, 3
      %s3274 = smul.addr %s3273, 36
      %s3275 = smul.addr %s3274, 4
      %s3276 = scalar_lea.vmem %s3, %s3275
      // Predicated region
      $region33: #{bigbigan_forward.6} parent=31 // pred_check
        %p3277 = pneg %p100
      $region34: #{bigbigan_forward.6} parent=31 // pred_check_branch
        %3279 = sbr.rel (%p3277) target = $region36
      $region35: #{bigbigan_forward.6} parent=31 // pred_region
        _
      $region36: #{bigbigan_forward.6} parent=31 // pred_fallthru
        _
    $region32: #{bigbigan_forward.6} parent=5 // pred_fallthru
      _
    %p3280 = scmp.le.s32.totalorder 2, %s9
    // Predicated region
    $region37: #{bigbigan_forward.6} parent=5 // pred_check
      %p3281 = pneg %p3280
    $region38: #{bigbigan_forward.6} parent=5 // pred_check_branch
      %3283 = sbr.rel (%p3281) target = $region40
    $region39: #{bigbigan_forward.6} parent=5 // pred_region
      %s3284 = ssub.s32 %s9, 2
      // Predicated region
      $region41: #{bigbigan_forward.6} parent=39 // pred_check
        %p3285 = pneg %p106
      $region42: #{bigbigan_forward.6} parent=39 // pred_check_branch
        %3287 = sbr.rel (%p3285) target = $region44
      $region43: #{bigbigan_forward.6} parent=39 // pred_region
        %p3288 = scmp.lt.s32.totalorder %s15, 3
        %s3289 = scalar_select %p3288, %s15, 3
        %s3290 = smul.addr %s3289, 36
        %s3291 = smul.addr %s3290, 4
        %s3292 = scalar_lea.vmem %s3, %s3291
      $region44: #{bigbigan_forward.6} parent=39 // pred_fallthru
        _
    $region40: #{bigbigan_forward.6} parent=5 // pred_fallthru
      _
  $region6: #{bigbigan_forward.6} parent=0 // loop_footer
    %s13 = sadd.s32 1, %s9
  $region7: #{bigbigan_forward.6} parent=0 // loop_footer_branch
    %8 = sbr.rel target = $region3
  $region8: #{bigbigan_forward.6} parent=0 // loop_exit
    _

// kernel: bigbigan_forward.8
$region0: #{bigbigan_forward.8}
  #allocation0 [shape = 'u32[]', space=smem, size = 0x4, offset = 0x4, fixed_abs, tag = 'smem constant byte address 0x4 - core index']
  #allocation1 [shape = 'u32[144,128]{1,0:T(1,128)}', space=vmem, size = 0x12000, scoped, tag = 'internal scratch']
  #allocation2 [shape = 'f32[1,1]{1,0:T(1,128)S(6)}', space=smem, size = 0x200, scoped, tag = 'scoped memory for bigbigan_forward.8']
  %s0 = inlined_call_operand.vmem [shape: bf16[4,16,128], index: 0, kind: input, shape index: {}]
  %s1 = inlined_call_operand.vmem [shape: f32[1,128], index: 1, kind: input, shape index: {}]
  %s2 = inlined_call_operand.vmem [shape: f32[4,128], index: 2, kind: input, shape index: {}]
  %s3 = inlined_call_operand.<no memory space> [shape: f32[1,1], index: 3, kind: input, shape index: {}]
  %s4 = inlined_call_operand.vmem [shape: bf16[4,128], index: 4, kind: output, shape index: {0}]
  %s5 = inlined_call_operand.vmem [shape: f32[4,1], index: 5, kind: output, shape index: {1}]
  %6 = xla_tuple %s4, %s5
  %s7 = sld [smem:[#allocation0]]
  $region34: #{bigbigan_forward.8} parent=0
    _
  %s9 = ssub.s32 1, %s7
  %s10 = scalar_select 0, %s9, %s7
  %11 = sst [smem:[#allocation2]] %s3
  // Predicated region
  $region2: #{bigbigan_forward.8} parent=0 // pred_check
    _
  $region3: #{bigbigan_forward.8} parent=0 // pred_check_branch
    %13 = sbr.rel (0) target = $region5
  $region4: #{bigbigan_forward.8} parent=0 // pred_region
    _
  $region5: #{bigbigan_forward.8} parent=0 // pred_fallthru
    _
  // Predicated region
  $region6: #{bigbigan_forward.8} parent=0 // pred_check
    _
  $region7: #{bigbigan_forward.8} parent=0 // pred_check_branch
    %15 = sbr.rel (0) target = $region9
  $region8: #{bigbigan_forward.8} parent=0 // pred_region
    _
  $region9: #{bigbigan_forward.8} parent=0 // pred_fallthru
    _
  // Predicated region
  $region10: #{bigbigan_forward.8} parent=0 // pred_check
    _
  $region11: #{bigbigan_forward.8} parent=0 // pred_check_branch
    %17 = sbr.rel (0) target = $region13
  $region12: #{bigbigan_forward.8} parent=0 // pred_region
    _
  $region13: #{bigbigan_forward.8} parent=0 // pred_fallthru
    _
  // Predicated region
  $region14: #{bigbigan_forward.8} parent=0 // pred_check
    _
  $region15: #{bigbigan_forward.8} parent=0 // pred_check_branch
    %19 = sbr.rel (0) target = $region17
  $region16: #{bigbigan_forward.8} parent=0 // pred_region
    _
  $region17: #{bigbigan_forward.8} parent=0 // pred_fallthru
    _
  %v20 = vld [vmem:[%s0] sm:$0xf]
  %v21 = vld [vmem:[%s0 + $0x4] sm:$0xf]
  %v22 = vld [vmem:[%s0 + $0x8] sm:$0xf]
  %v23 = vld [vmem:[%s0 + $0xc] sm:$0xf]
  %v24 = vld [vmem:[%s0 + $0x10] sm:$0xf]
  %v25 = vld [vmem:[%s0 + $0x14] sm:$0xf]
  %v26 = vld [vmem:[%s0 + $0x18] sm:$0xf]
  %v27 = vld [vmem:[%s0 + $0x1c] sm:$0xf]
  %v28 = vunpack.c.l.bf16 %v20
  %v29 = vunpack.c.l.bf16 %v21
  %v30 = vunpack.c.l.bf16 %v22
  %v31 = vunpack.c.l.bf16 %v23
  %v32 = vunpack.c.l.bf16 %v24
  %v33 = vunpack.c.l.bf16 %v25
  %v34 = vunpack.c.l.bf16 %v26
  %v35 = vunpack.c.l.bf16 %v27
  %v36 = vadd.f32 %v28, %v29
  %v37 = vrot.slane %v36, 4
  %v38 = vadd.f32 %v36, %v37
  %v39 = vrot.slane %v38, 2
  %v40 = vadd.f32 %v38, %v39
  %v41 = vrot.slane %v40, 1
  %v42 = vadd.f32 %v40, %v41
  %v43 = vadd.f32 %v30, %v31
  %v44 = vrot.slane %v43, 4
  %v45 = vadd.f32 %v43, %v44
  %v46 = vrot.slane %v45, 2
  %v47 = vadd.f32 %v45, %v46
  %v48 = vrot.slane %v47, 1
  %v49 = vadd.f32 %v47, %v48
  %v50 = vadd.f32 %v32, %v33
  %v51 = vrot.slane %v50, 4
  %v52 = vadd.f32 %v50, %v51
  %v53 = vrot.slane %v52, 2
  %v54 = vadd.f32 %v52, %v53
  %v55 = vrot.slane %v54, 1
  %v56 = vadd.f32 %v54, %v55
  %v57 = vadd.f32 %v34, %v35
  %v58 = vrot.slane %v57, 4
  %v59 = vadd.f32 %v57, %v58
  %v60 = vrot.slane %v59, 2
  %v61 = vadd.f32 %v59, %v60
  %v62 = vrot.slane %v61, 1
  %v63 = vadd.f32 %v61, %v62
  %v64 = vld [vmem:[%s1] sm:$0x1]
  %v66 = vlaneseq
  %v67 = vshrl.u32 %v66, 7
  %v68 = vsub.s32 0, %v67
  %v69 = vrot.slane %v64, %v68
  %v71 = vmul.f32 %v42, %v69
  %v72 = vmul.f32 %v49, %v69
  %v73 = vmul.f32 %v56, %v69
  %v74 = vmul.f32 %v63, %v69
  %v79 = vrot.slane %v72, 7
  %vm80 = vcmask 1041409
  %v81 = vsel %vm80, %v79, %v71
  %v82 = vrot.slane %v73, 6
  %vm83 = vcmask 1042434
  %v84 = vsel %vm83, %v82, %v81
  %v85 = vrot.slane %v74, 5
  %vm86 = vcmask 1043459
  %v87 = vsel %vm86, %v85, %v84
  %vm89 = vcmask 1043456
  %v90 = vsel %vm89, %v87, 0.0
  %91 = vadd.xlane.f32.xlu0 %v90
  %v92 = vpop.xlane.xlu0 %91
  %v93 = vld [vmem:[%s2] sm:$0xf]
  %v95 = vrot.slane %v93, 1
  %v96 = vrot.slane %v93, 2
  %v97 = vrot.slane %v93, 3
  %v102 = vmul.f32 %v42, %v93
  %v103 = vmul.f32 %v49, %v95
  %v104 = vmul.f32 %v56, %v96
  %v105 = vmul.f32 %v63, %v97
  %v110 = vrot.slane %v103, 7
  %v111 = vsel %vm80, %v110, %v102
  %v112 = vrot.slane %v104, 6
  %v113 = vsel %vm83, %v112, %v111
  %v114 = vrot.slane %v105, 5
  %v115 = vsel %vm86, %v114, %v113
  %v117 = vsel %vm89, %v115, 0.0
  %118 = vadd.xlane.f32.xlu0 %v117
  %v119 = vpop.xlane.xlu0 %118
  %v120 = vadd.f32 %v92, %v119
  %s121 = sld [smem:[#allocation2]]
  %v122 = vstv %s121
  %v123 = vadd.f32 %v120, %v122
  %vm124 = vcmask 3072
  %125 = vst.msk [vmem:[%s5] sm:$0xf] %vm124, %v123
  %v126 = vpack.c.bf16 %v42, %v42
  %v127 = vpack.c.bf16 %v49, %v49
  %v128 = vpack.c.bf16 %v56, %v56
  %v129 = vpack.c.bf16 %v63, %v63
  %v135 = vunpack.c.l.s4 1983009808
  %v136 = vunpack.c.0.s8 %v135
  %v137 = vlaneseq
  %v138 = vshrl.u32 %v137, 7
  %v139 = vsub.s32 %v136, %v138
  %v140 = vrot.slane %v126, %v139
  %v142 = vunpack.c.l.s4 1983009808
  %v143 = vunpack.c.0.s8 %v142
  %v144 = vlaneseq
  %v145 = vshrl.u32 %v144, 7
  %v146 = vsub.s32 %v143, %v145
  %v147 = vrot.slane %v127, %v146
  %v149 = vunpack.c.l.s4 1983009808
  %v150 = vunpack.c.0.s8 %v149
  %v151 = vlaneseq
  %v152 = vshrl.u32 %v151, 7
  %v153 = vsub.s32 %v150, %v152
  %v154 = vrot.slane %v128, %v153
  %v156 = vunpack.c.l.s4 1983009808
  %v157 = vunpack.c.0.s8 %v156
  %v158 = vlaneseq
  %v159 = vshrl.u32 %v158, 7
  %v160 = vsub.s32 %v157, %v159
  %v161 = vrot.slane %v129, %v160
  %v163 = vunpack.c.l.s4 1983009808
  %v164 = vunpack.c.0.s8 %v163
  %v165 = vlaneseq
  %v166 = vshrl.u32 %v165, 7
  %v167 = vsub.s32 %v164, %v166
  %v168 = vrot.slane %v140, %v167
  %v170 = vunpack.c.l.s4 1983009808
  %v171 = vunpack.c.0.s8 %v170
  %v172 = vlaneseq
  %v173 = vshrl.u32 %v172, 7
  %v174 = vsub.s32 %v171, %v173
  %v175 = vrot.slane %v147, %v174
  %v177 = vunpack.c.l.s4 1983009808
  %v178 = vunpack.c.0.s8 %v177
  %v179 = vlaneseq
  %v180 = vshrl.u32 %v179, 7
  %v181 = vsub.s32 %v178, %v180
  %v182 = vrot.slane %v154, %v181
  %v184 = vunpack.c.l.s4 1983009808
  %v185 = vunpack.c.0.s8 %v184
  %v186 = vlaneseq
  %v187 = vshrl.u32 %v186, 7
  %v188 = vsub.s32 %v185, %v187
  %v189 = vrot.slane %v161, %v188
  %v190 = vunpack.c.l.b16 %v168
  %v191 = vunpack.c.l.b16 %v175
  %v192 = vunpack.c.l.b16 %v182
  %v193 = vunpack.c.l.b16 %v189
  %v194 = vrot.slane %v191, 7
  %v195 = vsel %vm80, %v194, %v190
  %v196 = vrot.slane %v192, 6
  %v197 = vsel %vm83, %v196, %v195
  %v198 = vrot.slane %v193, 5
  %v199 = vsel %vm86, %v198, %v197
  %v200 = vpack.c.b16 %v199, %v199
  %v202 = vunpack.c.l.s4 1983009808
  %v203 = vunpack.c.0.s8 %v202
  %v204 = vlaneseq
  %v205 = vshrl.u32 %v204, 7
  %v206 = vsub.s32 %v203, %v205
  %v207 = vrot.slane %v200, %v206
  %209 = vst [vmem:[%s4] sm:$0x3] %v207
  // Predicated region
  $region18: #{bigbigan_forward.8} parent=0 // pred_check
    _
  $region19: #{bigbigan_forward.8} parent=0 // pred_check_branch
    %211 = sbr.rel (0) target = $region21
  $region20: #{bigbigan_forward.8} parent=0 // pred_region
    _
  $region21: #{bigbigan_forward.8} parent=0 // pred_fallthru
    _
  // Predicated region
  $region22: #{bigbigan_forward.8} parent=0 // pred_check
    _
  $region23: #{bigbigan_forward.8} parent=0 // pred_check_branch
    %213 = sbr.rel (0) target = $region25
  $region24: #{bigbigan_forward.8} parent=0 // pred_region
    _
  $region25: #{bigbigan_forward.8} parent=0 // pred_fallthru
    _
  // Predicated region
  $region26: #{bigbigan_forward.8} parent=0 // pred_check
    _
  $region27: #{bigbigan_forward.8} parent=0 // pred_check_branch
    %215 = sbr.rel (0) target = $region29
  $region28: #{bigbigan_forward.8} parent=0 // pred_region
    _
  $region29: #{bigbigan_forward.8} parent=0 // pred_fallthru
    _
  // Predicated region
  $region30: #{bigbigan_forward.8} parent=0 // pred_check
    _
  $region31: #{bigbigan_forward.8} parent=0 // pred_check_branch
    %217 = sbr.rel (0) target = $region33
  $region32: #{bigbigan_forward.8} parent=0 // pred_region
    _
  $region33: #{bigbigan_forward.8} parent=0 // pred_fallthru
    _

// kernel: bigbigan_forward.7
$region0: #{bigbigan_forward.7}
  #allocation0 [shape = 'u32[]', space=smem, size = 0x4, offset = 0x4, fixed_abs, tag = 'smem constant byte address 0x4 - core index']
  #allocation1 [shape = 'u32[144,128]{1,0:T(1,128)}', space=vmem, size = 0x12000, scoped, tag = 'internal scratch']
  %s0 = inlined_call_operand.vmem [shape: bf16[4,100,128], index: 0, kind: input, shape index: {}]
  %s1 = inlined_call_operand.vmem [shape: bf16[9,128,128], index: 1, kind: input, shape index: {}]
  %s2 = inlined_call_operand.vmem [shape: f32[1,128], index: 2, kind: input, shape index: {}]
  %s3 = inlined_call_operand.vmem [shape: bf16[4,78,128], index: 3, kind: output, shape index: {}]
  %s4 = sld [smem:[#allocation0]]
  $region45: #{bigbigan_forward.7} parent=0
    _
  %s6 = ssub.s32 1, %s4
  %s7 = scalar_select 0, %s6, %s4
  loop: start=0, step=1, limit=6
  $region2: #{bigbigan_forward.7} parent=0 // loop_pre_header
    _
  $region3: #{bigbigan_forward.7} parent=0 // loop_header
    %s9 = sphi 0, %s13
    %p10 = scmp.ge.s32.totalorder %s9, 6
    %s19 = sphi 0, %s21
    %s22 = sphi 0, %s19
    %s23 = sphi 0, %s22
    %s39 = sphi 0, %s23
    %s43 = sphi 0, %s43
    %s45 = sphi 0, %s43
    %s46 = sphi 0, %s45
    %s60 = sphi 0, %s46
    %s64 = sphi 0, %s64
    %s66 = sphi 0, %s64
    %s67 = sphi 0, %s66
    %s81 = sphi 0, %s67
    %s87 = sphi 0, %s89
    %s90 = sphi 0, %s87
    %s91 = sphi 0, %s90
    %s107 = sphi 0, %s91
  $region4: #{bigbigan_forward.7} parent=0 // loop_header_branch
    %12 = sbr.rel (%p10) target = $region8
  $region5: #{bigbigan_forward.7} parent=0 // loop_body
    %s14 = ssub.s32 %s9, 1
    %s15 = ssub.s32 %s9, 2
    %s16 = sadd.s32 %s9, 1
    %s17 = ssub.s32 %s9, %s16
    %p18 = scmp.eq.s32.totalorder %s17, 0
    %s20 = sadd.s32 %s19, 1
    %s21 = scalar_select %p18, %s19, %s20
    %p24 = pneg %p18
    %p25 = scmp.eq.s32.totalorder %s9, 3
    %p26 = por %p24, %p25
    %p27 = scmp.ne.s32.totalorder %s19, %s22
    %p28 = scmp.eq.s32.totalorder %s9, 0
    %p29 = por %p27, %p28
    %p30 = scmp.ne.s32.totalorder %s19, %s22
    %p31 = scmp.eq.s32.totalorder %s14, 3
    %p32 = por %p30, %p31
    %p33 = scmp.ne.s32.totalorder %s22, %s23
    %p34 = scmp.eq.s32.totalorder %s14, 0
    %p35 = por %p33, %p34
    %p36 = scmp.ne.s32.totalorder %s22, %s23
    %p37 = scmp.eq.s32.totalorder %s15, 3
    %p38 = por %p36, %p37
    %p40 = scmp.ne.s32.totalorder %s23, %s39
    %p41 = scmp.eq.s32.totalorder %s15, 0
    %p42 = por %p40, %p41
    %s44 = sadd.s32 %s43, 1
    %p47 = scmp.eq.s32.totalorder %s9, 3
    %p48 = scmp.ne.s32.totalorder %s43, %s45
    %p49 = scmp.eq.s32.totalorder %s9, 0
    %p50 = por %p48, %p49
    %p51 = scmp.ne.s32.totalorder %s43, %s45
    %p52 = scmp.eq.s32.totalorder %s14, 3
    %p53 = por %p51, %p52
    %p54 = scmp.ne.s32.totalorder %s45, %s46
    %p55 = scmp.eq.s32.totalorder %s14, 0
    %p56 = por %p54, %p55
    %p57 = scmp.ne.s32.totalorder %s45, %s46
    %p58 = scmp.eq.s32.totalorder %s15, 3
    %p59 = por %p57, %p58
    %p61 = scmp.ne.s32.totalorder %s46, %s60
    %p62 = scmp.eq.s32.totalorder %s15, 0
    %p63 = por %p61, %p62
    %s65 = sadd.s32 %s64, 1
    %p68 = scmp.eq.s32.totalorder %s9, 3
    %p69 = scmp.ne.s32.totalorder %s64, %s66
    %p70 = scmp.eq.s32.totalorder %s9, 0
    %p71 = por %p69, %p70
    %p72 = scmp.ne.s32.totalorder %s64, %s66
    %p73 = scmp.eq.s32.totalorder %s14, 3
    %p74 = por %p72, %p73
    %p75 = scmp.ne.s32.totalorder %s66, %s67
    %p76 = scmp.eq.s32.totalorder %s14, 0
    %p77 = por %p75, %p76
    %p78 = scmp.ne.s32.totalorder %s66, %s67
    %p79 = scmp.eq.s32.totalorder %s15, 3
    %p80 = por %p78, %p79
    %p82 = scmp.ne.s32.totalorder %s67, %s81
    %p83 = scmp.eq.s32.totalorder %s15, 0
    %p84 = por %p82, %p83
    %s85 = ssub.s32 %s9, %s16
    %p86 = scmp.eq.s32.totalorder %s85, 0
    %s88 = sadd.s32 %s87, 1
    %s89 = scalar_select %p86, %s87, %s88
    %p92 = pneg %p86
    %p93 = scmp.eq.s32.totalorder %s9, 3
    %p94 = por %p92, %p93
    %p95 = scmp.ne.s32.totalorder %s87, %s90
    %p96 = scmp.eq.s32.totalorder %s9, 0
    %p97 = por %p95, %p96
    %p98 = scmp.ne.s32.totalorder %s87, %s90
    %p99 = scmp.eq.s32.totalorder %s14, 3
    %p100 = por %p98, %p99
    %p101 = scmp.ne.s32.totalorder %s90, %s91
    %p102 = scmp.eq.s32.totalorder %s14, 0
    %p103 = por %p101, %p102
    %p104 = scmp.ne.s32.totalorder %s90, %s91
    %p105 = scmp.eq.s32.totalorder %s15, 3
    %p106 = por %p104, %p105
    %p108 = scmp.ne.s32.totalorder %s91, %s107
    %p109 = scmp.eq.s32.totalorder %s15, 0
    %p110 = por %p108, %p109
    %p111 = scmp.le.s32.totalorder 1, %s9
    %p112 = scmp.lt.s32.totalorder %s9, 5
    %p113 = pnand %p111, %p112
    %p114 = pneg %p113
    // Predicated region
    $region9: #{bigbigan_forward.7} parent=5 // pred_check
      _
    $region10: #{bigbigan_forward.7} parent=5 // pred_check_branch
      %116 = sbr.rel (%p113) target = $region12
    $region11: #{bigbigan_forward.7} parent=5 // pred_region
      %s117 = ssub.s32 %s9, 1
      // Predicated region
      $region13: #{bigbigan_forward.7} parent=11 // pred_check
        %p118 = pneg %p56
      $region14: #{bigbigan_forward.7} parent=11 // pred_check_branch
        %120 = sbr.rel (%p118) target = $region16
      $region15: #{bigbigan_forward.7} parent=11 // pred_region
        _
      $region16: #{bigbigan_forward.7} parent=11 // pred_fallthru
        _
      // Predicated region
      $region17: #{bigbigan_forward.7} parent=11 // pred_check
        %p121 = pneg %p77
      $region18: #{bigbigan_forward.7} parent=11 // pred_check_branch
        %123 = sbr.rel (%p121) target = $region20
      $region19: #{bigbigan_forward.7} parent=11 // pred_region
        _
      $region20: #{bigbigan_forward.7} parent=11 // pred_fallthru
        _
    $region12: #{bigbigan_forward.7} parent=5 // pred_fallthru
      _
    %p124 = scmp.lt.s32.totalorder %s9, 4
    // Predicated region
    $region21: #{bigbigan_forward.7} parent=5 // pred_check
      %p125 = pneg %p124
    $region22: #{bigbigan_forward.7} parent=5 // pred_check_branch
      %127 = sbr.rel (%p125) target = $region24
    $region23: #{bigbigan_forward.7} parent=5 // pred_region
      // Predicated region
      $region25: #{bigbigan_forward.7} parent=23 // pred_check
        %p128 = pneg %p29
      $region26: #{bigbigan_forward.7} parent=23 // pred_check_branch
        %130 = sbr.rel (%p128) target = $region28
      $region27: #{bigbigan_forward.7} parent=23 // pred_region
        %p131 = scmp.lt.s32.totalorder %s9, 3
        %s132 = scalar_select %p131, %s9, 3
        %s133 = smul.addr %s132, 13
        %s134 = smul.addr %s133, 4
        %s135 = scalar_lea.vmem %s0, %s134
      $region28: #{bigbigan_forward.7} parent=23 // pred_fallthru
        _
    $region24: #{bigbigan_forward.7} parent=5 // pred_fallthru
      _
    %p136 = scmp.le.s32.totalorder 1, %s9
    %p137 = scmp.lt.s32.totalorder %s9, 5
    %p138 = pnand %p136, %p137
    %p139 = pneg %p138
    // Predicated region
    $region29: #{bigbigan_forward.7} parent=5 // pred_check
      _
    $region30: #{bigbigan_forward.7} parent=5 // pred_check_branch
      %141 = sbr.rel (%p138) target = $region32
    $region31: #{bigbigan_forward.7} parent=5 // pred_region
      %s142 = ssub.s32 %s9, 1
      %p143 = scmp.lt.s32.totalorder %s14, 3
      %s144 = scalar_select %p143, %s14, 3
      %s145 = smul.addr %s144, 13
      %s146 = smul.addr %s145, 4
      %s147 = scalar_lea.vmem %s0, %s146
      %p148 = pneg %p35
      %p149 = pneg %p32
      %p150 = pneg %p56
      %p151 = pneg %p53
      %p152 = pneg %p77
      %p153 = pneg %p74
      %p154 = pneg %p103
      %p155 = pneg %p100
      %p156 = scmp.lt.s32.totalorder %s14, 3
      %s157 = scalar_select %p156, %s14, 3
      %s158 = smul.addr %s157, 10
      %s159 = smul.addr %s158, 4
      %s160 = scalar_lea.vmem %s3, %s159
      %p161 = scmp.lt.s32.totalorder %s14, 3
      %s162 = scalar_select %p161, %s14, 3
      %s163 = smul.addr %s162, 13
      %s164 = smul.addr %s163, 4
      %s165 = scalar_lea.vmem %s0, %s164
      %p166 = scmp.lt.s32.totalorder %s14, 3
      %s167 = scalar_select %p166, %s14, 3
      %s168 = smul.addr %s167, 10
      %s169 = smul.addr %s168, 4
      %s170 = scalar_lea.vmem %s3, %s169
      %v172 = vld [vmem:[%s165] sm:$0xf]
      %v173 = vld [vmem:[%s165 + $0x4] sm:$0xf]
      %v174 = vld [vmem:[%s165 + $0x8] sm:$0xf]
      %v175 = vld [vmem:[%s165 + $0xc] sm:$0xf]
      %v176 = vld [vmem:[%s165 + $0x10] sm:$0xf]
      %v177 = vld [vmem:[%s165 + $0x14] sm:$0xf]
      %v178 = vld [vmem:[%s165 + $0x18] sm:$0xf]
      %v179 = vld [vmem:[%s165 + $0x1c] sm:$0xf]
      %v180 = vld [vmem:[%s165 + $0x20] sm:$0xf]
      %v181 = vld [vmem:[%s165 + $0x24] sm:$0xf]
      %v182 = vld [vmem:[%s165 + $0x28] sm:$0xf]
      %v183 = vld [vmem:[%s165 + $0x2c] sm:$0xf]
      %v184 = vld [vmem:[%s165 + $0x30] sm:$0x3]
      %v185 = vld [vmem:[%s1] sm:$0xf]
      %v186 = vld [vmem:[%s1 + $0x4] sm:$0xf]
      %v187 = vld [vmem:[%s1 + $0x8] sm:$0xf]
      %v188 = vld [vmem:[%s1 + $0xc] sm:$0xf]
      %v189 = vld [vmem:[%s1 + $0x10] sm:$0xf]
      %v190 = vld [vmem:[%s1 + $0x14] sm:$0xf]
      %v191 = vld [vmem:[%s1 + $0x18] sm:$0xf]
      %v192 = vld [vmem:[%s1 + $0x1c] sm:$0xf]
      %v193 = vld [vmem:[%s1 + $0x20] sm:$0xf]
      %v194 = vld [vmem:[%s1 + $0x24] sm:$0xf]
      %v195 = vld [vmem:[%s1 + $0x28] sm:$0xf]
      %v196 = vld [vmem:[%s1 + $0x2c] sm:$0xf]
      %v197 = vld [vmem:[%s1 + $0x30] sm:$0xf]
      %v198 = vld [vmem:[%s1 + $0x34] sm:$0xf]
      %v199 = vld [vmem:[%s1 + $0x38] sm:$0xf]
      %v200 = vld [vmem:[%s1 + $0x3c] sm:$0xf]
      %s201 = scalar_lea.vmem %s1, 64
      %v202 = vld [vmem:[%s201] sm:$0xf]
      %v203 = vld [vmem:[%s201 + $0x4] sm:$0xf]
      %v204 = vld [vmem:[%s201 + $0x8] sm:$0xf]
      %v205 = vld [vmem:[%s201 + $0xc] sm:$0xf]
      %v206 = vld [vmem:[%s201 + $0x10] sm:$0xf]
      %v207 = vld [vmem:[%s201 + $0x14] sm:$0xf]
      %v208 = vld [vmem:[%s201 + $0x18] sm:$0xf]
      %v209 = vld [vmem:[%s201 + $0x1c] sm:$0xf]
      %v210 = vld [vmem:[%s201 + $0x20] sm:$0xf]
      %v211 = vld [vmem:[%s201 + $0x24] sm:$0xf]
      %v212 = vld [vmem:[%s201 + $0x28] sm:$0xf]
      %v213 = vld [vmem:[%s201 + $0x2c] sm:$0xf]
      %v214 = vld [vmem:[%s201 + $0x30] sm:$0xf]
      %v215 = vld [vmem:[%s201 + $0x34] sm:$0xf]
      %v216 = vld [vmem:[%s201 + $0x38] sm:$0xf]
      %v217 = vld [vmem:[%s201 + $0x3c] sm:$0xf]
      %v228 = vunpack.c.l.b16 %v172
      %v229 = vunpack.c.l.b16 %v173
      %v230 = vunpack.c.l.b16 %v174
      %v231 = vunpack.c.l.b16 %v175
      %v232 = vunpack.c.l.b16 %v176
      %v233 = vunpack.c.l.b16 %v177
      %v234 = vunpack.c.l.b16 %v178
      %v235 = vunpack.c.l.b16 %v179
      %v236 = vunpack.c.l.b16 %v180
      %v237 = vunpack.c.l.b16 %v181
      %v238 = vpack.c.b16 %v229, %v228
      %v239 = vpack.c.b16 %v231, %v230
      %v240 = vpack.c.b16 %v233, %v232
      %v241 = vpack.c.b16 %v235, %v234
      %v242 = vpack.c.b16 %v237, %v236
      %vm243 = vsmask.f32 7424
      %v245 = vshrl.u32 %v238, 16
      %v247 = vshll.u32 %v238, 16
      %v249 = vrot.slane %v247, 1
      %v250 = vor.u32 %v245, %v249
      %v252 = vshll.u32 %v239, 16
      %v254 = vrot.slane %v252, 1
      %v255 = vsel %vm243, %v250, %v254
      %v256 = vshrl.u32 %v239, 16
      %v258 = vor.u32 %v256, %v254
      %v260 = vshll.u32 %v240, 16
      %v262 = vrot.slane %v260, 1
      %v263 = vsel %vm243, %v258, %v262
      %v264 = vshrl.u32 %v240, 16
      %v266 = vor.u32 %v264, %v262
      %v268 = vshll.u32 %v241, 16
      %v270 = vrot.slane %v268, 1
      %v271 = vsel %vm243, %v266, %v270
      %v272 = vshrl.u32 %v241, 16
      %v274 = vor.u32 %v272, %v270
      %v276 = vshll.u32 %v242, 16
      %v278 = vrot.slane %v276, 1
      %v279 = vsel %vm243, %v274, %v278
      %v280 = vshrl.u32 %v242, 16
      %v282 = vor.u32 %v280, %v278
      %v304 = vunpack.c.l.b16 %v202
      %v305 = vunpack.c.l.b16 %v203
      %v306 = vunpack.c.l.b16 %v204
      %v307 = vunpack.c.l.b16 %v205
      %v308 = vunpack.c.l.b16 %v206
      %v309 = vunpack.c.l.b16 %v207
      %v310 = vunpack.c.l.b16 %v208
      %v311 = vunpack.c.l.b16 %v209
      %v312 = vunpack.c.l.b16 %v210
      %v313 = vunpack.c.l.b16 %v211
      %v314 = vunpack.c.l.b16 %v212
      %v315 = vunpack.c.l.b16 %v213
      %v316 = vunpack.c.l.b16 %v214
      %v317 = vunpack.c.l.b16 %v215
      %v318 = vunpack.c.l.b16 %v216
      %v319 = vunpack.c.l.b16 %v217
      %v320 = vpack.c.b16 %v305, %v304
      %v321 = vpack.c.b16 %v307, %v306
      %v322 = vpack.c.b16 %v309, %v308
      %v323 = vpack.c.b16 %v311, %v310
      %v324 = vpack.c.b16 %v313, %v312
      %v325 = vpack.c.b16 %v315, %v314
      %v326 = vpack.c.b16 %v317, %v316
      %v327 = vpack.c.b16 %v319, %v318
      %336 = vmatprep.subr.bf16.mxu0 0
      %337 = vmatpush1.bf16.msra.mxu0 %v327
      %338 = vmatprep.subr.bf16.mxu0 0
      %339 = vmatpush1.bf16.msra.mxu0 %v326
      %340 = vmatprep.subr.bf16.mxu0 0
      %341 = vmatpush1.bf16.msra.mxu0 %v325
      %342 = vmatprep.subr.bf16.mxu0 0
      %343 = vmatpush1.bf16.msra.mxu0 %v324
      %344 = vmatprep.subr.bf16.mxu0 0
      %345 = vmatpush1.bf16.msra.mxu0 %v323
      %346 = vmatprep.subr.bf16.mxu0 0
      %347 = vmatpush1.bf16.msra.mxu0 %v322
      %348 = vmatprep.subr.bf16.mxu0 0
      %349 = vmatpush1.bf16.msra.mxu0 %v321
      %350 = vmatprep.subr.bf16.mxu0 0
      %351 = vmatpush1.bf16.msra.mxu0 %v320
      %352 = vmatprep.subr.bf16.mxu0 0
      %353 = vmatpush2.bf16.msra.mxu0 0
      %354 = vmatprep.subr.bf16.mxu0 0
      %355 = vmatpush2.bf16.msra.mxu0 0
      %356 = vmatprep.subr.bf16.mxu0 0
      %357 = vmatpush2.bf16.msra.mxu0 0
      %358 = vmatprep.subr.bf16.mxu0 0
      %359 = vmatpush2.bf16.msra.mxu0 0
      %360 = vmatprep.subr.bf16.mxu0 0
      %361 = vmatpush2.bf16.msra.mxu0 0
      %362 = vmatprep.subr.bf16.mxu0 0
      %363 = vmatpush2.bf16.msra.mxu0 0
      %364 = vmatprep.subr.bf16.mxu0 0
      %365 = vmatpush2.bf16.msra.mxu0 0
      %366 = vmatprep.subr.bf16.mxu0 0
      %367 = vmatpush2.bf16.msra.mxu0 0
      %368 = vmatprep.mubr.bf16.mxu0 0
      %369 = vmatmul.mubr.bf16.gmra.mxu0 %v255
      %v370 = vpop.f32.mrf.mxu0
      %v371 = vadd.f32 0.0, %v370
      %v372 = vpop.f32.mrf.mxu0
      %v373 = vpop.f32.mrf.mxu0
      %v374 = vadd.f32 0.0, %v373
      %v375 = vpop.f32.mrf.mxu0
      %376 = vmatprep.mubr.bf16.mxu0 0
      %377 = vmatmul.mubr.bf16.gmra.mxu0 %v263
      %v378 = vpop.f32.mrf.mxu0
      %v379 = vadd.f32 0.0, %v378
      %v380 = vpop.f32.mrf.mxu0
      %v381 = vpop.f32.mrf.mxu0
      %v382 = vadd.f32 0.0, %v381
      %v383 = vpop.f32.mrf.mxu0
      %384 = vmatprep.mubr.bf16.mxu0 0
      %385 = vmatmul.mubr.bf16.gmra.mxu0 %v271
      %v386 = vpop.f32.mrf.mxu0
      %v387 = vadd.f32 0.0, %v386
      %v388 = vpop.f32.mrf.mxu0
      %v389 = vpop.f32.mrf.mxu0
      %v390 = vadd.f32 0.0, %v389
      %v391 = vpop.f32.mrf.mxu0
      %392 = vmatprep.mubr.bf16.mxu0 0
      %393 = vmatmul.mubr.bf16.gmra.mxu0 %v279
      %v394 = vpop.f32.mrf.mxu0
      %v395 = vadd.f32 0.0, %v394
      %v396 = vpop.f32.mrf.mxu0
      %v397 = vpop.f32.mrf.mxu0
      %v398 = vadd.f32 0.0, %v397
      %v399 = vpop.f32.mrf.mxu0
      %400 = vmatprep.mubr.bf16.mxu0 0
      %401 = vmatmul.mubr.bf16.gmra.mxu0 %v282
      %v402 = vpop.f32.mrf.mxu0
      %v403 = vadd.f32 0.0, %v402
      %v404 = vpop.f32.mrf.mxu0
      %v405 = vpop.f32.mrf.mxu0
      %v406 = vadd.f32 0.0, %v405
      %v407 = vpop.f32.mrf.mxu0
      %408 = vdwg.mxu0
      %v430 = vunpack.c.l.b16 %v185
      %v431 = vunpack.c.l.b16 %v186
      %v432 = vunpack.c.l.b16 %v187
      %v433 = vunpack.c.l.b16 %v188
      %v434 = vunpack.c.l.b16 %v189
      %v435 = vunpack.c.l.b16 %v190
      %v436 = vunpack.c.l.b16 %v191
      %v437 = vunpack.c.l.b16 %v192
      %v438 = vunpack.c.l.b16 %v193
      %v439 = vunpack.c.l.b16 %v194
      %v440 = vunpack.c.l.b16 %v195
      %v441 = vunpack.c.l.b16 %v196
      %v442 = vunpack.c.l.b16 %v197
      %v443 = vunpack.c.l.b16 %v198
      %v444 = vunpack.c.l.b16 %v199
      %v445 = vunpack.c.l.b16 %v200
      %v446 = vpack.c.b16 %v431, %v430
      %v447 = vpack.c.b16 %v433, %v432
      %v448 = vpack.c.b16 %v435, %v434
      %v449 = vpack.c.b16 %v437, %v436
      %v450 = vpack.c.b16 %v439, %v438
      %v451 = vpack.c.b16 %v441, %v440
      %v452 = vpack.c.b16 %v443, %v442
      %v453 = vpack.c.b16 %v445, %v444
      %462 = vmatprep.subr.bf16.mxu0 0
      %463 = vmatpush1.bf16.msra.mxu0 %v453
      %464 = vmatprep.subr.bf16.mxu0 0
      %465 = vmatpush1.bf16.msra.mxu0 %v452
      %466 = vmatprep.subr.bf16.mxu0 0
      %467 = vmatpush1.bf16.msra.mxu0 %v451
      %468 = vmatprep.subr.bf16.mxu0 0
      %469 = vmatpush1.bf16.msra.mxu0 %v450
      %470 = vmatprep.subr.bf16.mxu0 0
      %471 = vmatpush1.bf16.msra.mxu0 %v449
      %472 = vmatprep.subr.bf16.mxu0 0
      %473 = vmatpush1.bf16.msra.mxu0 %v448
      %474 = vmatprep.subr.bf16.mxu0 0
      %475 = vmatpush1.bf16.msra.mxu0 %v447
      %476 = vmatprep.subr.bf16.mxu0 0
      %477 = vmatpush1.bf16.msra.mxu0 %v446
      %478 = vmatprep.subr.bf16.mxu0 0
      %479 = vmatpush2.bf16.msra.mxu0 0
      %480 = vmatprep.subr.bf16.mxu0 0
      %481 = vmatpush2.bf16.msra.mxu0 0
      %482 = vmatprep.subr.bf16.mxu0 0
      %483 = vmatpush2.bf16.msra.mxu0 0
      %484 = vmatprep.subr.bf16.mxu0 0
      %485 = vmatpush2.bf16.msra.mxu0 0
      %486 = vmatprep.subr.bf16.mxu0 0
      %487 = vmatpush2.bf16.msra.mxu0 0
      %488 = vmatprep.subr.bf16.mxu0 0
      %489 = vmatpush2.bf16.msra.mxu0 0
      %490 = vmatprep.subr.bf16.mxu0 0
      %491 = vmatpush2.bf16.msra.mxu0 0
      %492 = vmatprep.subr.bf16.mxu0 0
      %493 = vmatpush2.bf16.msra.mxu0 0
      %494 = vmatprep.mubr.bf16.mxu0 0
      %495 = vmatmul.mubr.bf16.gmra.mxu0 %v238
      %v496 = vpop.f32.mrf.mxu0
      %v497 = vadd.f32 %v371, %v496
      %v498 = vpop.f32.mrf.mxu0
      %v499 = vpop.f32.mrf.mxu0
      %v500 = vadd.f32 %v374, %v499
      %v501 = vpop.f32.mrf.mxu0
      %502 = vmatprep.mubr.bf16.mxu0 0
      %503 = vmatmul.mubr.bf16.gmra.mxu0 %v239
      %v504 = vpop.f32.mrf.mxu0
      %v505 = vadd.f32 %v379, %v504
      %v506 = vpop.f32.mrf.mxu0
      %v507 = vpop.f32.mrf.mxu0
      %v508 = vadd.f32 %v382, %v507
      %v509 = vpop.f32.mrf.mxu0
      %510 = vmatprep.mubr.bf16.mxu0 0
      %511 = vmatmul.mubr.bf16.gmra.mxu0 %v240
      %v512 = vpop.f32.mrf.mxu0
      %v513 = vadd.f32 %v387, %v512
      %v514 = vpop.f32.mrf.mxu0
      %v515 = vpop.f32.mrf.mxu0
      %v516 = vadd.f32 %v390, %v515
      %v517 = vpop.f32.mrf.mxu0
      %518 = vmatprep.mubr.bf16.mxu0 0
      %519 = vmatmul.mubr.bf16.gmra.mxu0 %v241
      %v520 = vpop.f32.mrf.mxu0
      %v521 = vadd.f32 %v395, %v520
      %v522 = vpop.f32.mrf.mxu0
      %v523 = vpop.f32.mrf.mxu0
      %v524 = vadd.f32 %v398, %v523
      %v525 = vpop.f32.mrf.mxu0
      %526 = vmatprep.mubr.bf16.mxu0 0
      %527 = vmatmul.mubr.bf16.gmra.mxu0 %v242
      %v528 = vpop.f32.mrf.mxu0
      %v529 = vadd.f32 %v403, %v528
      %v530 = vpop.f32.mrf.mxu0
      %v531 = vpop.f32.mrf.mxu0
      %v532 = vadd.f32 %v406, %v531
      %v533 = vpop.f32.mrf.mxu0
      %534 = vdwg.mxu0
      %s535 = scalar_lea.vmem %s1, 128
      %v536 = vld [vmem:[%s535] sm:$0xf]
      %v537 = vld [vmem:[%s535 + $0x4] sm:$0xf]
      %v538 = vld [vmem:[%s535 + $0x8] sm:$0xf]
      %v539 = vld [vmem:[%s535 + $0xc] sm:$0xf]
      %v540 = vld [vmem:[%s535 + $0x10] sm:$0xf]
      %v541 = vld [vmem:[%s535 + $0x14] sm:$0xf]
      %v542 = vld [vmem:[%s535 + $0x18] sm:$0xf]
      %v543 = vld [vmem:[%s535 + $0x1c] sm:$0xf]
      %v544 = vld [vmem:[%s535 + $0x20] sm:$0xf]
      %v545 = vld [vmem:[%s535 + $0x24] sm:$0xf]
      %v546 = vld [vmem:[%s535 + $0x28] sm:$0xf]
      %v547 = vld [vmem:[%s535 + $0x2c] sm:$0xf]
      %v548 = vld [vmem:[%s535 + $0x30] sm:$0xf]
      %v549 = vld [vmem:[%s535 + $0x34] sm:$0xf]
      %v550 = vld [vmem:[%s535 + $0x38] sm:$0xf]
      %v551 = vld [vmem:[%s535 + $0x3c] sm:$0xf]
      %vm552 = vcmask 1046528
      %v553 = vrot.slane %v238, 1
      %v554 = vrot.slane %v239, 1
      %v555 = vsel %vm552, %v553, %v554
      %v556 = vrot.slane %v240, 1
      %v557 = vsel %vm552, %v554, %v556
      %v558 = vrot.slane %v241, 1
      %v559 = vsel %vm552, %v556, %v558
      %v560 = vrot.slane %v242, 1
      %v561 = vsel %vm552, %v558, %v560
      %v583 = vunpack.c.l.b16 %v536
      %v584 = vunpack.c.l.b16 %v537
      %v585 = vunpack.c.l.b16 %v538
      %v586 = vunpack.c.l.b16 %v539
      %v587 = vunpack.c.l.b16 %v540
      %v588 = vunpack.c.l.b16 %v541
      %v589 = vunpack.c.l.b16 %v542
      %v590 = vunpack.c.l.b16 %v543
      %v591 = vunpack.c.l.b16 %v544
      %v592 = vunpack.c.l.b16 %v545
      %v593 = vunpack.c.l.b16 %v546
      %v594 = vunpack.c.l.b16 %v547
      %v595 = vunpack.c.l.b16 %v548
      %v596 = vunpack.c.l.b16 %v549
      %v597 = vunpack.c.l.b16 %v550
      %v598 = vunpack.c.l.b16 %v551
      %v599 = vpack.c.b16 %v584, %v583
      %v600 = vpack.c.b16 %v586, %v585
      %v601 = vpack.c.b16 %v588, %v587
      %v602 = vpack.c.b16 %v590, %v589
      %v603 = vpack.c.b16 %v592, %v591
      %v604 = vpack.c.b16 %v594, %v593
      %v605 = vpack.c.b16 %v596, %v595
      %v606 = vpack.c.b16 %v598, %v597
      %615 = vmatprep.subr.bf16.mxu0 0
      %616 = vmatpush1.bf16.msra.mxu0 %v606
      %617 = vmatprep.subr.bf16.mxu0 0
      %618 = vmatpush1.bf16.msra.mxu0 %v605
      %619 = vmatprep.subr.bf16.mxu0 0
      %620 = vmatpush1.bf16.msra.mxu0 %v604
      %621 = vmatprep.subr.bf16.mxu0 0
      %622 = vmatpush1.bf16.msra.mxu0 %v603
      %623 = vmatprep.subr.bf16.mxu0 0
      %624 = vmatpush1.bf16.msra.mxu0 %v602
      %625 = vmatprep.subr.bf16.mxu0 0
      %626 = vmatpush1.bf16.msra.mxu0 %v601
      %627 = vmatprep.subr.bf16.mxu0 0
      %628 = vmatpush1.bf16.msra.mxu0 %v600
      %629 = vmatprep.subr.bf16.mxu0 0
      %630 = vmatpush1.bf16.msra.mxu0 %v599
      %631 = vmatprep.subr.bf16.mxu0 0
      %632 = vmatpush2.bf16.msra.mxu0 0
      %633 = vmatprep.subr.bf16.mxu0 0
      %634 = vmatpush2.bf16.msra.mxu0 0
      %635 = vmatprep.subr.bf16.mxu0 0
      %636 = vmatpush2.bf16.msra.mxu0 0
      %637 = vmatprep.subr.bf16.mxu0 0
      %638 = vmatpush2.bf16.msra.mxu0 0
      %639 = vmatprep.subr.bf16.mxu0 0
      %640 = vmatpush2.bf16.msra.mxu0 0
      %641 = vmatprep.subr.bf16.mxu0 0
      %642 = vmatpush2.bf16.msra.mxu0 0
      %643 = vmatprep.subr.bf16.mxu0 0
      %644 = vmatpush2.bf16.msra.mxu0 0
      %645 = vmatprep.subr.bf16.mxu0 0
      %646 = vmatpush2.bf16.msra.mxu0 0
      %647 = vmatprep.mubr.bf16.mxu0 0
      %648 = vmatmul.mubr.bf16.gmra.mxu0 %v555
      %v649 = vpop.f32.mrf.mxu0
      %v650 = vadd.f32 0.0, %v649
      %v651 = vpop.f32.mrf.mxu0
      %v652 = vpop.f32.mrf.mxu0
      %v653 = vadd.f32 0.0, %v652
      %v654 = vpop.f32.mrf.mxu0
      %655 = vmatprep.mubr.bf16.mxu0 0
      %656 = vmatmul.mubr.bf16.gmra.mxu0 %v557
      %v657 = vpop.f32.mrf.mxu0
      %v658 = vadd.f32 0.0, %v657
      %v659 = vpop.f32.mrf.mxu0
      %v660 = vpop.f32.mrf.mxu0
      %v661 = vadd.f32 0.0, %v660
      %v662 = vpop.f32.mrf.mxu0
      %663 = vmatprep.mubr.bf16.mxu0 0
      %664 = vmatmul.mubr.bf16.gmra.mxu0 %v559
      %v665 = vpop.f32.mrf.mxu0
      %v666 = vadd.f32 0.0, %v665
      %v667 = vpop.f32.mrf.mxu0
      %v668 = vpop.f32.mrf.mxu0
      %v669 = vadd.f32 0.0, %v668
      %v670 = vpop.f32.mrf.mxu0
      %671 = vmatprep.mubr.bf16.mxu0 0
      %672 = vmatmul.mubr.bf16.gmra.mxu0 %v561
      %v673 = vpop.f32.mrf.mxu0
      %v674 = vadd.f32 0.0, %v673
      %v675 = vpop.f32.mrf.mxu0
      %v676 = vpop.f32.mrf.mxu0
      %v677 = vadd.f32 0.0, %v676
      %v678 = vpop.f32.mrf.mxu0
      %679 = vmatprep.mubr.bf16.mxu0 0
      %680 = vmatmul.mubr.bf16.gmra.mxu0 %v560
      %v681 = vpop.f32.mrf.mxu0
      %v682 = vadd.f32 0.0, %v681
      %v683 = vpop.f32.mrf.mxu0
      %v684 = vpop.f32.mrf.mxu0
      %v685 = vadd.f32 0.0, %v684
      %v686 = vpop.f32.mrf.mxu0
      %687 = vdwg.mxu0
      %v688 = vadd.f32 %v497, %v650
      %v689 = vadd.f32 %v500, %v653
      %v690 = vadd.f32 %v505, %v658
      %v691 = vadd.f32 %v508, %v661
      %v692 = vadd.f32 %v513, %v666
      %v693 = vadd.f32 %v516, %v669
      %v694 = vadd.f32 %v521, %v674
      %v695 = vadd.f32 %v524, %v677
      %v696 = vadd.f32 %v529, %v682
      %v697 = vadd.f32 %v532, %v685
      %s698 = scalar_lea.vmem %s1, 192
      %v699 = vld [vmem:[%s698] sm:$0xf]
      %v700 = vld [vmem:[%s698 + $0x4] sm:$0xf]
      %v701 = vld [vmem:[%s698 + $0x8] sm:$0xf]
      %v702 = vld [vmem:[%s698 + $0xc] sm:$0xf]
      %v703 = vld [vmem:[%s698 + $0x10] sm:$0xf]
      %v704 = vld [vmem:[%s698 + $0x14] sm:$0xf]
      %v705 = vld [vmem:[%s698 + $0x18] sm:$0xf]
      %v706 = vld [vmem:[%s698 + $0x1c] sm:$0xf]
      %v707 = vld [vmem:[%s698 + $0x20] sm:$0xf]
      %v708 = vld [vmem:[%s698 + $0x24] sm:$0xf]
      %v709 = vld [vmem:[%s698 + $0x28] sm:$0xf]
      %v710 = vld [vmem:[%s698 + $0x2c] sm:$0xf]
      %v711 = vld [vmem:[%s698 + $0x30] sm:$0xf]
      %v712 = vld [vmem:[%s698 + $0x34] sm:$0xf]
      %v713 = vld [vmem:[%s698 + $0x38] sm:$0xf]
      %v714 = vld [vmem:[%s698 + $0x3c] sm:$0xf]
      %v716 = vunpack.c.l.b16 %v182
      %v717 = vpack.c.b16 %v230, %v229
      %v718 = vpack.c.b16 %v232, %v231
      %v719 = vpack.c.b16 %v234, %v233
      %v720 = vpack.c.b16 %v236, %v235
      %v721 = vpack.c.b16 %v716, %v237
      %v722 = vrot.slane %v717, 1
      %v723 = vrot.slane %v718, 1
      %v724 = vsel %vm552, %v722, %v723
      %v725 = vrot.slane %v719, 1
      %v726 = vsel %vm552, %v723, %v725
      %v727 = vrot.slane %v720, 1
      %v728 = vsel %vm552, %v725, %v727
      %v729 = vrot.slane %v721, 1
      %v730 = vsel %vm552, %v727, %v729
      %v752 = vunpack.c.l.b16 %v699
      %v753 = vunpack.c.l.b16 %v700
      %v754 = vunpack.c.l.b16 %v701
      %v755 = vunpack.c.l.b16 %v702
      %v756 = vunpack.c.l.b16 %v703
      %v757 = vunpack.c.l.b16 %v704
      %v758 = vunpack.c.l.b16 %v705
      %v759 = vunpack.c.l.b16 %v706
      %v760 = vunpack.c.l.b16 %v707
      %v761 = vunpack.c.l.b16 %v708
      %v762 = vunpack.c.l.b16 %v709
      %v763 = vunpack.c.l.b16 %v710
      %v764 = vunpack.c.l.b16 %v711
      %v765 = vunpack.c.l.b16 %v712
      %v766 = vunpack.c.l.b16 %v713
      %v767 = vunpack.c.l.b16 %v714
      %v768 = vpack.c.b16 %v753, %v752
      %v769 = vpack.c.b16 %v755, %v754
      %v770 = vpack.c.b16 %v757, %v756
      %v771 = vpack.c.b16 %v759, %v758
      %v772 = vpack.c.b16 %v761, %v760
      %v773 = vpack.c.b16 %v763, %v762
      %v774 = vpack.c.b16 %v765, %v764
      %v775 = vpack.c.b16 %v767, %v766
      %784 = vmatprep.subr.bf16.mxu0 0
      %785 = vmatpush1.bf16.msra.mxu0 %v775
      %786 = vmatprep.subr.bf16.mxu0 0
      %787 = vmatpush1.bf16.msra.mxu0 %v774
      %788 = vmatprep.subr.bf16.mxu0 0
      %789 = vmatpush1.bf16.msra.mxu0 %v773
      %790 = vmatprep.subr.bf16.mxu0 0
      %791 = vmatpush1.bf16.msra.mxu0 %v772
      %792 = vmatprep.subr.bf16.mxu0 0
      %793 = vmatpush1.bf16.msra.mxu0 %v771
      %794 = vmatprep.subr.bf16.mxu0 0
      %795 = vmatpush1.bf16.msra.mxu0 %v770
      %796 = vmatprep.subr.bf16.mxu0 0
      %797 = vmatpush1.bf16.msra.mxu0 %v769
      %798 = vmatprep.subr.bf16.mxu0 0
      %799 = vmatpush1.bf16.msra.mxu0 %v768
      %800 = vmatprep.subr.bf16.mxu0 0
      %801 = vmatpush2.bf16.msra.mxu0 0
      %802 = vmatprep.subr.bf16.mxu0 0
      %803 = vmatpush2.bf16.msra.mxu0 0
      %804 = vmatprep.subr.bf16.mxu0 0
      %805 = vmatpush2.bf16.msra.mxu0 0
      %806 = vmatprep.subr.bf16.mxu0 0
      %807 = vmatpush2.bf16.msra.mxu0 0
      %808 = vmatprep.subr.bf16.mxu0 0
      %809 = vmatpush2.bf16.msra.mxu0 0
      %810 = vmatprep.subr.bf16.mxu0 0
      %811 = vmatpush2.bf16.msra.mxu0 0
      %812 = vmatprep.subr.bf16.mxu0 0
      %813 = vmatpush2.bf16.msra.mxu0 0
      %814 = vmatprep.subr.bf16.mxu0 0
      %815 = vmatpush2.bf16.msra.mxu0 0
      %816 = vmatprep.mubr.bf16.mxu0 0
      %817 = vmatmul.mubr.bf16.gmra.mxu0 %v724
      %v818 = vpop.f32.mrf.mxu0
      %v819 = vadd.f32 0.0, %v818
      %v820 = vpop.f32.mrf.mxu0
      %v821 = vpop.f32.mrf.mxu0
      %v822 = vadd.f32 0.0, %v821
      %v823 = vpop.f32.mrf.mxu0
      %824 = vmatprep.mubr.bf16.mxu0 0
      %825 = vmatmul.mubr.bf16.gmra.mxu0 %v726
      %v826 = vpop.f32.mrf.mxu0
      %v827 = vadd.f32 0.0, %v826
      %v828 = vpop.f32.mrf.mxu0
      %v829 = vpop.f32.mrf.mxu0
      %v830 = vadd.f32 0.0, %v829
      %v831 = vpop.f32.mrf.mxu0
      %832 = vmatprep.mubr.bf16.mxu0 0
      %833 = vmatmul.mubr.bf16.gmra.mxu0 %v728
      %v834 = vpop.f32.mrf.mxu0
      %v835 = vadd.f32 0.0, %v834
      %v836 = vpop.f32.mrf.mxu0
      %v837 = vpop.f32.mrf.mxu0
      %v838 = vadd.f32 0.0, %v837
      %v839 = vpop.f32.mrf.mxu0
      %840 = vmatprep.mubr.bf16.mxu0 0
      %841 = vmatmul.mubr.bf16.gmra.mxu0 %v730
      %v842 = vpop.f32.mrf.mxu0
      %v843 = vadd.f32 0.0, %v842
      %v844 = vpop.f32.mrf.mxu0
      %v845 = vpop.f32.mrf.mxu0
      %v846 = vadd.f32 0.0, %v845
      %v847 = vpop.f32.mrf.mxu0
      %848 = vmatprep.mubr.bf16.mxu0 0
      %849 = vmatmul.mubr.bf16.gmra.mxu0 %v729
      %v850 = vpop.f32.mrf.mxu0
      %v851 = vadd.f32 0.0, %v850
      %v852 = vpop.f32.mrf.mxu0
      %v853 = vpop.f32.mrf.mxu0
      %v854 = vadd.f32 0.0, %v853
      %v855 = vpop.f32.mrf.mxu0
      %856 = vdwg.mxu0
      %v857 = vadd.f32 %v688, %v819
      %v858 = vadd.f32 %v689, %v822
      %v859 = vadd.f32 %v690, %v827
      %v860 = vadd.f32 %v691, %v830
      %v861 = vadd.f32 %v692, %v835
      %v862 = vadd.f32 %v693, %v838
      %v863 = vadd.f32 %v694, %v843
      %v864 = vadd.f32 %v695, %v846
      %v865 = vadd.f32 %v696, %v851
      %v866 = vadd.f32 %v697, %v854
      %s867 = scalar_lea.vmem %s1, 256
      %v868 = vld [vmem:[%s867] sm:$0xf]
      %v869 = vld [vmem:[%s867 + $0x4] sm:$0xf]
      %v870 = vld [vmem:[%s867 + $0x8] sm:$0xf]
      %v871 = vld [vmem:[%s867 + $0xc] sm:$0xf]
      %v872 = vld [vmem:[%s867 + $0x10] sm:$0xf]
      %v873 = vld [vmem:[%s867 + $0x14] sm:$0xf]
      %v874 = vld [vmem:[%s867 + $0x18] sm:$0xf]
      %v875 = vld [vmem:[%s867 + $0x1c] sm:$0xf]
      %v876 = vld [vmem:[%s867 + $0x20] sm:$0xf]
      %v877 = vld [vmem:[%s867 + $0x24] sm:$0xf]
      %v878 = vld [vmem:[%s867 + $0x28] sm:$0xf]
      %v879 = vld [vmem:[%s867 + $0x2c] sm:$0xf]
      %v880 = vld [vmem:[%s867 + $0x30] sm:$0xf]
      %v881 = vld [vmem:[%s867 + $0x34] sm:$0xf]
      %v882 = vld [vmem:[%s867 + $0x38] sm:$0xf]
      %v883 = vld [vmem:[%s867 + $0x3c] sm:$0xf]
      %v885 = vunpack.c.l.b16 %v183
      %v886 = vpack.c.b16 %v885, %v885
      %vm887 = vsmask.f32 6400
      %v889 = vshrl.u32 %v717, 16
      %v891 = vrot.slane %v889, 1
      %v892 = vshll.u32 %v717, 16
      %v894 = vrot.slane %v892, 2
      %v895 = vor.u32 %v891, %v894
      %v897 = vshrl.u32 %v718, 16
      %v899 = vrot.slane %v897, 1
      %v900 = vshll.u32 %v718, 16
      %v902 = vrot.slane %v900, 2
      %v903 = vor.u32 %v899, %v902
      %v904 = vsel %vm887, %v895, %v903
      %v906 = vshrl.u32 %v719, 16
      %v908 = vrot.slane %v906, 1
      %v909 = vshll.u32 %v719, 16
      %v911 = vrot.slane %v909, 2
      %v912 = vor.u32 %v908, %v911
      %v913 = vsel %vm887, %v903, %v912
      %v915 = vshrl.u32 %v720, 16
      %v917 = vrot.slane %v915, 1
      %v918 = vshll.u32 %v720, 16
      %v920 = vrot.slane %v918, 2
      %v921 = vor.u32 %v917, %v920
      %v922 = vsel %vm887, %v912, %v921
      %v924 = vshrl.u32 %v721, 16
      %v926 = vrot.slane %v924, 1
      %v927 = vshll.u32 %v721, 16
      %v929 = vrot.slane %v927, 2
      %v930 = vor.u32 %v926, %v929
      %v931 = vsel %vm887, %v921, %v930
      %v933 = vshll.u32 %v886, 16
      %v935 = vrot.slane %v933, 2
      %v936 = vsel %vm887, %v930, %v935
      %v958 = vunpack.c.l.b16 %v868
      %v959 = vunpack.c.l.b16 %v869
      %v960 = vunpack.c.l.b16 %v870
      %v961 = vunpack.c.l.b16 %v871
      %v962 = vunpack.c.l.b16 %v872
      %v963 = vunpack.c.l.b16 %v873
      %v964 = vunpack.c.l.b16 %v874
      %v965 = vunpack.c.l.b16 %v875
      %v966 = vunpack.c.l.b16 %v876
      %v967 = vunpack.c.l.b16 %v877
      %v968 = vunpack.c.l.b16 %v878
      %v969 = vunpack.c.l.b16 %v879
      %v970 = vunpack.c.l.b16 %v880
      %v971 = vunpack.c.l.b16 %v881
      %v972 = vunpack.c.l.b16 %v882
      %v973 = vunpack.c.l.b16 %v883
      %v974 = vpack.c.b16 %v959, %v958
      %v975 = vpack.c.b16 %v961, %v960
      %v976 = vpack.c.b16 %v963, %v962
      %v977 = vpack.c.b16 %v965, %v964
      %v978 = vpack.c.b16 %v967, %v966
      %v979 = vpack.c.b16 %v969, %v968
      %v980 = vpack.c.b16 %v971, %v970
      %v981 = vpack.c.b16 %v973, %v972
      %990 = vmatprep.subr.bf16.mxu0 0
      %991 = vmatpush1.bf16.msra.mxu0 %v981
      %992 = vmatprep.subr.bf16.mxu0 0
      %993 = vmatpush1.bf16.msra.mxu0 %v980
      %994 = vmatprep.subr.bf16.mxu0 0
      %995 = vmatpush1.bf16.msra.mxu0 %v979
      %996 = vmatprep.subr.bf16.mxu0 0
      %997 = vmatpush1.bf16.msra.mxu0 %v978
      %998 = vmatprep.subr.bf16.mxu0 0
      %999 = vmatpush1.bf16.msra.mxu0 %v977
      %1000 = vmatprep.subr.bf16.mxu0 0
      %1001 = vmatpush1.bf16.msra.mxu0 %v976
      %1002 = vmatprep.subr.bf16.mxu0 0
      %1003 = vmatpush1.bf16.msra.mxu0 %v975
      %1004 = vmatprep.subr.bf16.mxu0 0
      %1005 = vmatpush1.bf16.msra.mxu0 %v974
      %1006 = vmatprep.subr.bf16.mxu0 0
      %1007 = vmatpush2.bf16.msra.mxu0 0
      %1008 = vmatprep.subr.bf16.mxu0 0
      %1009 = vmatpush2.bf16.msra.mxu0 0
      %1010 = vmatprep.subr.bf16.mxu0 0
      %1011 = vmatpush2.bf16.msra.mxu0 0
      %1012 = vmatprep.subr.bf16.mxu0 0
      %1013 = vmatpush2.bf16.msra.mxu0 0
      %1014 = vmatprep.subr.bf16.mxu0 0
      %1015 = vmatpush2.bf16.msra.mxu0 0
      %1016 = vmatprep.subr.bf16.mxu0 0
      %1017 = vmatpush2.bf16.msra.mxu0 0
      %1018 = vmatprep.subr.bf16.mxu0 0
      %1019 = vmatpush2.bf16.msra.mxu0 0
      %1020 = vmatprep.subr.bf16.mxu0 0
      %1021 = vmatpush2.bf16.msra.mxu0 0
      %1022 = vmatprep.mubr.bf16.mxu0 0
      %1023 = vmatmul.mubr.bf16.gmra.mxu0 %v904
      %v1024 = vpop.f32.mrf.mxu0
      %v1025 = vadd.f32 0.0, %v1024
      %v1026 = vpop.f32.mrf.mxu0
      %v1027 = vpop.f32.mrf.mxu0
      %v1028 = vadd.f32 0.0, %v1027
      %v1029 = vpop.f32.mrf.mxu0
      %1030 = vmatprep.mubr.bf16.mxu0 0
      %1031 = vmatmul.mubr.bf16.gmra.mxu0 %v913
      %v1032 = vpop.f32.mrf.mxu0
      %v1033 = vadd.f32 0.0, %v1032
      %v1034 = vpop.f32.mrf.mxu0
      %v1035 = vpop.f32.mrf.mxu0
      %v1036 = vadd.f32 0.0, %v1035
      %v1037 = vpop.f32.mrf.mxu0
      %1038 = vmatprep.mubr.bf16.mxu0 0
      %1039 = vmatmul.mubr.bf16.gmra.mxu0 %v922
      %v1040 = vpop.f32.mrf.mxu0
      %v1041 = vadd.f32 0.0, %v1040
      %v1042 = vpop.f32.mrf.mxu0
      %v1043 = vpop.f32.mrf.mxu0
      %v1044 = vadd.f32 0.0, %v1043
      %v1045 = vpop.f32.mrf.mxu0
      %1046 = vmatprep.mubr.bf16.mxu0 0
      %1047 = vmatmul.mubr.bf16.gmra.mxu0 %v931
      %v1048 = vpop.f32.mrf.mxu0
      %v1049 = vadd.f32 0.0, %v1048
      %v1050 = vpop.f32.mrf.mxu0
      %v1051 = vpop.f32.mrf.mxu0
      %v1052 = vadd.f32 0.0, %v1051
      %v1053 = vpop.f32.mrf.mxu0
      %1054 = vmatprep.mubr.bf16.mxu0 0
      %1055 = vmatmul.mubr.bf16.gmra.mxu0 %v936
      %v1056 = vpop.f32.mrf.mxu0
      %v1057 = vadd.f32 0.0, %v1056
      %v1058 = vpop.f32.mrf.mxu0
      %v1059 = vpop.f32.mrf.mxu0
      %v1060 = vadd.f32 0.0, %v1059
      %v1061 = vpop.f32.mrf.mxu0
      %1062 = vdwg.mxu0
      %v1063 = vadd.f32 %v857, %v1025
      %v1064 = vadd.f32 %v858, %v1028
      %v1065 = vadd.f32 %v859, %v1033
      %v1066 = vadd.f32 %v860, %v1036
      %v1067 = vadd.f32 %v861, %v1041
      %v1068 = vadd.f32 %v862, %v1044
      %v1069 = vadd.f32 %v863, %v1049
      %v1070 = vadd.f32 %v864, %v1052
      %v1071 = vadd.f32 %v865, %v1057
      %v1072 = vadd.f32 %v866, %v1060
      %s1073 = scalar_lea.vmem %s1, 320
      %v1074 = vld [vmem:[%s1073] sm:$0xf]
      %v1075 = vld [vmem:[%s1073 + $0x4] sm:$0xf]
      %v1076 = vld [vmem:[%s1073 + $0x8] sm:$0xf]
      %v1077 = vld [vmem:[%s1073 + $0xc] sm:$0xf]
      %v1078 = vld [vmem:[%s1073 + $0x10] sm:$0xf]
      %v1079 = vld [vmem:[%s1073 + $0x14] sm:$0xf]
      %v1080 = vld [vmem:[%s1073 + $0x18] sm:$0xf]
      %v1081 = vld [vmem:[%s1073 + $0x1c] sm:$0xf]
      %v1082 = vld [vmem:[%s1073 + $0x20] sm:$0xf]
      %v1083 = vld [vmem:[%s1073 + $0x24] sm:$0xf]
      %v1084 = vld [vmem:[%s1073 + $0x28] sm:$0xf]
      %v1085 = vld [vmem:[%s1073 + $0x2c] sm:$0xf]
      %v1086 = vld [vmem:[%s1073 + $0x30] sm:$0xf]
      %v1087 = vld [vmem:[%s1073 + $0x34] sm:$0xf]
      %v1088 = vld [vmem:[%s1073 + $0x38] sm:$0xf]
      %v1089 = vld [vmem:[%s1073 + $0x3c] sm:$0xf]
      %vm1090 = vcmask 1045504
      %v1091 = vrot.slane %v717, 2
      %v1092 = vrot.slane %v718, 2
      %v1093 = vsel %vm1090, %v1091, %v1092
      %v1094 = vrot.slane %v719, 2
      %v1095 = vsel %vm1090, %v1092, %v1094
      %v1096 = vrot.slane %v720, 2
      %v1097 = vsel %vm1090, %v1094, %v1096
      %v1098 = vrot.slane %v721, 2
      %v1099 = vsel %vm1090, %v1096, %v1098
      %v1100 = vrot.slane %v886, 2
      %v1101 = vsel %vm1090, %v1098, %v1100
      %v1123 = vunpack.c.l.b16 %v1074
      %v1124 = vunpack.c.l.b16 %v1075
      %v1125 = vunpack.c.l.b16 %v1076
      %v1126 = vunpack.c.l.b16 %v1077
      %v1127 = vunpack.c.l.b16 %v1078
      %v1128 = vunpack.c.l.b16 %v1079
      %v1129 = vunpack.c.l.b16 %v1080
      %v1130 = vunpack.c.l.b16 %v1081
      %v1131 = vunpack.c.l.b16 %v1082
      %v1132 = vunpack.c.l.b16 %v1083
      %v1133 = vunpack.c.l.b16 %v1084
      %v1134 = vunpack.c.l.b16 %v1085
      %v1135 = vunpack.c.l.b16 %v1086
      %v1136 = vunpack.c.l.b16 %v1087
      %v1137 = vunpack.c.l.b16 %v1088
      %v1138 = vunpack.c.l.b16 %v1089
      %v1139 = vpack.c.b16 %v1124, %v1123
      %v1140 = vpack.c.b16 %v1126, %v1125
      %v1141 = vpack.c.b16 %v1128, %v1127
      %v1142 = vpack.c.b16 %v1130, %v1129
      %v1143 = vpack.c.b16 %v1132, %v1131
      %v1144 = vpack.c.b16 %v1134, %v1133
      %v1145 = vpack.c.b16 %v1136, %v1135
      %v1146 = vpack.c.b16 %v1138, %v1137
      %1155 = vmatprep.subr.bf16.mxu0 0
      %1156 = vmatpush1.bf16.msra.mxu0 %v1146
      %1157 = vmatprep.subr.bf16.mxu0 0
      %1158 = vmatpush1.bf16.msra.mxu0 %v1145
      %1159 = vmatprep.subr.bf16.mxu0 0
      %1160 = vmatpush1.bf16.msra.mxu0 %v1144
      %1161 = vmatprep.subr.bf16.mxu0 0
      %1162 = vmatpush1.bf16.msra.mxu0 %v1143
      %1163 = vmatprep.subr.bf16.mxu0 0
      %1164 = vmatpush1.bf16.msra.mxu0 %v1142
      %1165 = vmatprep.subr.bf16.mxu0 0
      %1166 = vmatpush1.bf16.msra.mxu0 %v1141
      %1167 = vmatprep.subr.bf16.mxu0 0
      %1168 = vmatpush1.bf16.msra.mxu0 %v1140
      %1169 = vmatprep.subr.bf16.mxu0 0
      %1170 = vmatpush1.bf16.msra.mxu0 %v1139
      %1171 = vmatprep.subr.bf16.mxu0 0
      %1172 = vmatpush2.bf16.msra.mxu0 0
      %1173 = vmatprep.subr.bf16.mxu0 0
      %1174 = vmatpush2.bf16.msra.mxu0 0
      %1175 = vmatprep.subr.bf16.mxu0 0
      %1176 = vmatpush2.bf16.msra.mxu0 0
      %1177 = vmatprep.subr.bf16.mxu0 0
      %1178 = vmatpush2.bf16.msra.mxu0 0
      %1179 = vmatprep.subr.bf16.mxu0 0
      %1180 = vmatpush2.bf16.msra.mxu0 0
      %1181 = vmatprep.subr.bf16.mxu0 0
      %1182 = vmatpush2.bf16.msra.mxu0 0
      %1183 = vmatprep.subr.bf16.mxu0 0
      %1184 = vmatpush2.bf16.msra.mxu0 0
      %1185 = vmatprep.subr.bf16.mxu0 0
      %1186 = vmatpush2.bf16.msra.mxu0 0
      %1187 = vmatprep.mubr.bf16.mxu0 0
      %1188 = vmatmul.mubr.bf16.gmra.mxu0 %v1093
      %v1189 = vpop.f32.mrf.mxu0
      %v1190 = vadd.f32 0.0, %v1189
      %v1191 = vpop.f32.mrf.mxu0
      %v1192 = vpop.f32.mrf.mxu0
      %v1193 = vadd.f32 0.0, %v1192
      %v1194 = vpop.f32.mrf.mxu0
      %1195 = vmatprep.mubr.bf16.mxu0 0
      %1196 = vmatmul.mubr.bf16.gmra.mxu0 %v1095
      %v1197 = vpop.f32.mrf.mxu0
      %v1198 = vadd.f32 0.0, %v1197
      %v1199 = vpop.f32.mrf.mxu0
      %v1200 = vpop.f32.mrf.mxu0
      %v1201 = vadd.f32 0.0, %v1200
      %v1202 = vpop.f32.mrf.mxu0
      %1203 = vmatprep.mubr.bf16.mxu0 0
      %1204 = vmatmul.mubr.bf16.gmra.mxu0 %v1097
      %v1205 = vpop.f32.mrf.mxu0
      %v1206 = vadd.f32 0.0, %v1205
      %v1207 = vpop.f32.mrf.mxu0
      %v1208 = vpop.f32.mrf.mxu0
      %v1209 = vadd.f32 0.0, %v1208
      %v1210 = vpop.f32.mrf.mxu0
      %1211 = vmatprep.mubr.bf16.mxu0 0
      %1212 = vmatmul.mubr.bf16.gmra.mxu0 %v1099
      %v1213 = vpop.f32.mrf.mxu0
      %v1214 = vadd.f32 0.0, %v1213
      %v1215 = vpop.f32.mrf.mxu0
      %v1216 = vpop.f32.mrf.mxu0
      %v1217 = vadd.f32 0.0, %v1216
      %v1218 = vpop.f32.mrf.mxu0
      %1219 = vmatprep.mubr.bf16.mxu0 0
      %1220 = vmatmul.mubr.bf16.gmra.mxu0 %v1101
      %v1221 = vpop.f32.mrf.mxu0
      %v1222 = vadd.f32 0.0, %v1221
      %v1223 = vpop.f32.mrf.mxu0
      %v1224 = vpop.f32.mrf.mxu0
      %v1225 = vadd.f32 0.0, %v1224
      %v1226 = vpop.f32.mrf.mxu0
      %1227 = vdwg.mxu0
      %v1228 = vadd.f32 %v1063, %v1190
      %v1229 = vadd.f32 %v1064, %v1193
      %v1230 = vadd.f32 %v1065, %v1198
      %v1231 = vadd.f32 %v1066, %v1201
      %v1232 = vadd.f32 %v1067, %v1206
      %v1233 = vadd.f32 %v1068, %v1209
      %v1234 = vadd.f32 %v1069, %v1214
      %v1235 = vadd.f32 %v1070, %v1217
      %v1236 = vadd.f32 %v1071, %v1222
      %v1237 = vadd.f32 %v1072, %v1225
      %s1238 = scalar_lea.vmem %s1, 384
      %v1239 = vld [vmem:[%s1238] sm:$0xf]
      %v1240 = vld [vmem:[%s1238 + $0x4] sm:$0xf]
      %v1241 = vld [vmem:[%s1238 + $0x8] sm:$0xf]
      %v1242 = vld [vmem:[%s1238 + $0xc] sm:$0xf]
      %v1243 = vld [vmem:[%s1238 + $0x10] sm:$0xf]
      %v1244 = vld [vmem:[%s1238 + $0x14] sm:$0xf]
      %v1245 = vld [vmem:[%s1238 + $0x18] sm:$0xf]
      %v1246 = vld [vmem:[%s1238 + $0x1c] sm:$0xf]
      %v1247 = vld [vmem:[%s1238 + $0x20] sm:$0xf]
      %v1248 = vld [vmem:[%s1238 + $0x24] sm:$0xf]
      %v1249 = vld [vmem:[%s1238 + $0x28] sm:$0xf]
      %v1250 = vld [vmem:[%s1238 + $0x2c] sm:$0xf]
      %v1251 = vld [vmem:[%s1238 + $0x30] sm:$0xf]
      %v1252 = vld [vmem:[%s1238 + $0x34] sm:$0xf]
      %v1253 = vld [vmem:[%s1238 + $0x38] sm:$0xf]
      %v1254 = vld [vmem:[%s1238 + $0x3c] sm:$0xf]
      %v1256 = vunpack.c.l.b16 %v184
      %v1257 = vpack.c.b16 %v885, %v716
      %v1258 = vpack.c.b16 %v1256, %v1256
      %v1259 = vrot.slane %v239, 2
      %v1260 = vrot.slane %v240, 2
      %v1261 = vsel %vm1090, %v1259, %v1260
      %v1262 = vrot.slane %v241, 2
      %v1263 = vsel %vm1090, %v1260, %v1262
      %v1264 = vrot.slane %v242, 2
      %v1265 = vsel %vm1090, %v1262, %v1264
      %v1266 = vrot.slane %v1257, 2
      %v1267 = vsel %vm1090, %v1264, %v1266
      %v1268 = vrot.slane %v1258, 2
      %v1269 = vsel %vm1090, %v1266, %v1268
      %v1291 = vunpack.c.l.b16 %v1239
      %v1292 = vunpack.c.l.b16 %v1240
      %v1293 = vunpack.c.l.b16 %v1241
      %v1294 = vunpack.c.l.b16 %v1242
      %v1295 = vunpack.c.l.b16 %v1243
      %v1296 = vunpack.c.l.b16 %v1244
      %v1297 = vunpack.c.l.b16 %v1245
      %v1298 = vunpack.c.l.b16 %v1246
      %v1299 = vunpack.c.l.b16 %v1247
      %v1300 = vunpack.c.l.b16 %v1248
      %v1301 = vunpack.c.l.b16 %v1249
      %v1302 = vunpack.c.l.b16 %v1250
      %v1303 = vunpack.c.l.b16 %v1251
      %v1304 = vunpack.c.l.b16 %v1252
      %v1305 = vunpack.c.l.b16 %v1253
      %v1306 = vunpack.c.l.b16 %v1254
      %v1307 = vpack.c.b16 %v1292, %v1291
      %v1308 = vpack.c.b16 %v1294, %v1293
      %v1309 = vpack.c.b16 %v1296, %v1295
      %v1310 = vpack.c.b16 %v1298, %v1297
      %v1311 = vpack.c.b16 %v1300, %v1299
      %v1312 = vpack.c.b16 %v1302, %v1301
      %v1313 = vpack.c.b16 %v1304, %v1303
      %v1314 = vpack.c.b16 %v1306, %v1305
      %1323 = vmatprep.subr.bf16.mxu0 0
      %1324 = vmatpush1.bf16.msra.mxu0 %v1314
      %1325 = vmatprep.subr.bf16.mxu0 0
      %1326 = vmatpush1.bf16.msra.mxu0 %v1313
      %1327 = vmatprep.subr.bf16.mxu0 0
      %1328 = vmatpush1.bf16.msra.mxu0 %v1312
      %1329 = vmatprep.subr.bf16.mxu0 0
      %1330 = vmatpush1.bf16.msra.mxu0 %v1311
      %1331 = vmatprep.subr.bf16.mxu0 0
      %1332 = vmatpush1.bf16.msra.mxu0 %v1310
      %1333 = vmatprep.subr.bf16.mxu0 0
      %1334 = vmatpush1.bf16.msra.mxu0 %v1309
      %1335 = vmatprep.subr.bf16.mxu0 0
      %1336 = vmatpush1.bf16.msra.mxu0 %v1308
      %1337 = vmatprep.subr.bf16.mxu0 0
      %1338 = vmatpush1.bf16.msra.mxu0 %v1307
      %1339 = vmatprep.subr.bf16.mxu0 0
      %1340 = vmatpush2.bf16.msra.mxu0 0
      %1341 = vmatprep.subr.bf16.mxu0 0
      %1342 = vmatpush2.bf16.msra.mxu0 0
      %1343 = vmatprep.subr.bf16.mxu0 0
      %1344 = vmatpush2.bf16.msra.mxu0 0
      %1345 = vmatprep.subr.bf16.mxu0 0
      %1346 = vmatpush2.bf16.msra.mxu0 0
      %1347 = vmatprep.subr.bf16.mxu0 0
      %1348 = vmatpush2.bf16.msra.mxu0 0
      %1349 = vmatprep.subr.bf16.mxu0 0
      %1350 = vmatpush2.bf16.msra.mxu0 0
      %1351 = vmatprep.subr.bf16.mxu0 0
      %1352 = vmatpush2.bf16.msra.mxu0 0
      %1353 = vmatprep.subr.bf16.mxu0 0
      %1354 = vmatpush2.bf16.msra.mxu0 0
      %1355 = vmatprep.mubr.bf16.mxu0 0
      %1356 = vmatmul.mubr.bf16.gmra.mxu0 %v1261
      %v1357 = vpop.f32.mrf.mxu0
      %v1358 = vadd.f32 0.0, %v1357
      %v1359 = vpop.f32.mrf.mxu0
      %v1360 = vpop.f32.mrf.mxu0
      %v1361 = vadd.f32 0.0, %v1360
      %v1362 = vpop.f32.mrf.mxu0
      %1363 = vmatprep.mubr.bf16.mxu0 0
      %1364 = vmatmul.mubr.bf16.gmra.mxu0 %v1263
      %v1365 = vpop.f32.mrf.mxu0
      %v1366 = vadd.f32 0.0, %v1365
      %v1367 = vpop.f32.mrf.mxu0
      %v1368 = vpop.f32.mrf.mxu0
      %v1369 = vadd.f32 0.0, %v1368
      %v1370 = vpop.f32.mrf.mxu0
      %1371 = vmatprep.mubr.bf16.mxu0 0
      %1372 = vmatmul.mubr.bf16.gmra.mxu0 %v1265
      %v1373 = vpop.f32.mrf.mxu0
      %v1374 = vadd.f32 0.0, %v1373
      %v1375 = vpop.f32.mrf.mxu0
      %v1376 = vpop.f32.mrf.mxu0
      %v1377 = vadd.f32 0.0, %v1376
      %v1378 = vpop.f32.mrf.mxu0
      %1379 = vmatprep.mubr.bf16.mxu0 0
      %1380 = vmatmul.mubr.bf16.gmra.mxu0 %v1267
      %v1381 = vpop.f32.mrf.mxu0
      %v1382 = vadd.f32 0.0, %v1381
      %v1383 = vpop.f32.mrf.mxu0
      %v1384 = vpop.f32.mrf.mxu0
      %v1385 = vadd.f32 0.0, %v1384
      %v1386 = vpop.f32.mrf.mxu0
      %1387 = vmatprep.mubr.bf16.mxu0 0
      %1388 = vmatmul.mubr.bf16.gmra.mxu0 %v1269
      %v1389 = vpop.f32.mrf.mxu0
      %v1390 = vadd.f32 0.0, %v1389
      %v1391 = vpop.f32.mrf.mxu0
      %v1392 = vpop.f32.mrf.mxu0
      %v1393 = vadd.f32 0.0, %v1392
      %v1394 = vpop.f32.mrf.mxu0
      %1395 = vdwg.mxu0
      %v1396 = vadd.f32 %v1228, %v1358
      %v1397 = vadd.f32 %v1229, %v1361
      %v1398 = vadd.f32 %v1230, %v1366
      %v1399 = vadd.f32 %v1231, %v1369
      %v1400 = vadd.f32 %v1232, %v1374
      %v1401 = vadd.f32 %v1233, %v1377
      %v1402 = vadd.f32 %v1234, %v1382
      %v1403 = vadd.f32 %v1235, %v1385
      %v1404 = vadd.f32 %v1236, %v1390
      %v1405 = vadd.f32 %v1237, %v1393
      %s1406 = scalar_lea.vmem %s1, 448
      %v1407 = vld [vmem:[%s1406] sm:$0xf]
      %v1408 = vld [vmem:[%s1406 + $0x4] sm:$0xf]
      %v1409 = vld [vmem:[%s1406 + $0x8] sm:$0xf]
      %v1410 = vld [vmem:[%s1406 + $0xc] sm:$0xf]
      %v1411 = vld [vmem:[%s1406 + $0x10] sm:$0xf]
      %v1412 = vld [vmem:[%s1406 + $0x14] sm:$0xf]
      %v1413 = vld [vmem:[%s1406 + $0x18] sm:$0xf]
      %v1414 = vld [vmem:[%s1406 + $0x1c] sm:$0xf]
      %v1415 = vld [vmem:[%s1406 + $0x20] sm:$0xf]
      %v1416 = vld [vmem:[%s1406 + $0x24] sm:$0xf]
      %v1417 = vld [vmem:[%s1406 + $0x28] sm:$0xf]
      %v1418 = vld [vmem:[%s1406 + $0x2c] sm:$0xf]
      %v1419 = vld [vmem:[%s1406 + $0x30] sm:$0xf]
      %v1420 = vld [vmem:[%s1406 + $0x34] sm:$0xf]
      %v1421 = vld [vmem:[%s1406 + $0x38] sm:$0xf]
      %v1422 = vld [vmem:[%s1406 + $0x3c] sm:$0xf]
      %vm1423 = vsmask.f32 5376
      %v1424 = vrot.slane %v256, 2
      %v1425 = vrot.slane %v252, 3
      %v1426 = vor.u32 %v1424, %v1425
      %v1427 = vrot.slane %v264, 2
      %v1428 = vrot.slane %v260, 3
      %v1429 = vor.u32 %v1427, %v1428
      %v1430 = vsel %vm1423, %v1426, %v1429
      %v1431 = vrot.slane %v272, 2
      %v1432 = vrot.slane %v268, 3
      %v1433 = vor.u32 %v1431, %v1432
      %v1434 = vsel %vm1423, %v1429, %v1433
      %v1435 = vrot.slane %v280, 2
      %v1436 = vrot.slane %v276, 3
      %v1437 = vor.u32 %v1435, %v1436
      %v1438 = vsel %vm1423, %v1433, %v1437
      %v1440 = vshrl.u32 %v1257, 16
      %v1442 = vrot.slane %v1440, 2
      %v1443 = vshll.u32 %v1257, 16
      %v1445 = vrot.slane %v1443, 3
      %v1446 = vor.u32 %v1442, %v1445
      %v1447 = vsel %vm1423, %v1437, %v1446
      %v1449 = vshrl.u32 %v1258, 16
      %v1451 = vrot.slane %v1449, 2
      %v1452 = vshll.u32 %v1258, 16
      %v1454 = vrot.slane %v1452, 3
      %v1455 = vor.u32 %v1451, %v1454
      %v1456 = vsel %vm1423, %v1446, %v1455
      %v1478 = vunpack.c.l.b16 %v1407
      %v1479 = vunpack.c.l.b16 %v1408
      %v1480 = vunpack.c.l.b16 %v1409
      %v1481 = vunpack.c.l.b16 %v1410
      %v1482 = vunpack.c.l.b16 %v1411
      %v1483 = vunpack.c.l.b16 %v1412
      %v1484 = vunpack.c.l.b16 %v1413
      %v1485 = vunpack.c.l.b16 %v1414
      %v1486 = vunpack.c.l.b16 %v1415
      %v1487 = vunpack.c.l.b16 %v1416
      %v1488 = vunpack.c.l.b16 %v1417
      %v1489 = vunpack.c.l.b16 %v1418
      %v1490 = vunpack.c.l.b16 %v1419
      %v1491 = vunpack.c.l.b16 %v1420
      %v1492 = vunpack.c.l.b16 %v1421
      %v1493 = vunpack.c.l.b16 %v1422
      %v1494 = vpack.c.b16 %v1479, %v1478
      %v1495 = vpack.c.b16 %v1481, %v1480
      %v1496 = vpack.c.b16 %v1483, %v1482
      %v1497 = vpack.c.b16 %v1485, %v1484
      %v1498 = vpack.c.b16 %v1487, %v1486
      %v1499 = vpack.c.b16 %v1489, %v1488
      %v1500 = vpack.c.b16 %v1491, %v1490
      %v1501 = vpack.c.b16 %v1493, %v1492
      %1510 = vmatprep.subr.bf16.mxu0 0
      %1511 = vmatpush1.bf16.msra.mxu0 %v1501
      %1512 = vmatprep.subr.bf16.mxu0 0
      %1513 = vmatpush1.bf16.msra.mxu0 %v1500
      %1514 = vmatprep.subr.bf16.mxu0 0
      %1515 = vmatpush1.bf16.msra.mxu0 %v1499
      %1516 = vmatprep.subr.bf16.mxu0 0
      %1517 = vmatpush1.bf16.msra.mxu0 %v1498
      %1518 = vmatprep.subr.bf16.mxu0 0
      %1519 = vmatpush1.bf16.msra.mxu0 %v1497
      %1520 = vmatprep.subr.bf16.mxu0 0
      %1521 = vmatpush1.bf16.msra.mxu0 %v1496
      %1522 = vmatprep.subr.bf16.mxu0 0
      %1523 = vmatpush1.bf16.msra.mxu0 %v1495
      %1524 = vmatprep.subr.bf16.mxu0 0
      %1525 = vmatpush1.bf16.msra.mxu0 %v1494
      %1526 = vmatprep.subr.bf16.mxu0 0
      %1527 = vmatpush2.bf16.msra.mxu0 0
      %1528 = vmatprep.subr.bf16.mxu0 0
      %1529 = vmatpush2.bf16.msra.mxu0 0
      %1530 = vmatprep.subr.bf16.mxu0 0
      %1531 = vmatpush2.bf16.msra.mxu0 0
      %1532 = vmatprep.subr.bf16.mxu0 0
      %1533 = vmatpush2.bf16.msra.mxu0 0
      %1534 = vmatprep.subr.bf16.mxu0 0
      %1535 = vmatpush2.bf16.msra.mxu0 0
      %1536 = vmatprep.subr.bf16.mxu0 0
      %1537 = vmatpush2.bf16.msra.mxu0 0
      %1538 = vmatprep.subr.bf16.mxu0 0
      %1539 = vmatpush2.bf16.msra.mxu0 0
      %1540 = vmatprep.subr.bf16.mxu0 0
      %1541 = vmatpush2.bf16.msra.mxu0 0
      %1542 = vmatprep.mubr.bf16.mxu0 0
      %1543 = vmatmul.mubr.bf16.gmra.mxu0 %v1430
      %v1544 = vpop.f32.mrf.mxu0
      %v1545 = vadd.f32 0.0, %v1544
      %v1546 = vpop.f32.mrf.mxu0
      %v1547 = vpop.f32.mrf.mxu0
      %v1548 = vadd.f32 0.0, %v1547
      %v1549 = vpop.f32.mrf.mxu0
      %1550 = vmatprep.mubr.bf16.mxu0 0
      %1551 = vmatmul.mubr.bf16.gmra.mxu0 %v1434
      %v1552 = vpop.f32.mrf.mxu0
      %v1553 = vadd.f32 0.0, %v1552
      %v1554 = vpop.f32.mrf.mxu0
      %v1555 = vpop.f32.mrf.mxu0
      %v1556 = vadd.f32 0.0, %v1555
      %v1557 = vpop.f32.mrf.mxu0
      %1558 = vmatprep.mubr.bf16.mxu0 0
      %1559 = vmatmul.mubr.bf16.gmra.mxu0 %v1438
      %v1560 = vpop.f32.mrf.mxu0
      %v1561 = vadd.f32 0.0, %v1560
      %v1562 = vpop.f32.mrf.mxu0
      %v1563 = vpop.f32.mrf.mxu0
      %v1564 = vadd.f32 0.0, %v1563
      %v1565 = vpop.f32.mrf.mxu0
      %1566 = vmatprep.mubr.bf16.mxu0 0
      %1567 = vmatmul.mubr.bf16.gmra.mxu0 %v1447
      %v1568 = vpop.f32.mrf.mxu0
      %v1569 = vadd.f32 0.0, %v1568
      %v1570 = vpop.f32.mrf.mxu0
      %v1571 = vpop.f32.mrf.mxu0
      %v1572 = vadd.f32 0.0, %v1571
      %v1573 = vpop.f32.mrf.mxu0
      %1574 = vmatprep.mubr.bf16.mxu0 0
      %1575 = vmatmul.mubr.bf16.gmra.mxu0 %v1456
      %v1576 = vpop.f32.mrf.mxu0
      %v1577 = vadd.f32 0.0, %v1576
      %v1578 = vpop.f32.mrf.mxu0
      %v1579 = vpop.f32.mrf.mxu0
      %v1580 = vadd.f32 0.0, %v1579
      %v1581 = vpop.f32.mrf.mxu0
      %1582 = vdwg.mxu0
      %v1583 = vadd.f32 %v1396, %v1545
      %v1584 = vadd.f32 %v1397, %v1548
      %v1585 = vadd.f32 %v1398, %v1553
      %v1586 = vadd.f32 %v1399, %v1556
      %v1587 = vadd.f32 %v1400, %v1561
      %v1588 = vadd.f32 %v1401, %v1564
      %v1589 = vadd.f32 %v1402, %v1569
      %v1590 = vadd.f32 %v1403, %v1572
      %v1591 = vadd.f32 %v1404, %v1577
      %v1592 = vadd.f32 %v1405, %v1580
      %s1593 = scalar_lea.vmem %s1, 512
      %v1594 = vld [vmem:[%s1593] sm:$0xf]
      %v1595 = vld [vmem:[%s1593 + $0x4] sm:$0xf]
      %v1596 = vld [vmem:[%s1593 + $0x8] sm:$0xf]
      %v1597 = vld [vmem:[%s1593 + $0xc] sm:$0xf]
      %v1598 = vld [vmem:[%s1593 + $0x10] sm:$0xf]
      %v1599 = vld [vmem:[%s1593 + $0x14] sm:$0xf]
      %v1600 = vld [vmem:[%s1593 + $0x18] sm:$0xf]
      %v1601 = vld [vmem:[%s1593 + $0x1c] sm:$0xf]
      %v1602 = vld [vmem:[%s1593 + $0x20] sm:$0xf]
      %v1603 = vld [vmem:[%s1593 + $0x24] sm:$0xf]
      %v1604 = vld [vmem:[%s1593 + $0x28] sm:$0xf]
      %v1605 = vld [vmem:[%s1593 + $0x2c] sm:$0xf]
      %v1606 = vld [vmem:[%s1593 + $0x30] sm:$0xf]
      %v1607 = vld [vmem:[%s1593 + $0x34] sm:$0xf]
      %v1608 = vld [vmem:[%s1593 + $0x38] sm:$0xf]
      %v1609 = vld [vmem:[%s1593 + $0x3c] sm:$0xf]
      %vm1610 = vcmask 1044480
      %v1611 = vrot.slane %v239, 3
      %v1612 = vrot.slane %v240, 3
      %v1613 = vsel %vm1610, %v1611, %v1612
      %v1614 = vrot.slane %v241, 3
      %v1615 = vsel %vm1610, %v1612, %v1614
      %v1616 = vrot.slane %v242, 3
      %v1617 = vsel %vm1610, %v1614, %v1616
      %v1618 = vrot.slane %v1257, 3
      %v1619 = vsel %vm1610, %v1616, %v1618
      %v1620 = vrot.slane %v1258, 3
      %v1621 = vsel %vm1610, %v1618, %v1620
      %v1643 = vunpack.c.l.b16 %v1594
      %v1644 = vunpack.c.l.b16 %v1595
      %v1645 = vunpack.c.l.b16 %v1596
      %v1646 = vunpack.c.l.b16 %v1597
      %v1647 = vunpack.c.l.b16 %v1598
      %v1648 = vunpack.c.l.b16 %v1599
      %v1649 = vunpack.c.l.b16 %v1600
      %v1650 = vunpack.c.l.b16 %v1601
      %v1651 = vunpack.c.l.b16 %v1602
      %v1652 = vunpack.c.l.b16 %v1603
      %v1653 = vunpack.c.l.b16 %v1604
      %v1654 = vunpack.c.l.b16 %v1605
      %v1655 = vunpack.c.l.b16 %v1606
      %v1656 = vunpack.c.l.b16 %v1607
      %v1657 = vunpack.c.l.b16 %v1608
      %v1658 = vunpack.c.l.b16 %v1609
      %v1659 = vpack.c.b16 %v1644, %v1643
      %v1660 = vpack.c.b16 %v1646, %v1645
      %v1661 = vpack.c.b16 %v1648, %v1647
      %v1662 = vpack.c.b16 %v1650, %v1649
      %v1663 = vpack.c.b16 %v1652, %v1651
      %v1664 = vpack.c.b16 %v1654, %v1653
      %v1665 = vpack.c.b16 %v1656, %v1655
      %v1666 = vpack.c.b16 %v1658, %v1657
      %1675 = vmatprep.subr.bf16.mxu0 0
      %1676 = vmatpush1.bf16.msra.mxu0 %v1666
      %1677 = vmatprep.subr.bf16.mxu0 0
      %1678 = vmatpush1.bf16.msra.mxu0 %v1665
      %1679 = vmatprep.subr.bf16.mxu0 0
      %1680 = vmatpush1.bf16.msra.mxu0 %v1664
      %1681 = vmatprep.subr.bf16.mxu0 0
      %1682 = vmatpush1.bf16.msra.mxu0 %v1663
      %1683 = vmatprep.subr.bf16.mxu0 0
      %1684 = vmatpush1.bf16.msra.mxu0 %v1662
      %1685 = vmatprep.subr.bf16.mxu0 0
      %1686 = vmatpush1.bf16.msra.mxu0 %v1661
      %1687 = vmatprep.subr.bf16.mxu0 0
      %1688 = vmatpush1.bf16.msra.mxu0 %v1660
      %1689 = vmatprep.subr.bf16.mxu0 0
      %1690 = vmatpush1.bf16.msra.mxu0 %v1659
      %1691 = vmatprep.subr.bf16.mxu0 0
      %1692 = vmatpush2.bf16.msra.mxu0 0
      %1693 = vmatprep.subr.bf16.mxu0 0
      %1694 = vmatpush2.bf16.msra.mxu0 0
      %1695 = vmatprep.subr.bf16.mxu0 0
      %1696 = vmatpush2.bf16.msra.mxu0 0
      %1697 = vmatprep.subr.bf16.mxu0 0
      %1698 = vmatpush2.bf16.msra.mxu0 0
      %1699 = vmatprep.subr.bf16.mxu0 0
      %1700 = vmatpush2.bf16.msra.mxu0 0
      %1701 = vmatprep.subr.bf16.mxu0 0
      %1702 = vmatpush2.bf16.msra.mxu0 0
      %1703 = vmatprep.subr.bf16.mxu0 0
      %1704 = vmatpush2.bf16.msra.mxu0 0
      %1705 = vmatprep.subr.bf16.mxu0 0
      %1706 = vmatpush2.bf16.msra.mxu0 0
      %1707 = vmatprep.mubr.bf16.mxu0 0
      %1708 = vmatmul.mubr.bf16.gmra.mxu0 %v1613
      %v1709 = vpop.f32.mrf.mxu0
      %v1710 = vadd.f32 0.0, %v1709
      %v1711 = vpop.f32.mrf.mxu0
      %v1712 = vpop.f32.mrf.mxu0
      %v1713 = vadd.f32 0.0, %v1712
      %v1714 = vpop.f32.mrf.mxu0
      %1715 = vmatprep.mubr.bf16.mxu0 0
      %1716 = vmatmul.mubr.bf16.gmra.mxu0 %v1615
      %v1717 = vpop.f32.mrf.mxu0
      %v1718 = vadd.f32 0.0, %v1717
      %v1719 = vpop.f32.mrf.mxu0
      %v1720 = vpop.f32.mrf.mxu0
      %v1721 = vadd.f32 0.0, %v1720
      %v1722 = vpop.f32.mrf.mxu0
      %1723 = vmatprep.mubr.bf16.mxu0 0
      %1724 = vmatmul.mubr.bf16.gmra.mxu0 %v1617
      %v1725 = vpop.f32.mrf.mxu0
      %v1726 = vadd.f32 0.0, %v1725
      %v1727 = vpop.f32.mrf.mxu0
      %v1728 = vpop.f32.mrf.mxu0
      %v1729 = vadd.f32 0.0, %v1728
      %v1730 = vpop.f32.mrf.mxu0
      %1731 = vmatprep.mubr.bf16.mxu0 0
      %1732 = vmatmul.mubr.bf16.gmra.mxu0 %v1619
      %v1733 = vpop.f32.mrf.mxu0
      %v1734 = vadd.f32 0.0, %v1733
      %v1735 = vpop.f32.mrf.mxu0
      %v1736 = vpop.f32.mrf.mxu0
      %v1737 = vadd.f32 0.0, %v1736
      %v1738 = vpop.f32.mrf.mxu0
      %1739 = vmatprep.mubr.bf16.mxu0 0
      %1740 = vmatmul.mubr.bf16.gmra.mxu0 %v1621
      %v1741 = vpop.f32.mrf.mxu0
      %v1742 = vadd.f32 0.0, %v1741
      %v1743 = vpop.f32.mrf.mxu0
      %v1744 = vpop.f32.mrf.mxu0
      %v1745 = vadd.f32 0.0, %v1744
      %v1746 = vpop.f32.mrf.mxu0
      %1747 = vdwg.mxu0
      %v1748 = vadd.f32 %v1583, %v1710
      %v1749 = vadd.f32 %v1584, %v1713
      %v1750 = vadd.f32 %v1585, %v1718
      %v1751 = vadd.f32 %v1586, %v1721
      %v1752 = vadd.f32 %v1587, %v1726
      %v1753 = vadd.f32 %v1588, %v1729
      %v1754 = vadd.f32 %v1589, %v1734
      %v1755 = vadd.f32 %v1590, %v1737
      %v1756 = vadd.f32 %v1591, %v1742
      %v1757 = vadd.f32 %v1592, %v1745
      %v1758 = vld [vmem:[%s2] sm:$0x1]
      %v1760 = vlaneseq
      %v1761 = vshrl.u32 %v1760, 7
      %v1762 = vsub.s32 0, %v1761
      %v1763 = vrot.slane %v1758, %v1762
      %v1765 = vadd.f32 %v1748, %v1763
      %v1766 = vadd.f32 %v1749, %v1763
      %v1767 = vadd.f32 %v1750, %v1763
      %v1768 = vadd.f32 %v1751, %v1763
      %v1769 = vadd.f32 %v1752, %v1763
      %v1770 = vadd.f32 %v1753, %v1763
      %v1771 = vadd.f32 %v1754, %v1763
      %v1772 = vadd.f32 %v1755, %v1763
      %v1773 = vadd.f32 %v1756, %v1763
      %v1774 = vadd.f32 %v1757, %v1763
      %v1775 = vmax.f32 %v1765, 0.0
      %v1776 = vmax.f32 %v1766, 0.0
      %v1777 = vmax.f32 %v1767, 0.0
      %v1778 = vmax.f32 %v1768, 0.0
      %v1779 = vmax.f32 %v1769, 0.0
      %v1780 = vmax.f32 %v1770, 0.0
      %v1781 = vmax.f32 %v1771, 0.0
      %v1782 = vmax.f32 %v1772, 0.0
      %v1783 = vmax.f32 %v1773, 0.0
      %v1784 = vmax.f32 %v1774, 0.0
      %v1785 = vpack.c.bf16 %v1776, %v1775
      %v1786 = vpack.c.bf16 %v1778, %v1777
      %v1787 = vpack.c.bf16 %v1780, %v1779
      %v1788 = vpack.c.bf16 %v1782, %v1781
      %v1789 = vpack.c.bf16 %v1784, %v1783
      %v1795 = vunpack.c.l.b16 %v1785
      %v1796 = vunpack.c.h.b16 %v1785
      %v1797 = vunpack.c.l.b16 %v1786
      %v1798 = vunpack.c.h.b16 %v1786
      %v1799 = vunpack.c.l.b16 %v1787
      %v1800 = vunpack.c.h.b16 %v1787
      %v1801 = vunpack.c.l.b16 %v1788
      %v1802 = vunpack.c.h.b16 %v1788
      %v1803 = vunpack.c.l.b16 %v1789
      %v1804 = vunpack.c.h.b16 %v1789
      %v1805 = vpack.c.b16 %v1795, %v1795
      %v1806 = vpack.c.b16 %v1796, %v1796
      %v1807 = vpack.c.b16 %v1797, %v1797
      %v1808 = vpack.c.b16 %v1798, %v1798
      %v1809 = vpack.c.b16 %v1799, %v1799
      %v1810 = vpack.c.b16 %v1800, %v1800
      %v1811 = vpack.c.b16 %v1801, %v1801
      %v1812 = vpack.c.b16 %v1802, %v1802
      %v1813 = vpack.c.b16 %v1803, %v1803
      %v1814 = vpack.c.b16 %v1804, %v1804
      %1825 = vst [vmem:[%s170] sm:$0xf] %v1805
      %1826 = vst [vmem:[%s170 + $0x4] sm:$0xf] %v1806
      %1827 = vst [vmem:[%s170 + $0x8] sm:$0xf] %v1807
      %1828 = vst [vmem:[%s170 + $0xc] sm:$0xf] %v1808
      %1829 = vst [vmem:[%s170 + $0x10] sm:$0xf] %v1809
      %1830 = vst [vmem:[%s170 + $0x14] sm:$0xf] %v1810
      %1831 = vst [vmem:[%s170 + $0x18] sm:$0xf] %v1811
      %1832 = vst [vmem:[%s170 + $0x1c] sm:$0xf] %v1812
      %1833 = vst [vmem:[%s170 + $0x20] sm:$0xf] %v1813
      %1834 = vst [vmem:[%s170 + $0x24] sm:$0x7] %v1814
      %p1835 = scmp.lt.s32.totalorder %s14, 3
      %s1836 = scalar_select %p1835, %s14, 3
      %s1837 = smul.addr %s1836, 10
      %s1838 = smul.addr %s1837, 4
      %s1839 = scalar_lea.vmem %s3, %s1838
      // Predicated region
      $region33: #{bigbigan_forward.7} parent=31 // pred_check
        %p1840 = pneg %p100
      $region34: #{bigbigan_forward.7} parent=31 // pred_check_branch
        %1842 = sbr.rel (%p1840) target = $region36
      $region35: #{bigbigan_forward.7} parent=31 // pred_region
        _
      $region36: #{bigbigan_forward.7} parent=31 // pred_fallthru
        _
    $region32: #{bigbigan_forward.7} parent=5 // pred_fallthru
      _
    %p1843 = scmp.le.s32.totalorder 2, %s9
    // Predicated region
    $region37: #{bigbigan_forward.7} parent=5 // pred_check
      %p1844 = pneg %p1843
    $region38: #{bigbigan_forward.7} parent=5 // pred_check_branch
      %1846 = sbr.rel (%p1844) target = $region40
    $region39: #{bigbigan_forward.7} parent=5 // pred_region
      %s1847 = ssub.s32 %s9, 2
      // Predicated region
      $region41: #{bigbigan_forward.7} parent=39 // pred_check
        %p1848 = pneg %p106
      $region42: #{bigbigan_forward.7} parent=39 // pred_check_branch
        %1850 = sbr.rel (%p1848) target = $region44
      $region43: #{bigbigan_forward.7} parent=39 // pred_region
        %p1851 = scmp.lt.s32.totalorder %s15, 3
        %s1852 = scalar_select %p1851, %s15, 3
        %s1853 = smul.addr %s1852, 10
        %s1854 = smul.addr %s1853, 4
        %s1855 = scalar_lea.vmem %s3, %s1854
      $region44: #{bigbigan_forward.7} parent=39 // pred_fallthru
        _
    $region40: #{bigbigan_forward.7} parent=5 // pred_fallthru
      _
  $region6: #{bigbigan_forward.7} parent=0 // loop_footer
    %s13 = sadd.s32 1, %s9
  $region7: #{bigbigan_forward.7} parent=0 // loop_footer_branch
    %8 = sbr.rel target = $region3
  $region8: #{bigbigan_forward.7} parent=0 // loop_exit
    _

// kernel: bigbigan_forward.5
$region0: #{bigbigan_forward.5}
  #allocation0 [shape = 'u32[]', space=smem, size = 0x4, offset = 0x4, fixed_abs, tag = 'smem constant byte address 0x4 - core index']
  #allocation1 [shape = 'u32[144,128]{1,0:T(1,128)}', space=vmem, size = 0x12000, scoped, tag = 'internal scratch']
  #allocation2 [shape = 'f32[1,1]{1,0:T(1,128)S(6)}', space=smem, size = 0x200, scoped, tag = 'scoped memory for bigbigan_forward.5']
  %s0 = inlined_call_operand.vmem [shape: bf16[4,32], index: 0, kind: input, shape index: {}]
  %s1 = inlined_call_operand.vmem [shape: bf16[32,128], index: 1, kind: input, shape index: {}]
  %s2 = inlined_call_operand.vmem [shape: f32[1,128], index: 2, kind: input, shape index: {}]
  %s3 = inlined_call_operand.vmem [shape: bf16[128,128], index: 3, kind: input, shape index: {}]
  %s4 = inlined_call_operand.vmem [shape: f32[1,128], index: 4, kind: input, shape index: {}]
  %s5 = inlined_call_operand.vmem [shape: f32[1,128], index: 5, kind: input, shape index: {}]
  %s6 = inlined_call_operand.<no memory space> [shape: f32[1,1], index: 6, kind: input, shape index: {}]
  %s7 = inlined_call_operand.vmem [shape: bf16[4,128], index: 7, kind: output, shape index: {0}]
  %s8 = inlined_call_operand.vmem [shape: f32[4,1], index: 8, kind: output, shape index: {1}]
  %9 = xla_tuple %s7, %s8
  %s10 = sld [smem:[#allocation0]]
  $region46: #{bigbigan_forward.5} parent=0
    _
  %s12 = ssub.s32 1, %s10
  %s13 = scalar_select 0, %s12, %s10
  %14 = sst [smem:[#allocation2]] %s6
  // Predicated region
  $region2: #{bigbigan_forward.5} parent=0 // pred_check
    _
  $region3: #{bigbigan_forward.5} parent=0 // pred_check_branch
    %16 = sbr.rel (0) target = $region5
  $region4: #{bigbigan_forward.5} parent=0 // pred_region
    _
  $region5: #{bigbigan_forward.5} parent=0 // pred_fallthru
    _
  // Predicated region
  $region6: #{bigbigan_forward.5} parent=0 // pred_check
    _
  $region7: #{bigbigan_forward.5} parent=0 // pred_check_branch
    %18 = sbr.rel (0) target = $region9
  $region8: #{bigbigan_forward.5} parent=0 // pred_region
    _
  $region9: #{bigbigan_forward.5} parent=0 // pred_fallthru
    _
  // Predicated region
  $region10: #{bigbigan_forward.5} parent=0 // pred_check
    _
  $region11: #{bigbigan_forward.5} parent=0 // pred_check_branch
    %20 = sbr.rel (0) target = $region13
  $region12: #{bigbigan_forward.5} parent=0 // pred_region
    _
  $region13: #{bigbigan_forward.5} parent=0 // pred_fallthru
    _
  // Predicated region
  $region14: #{bigbigan_forward.5} parent=0 // pred_check
    _
  $region15: #{bigbigan_forward.5} parent=0 // pred_check_branch
    %22 = sbr.rel (0) target = $region17
  $region16: #{bigbigan_forward.5} parent=0 // pred_region
    _
  $region17: #{bigbigan_forward.5} parent=0 // pred_fallthru
    _
  // Predicated region
  $region18: #{bigbigan_forward.5} parent=0 // pred_check
    _
  $region19: #{bigbigan_forward.5} parent=0 // pred_check_branch
    %24 = sbr.rel (0) target = $region21
  $region20: #{bigbigan_forward.5} parent=0 // pred_region
    _
  $region21: #{bigbigan_forward.5} parent=0 // pred_fallthru
    _
  // Predicated region
  $region22: #{bigbigan_forward.5} parent=0 // pred_check
    _
  $region23: #{bigbigan_forward.5} parent=0 // pred_check_branch
    %26 = sbr.rel (0) target = $region25
  $region24: #{bigbigan_forward.5} parent=0 // pred_region
    _
  $region25: #{bigbigan_forward.5} parent=0 // pred_fallthru
    _
  // Predicated region
  $region26: #{bigbigan_forward.5} parent=0 // pred_check
    _
  $region27: #{bigbigan_forward.5} parent=0 // pred_check_branch
    %28 = sbr.rel (0) target = $region29
  $region28: #{bigbigan_forward.5} parent=0 // pred_region
    _
  $region29: #{bigbigan_forward.5} parent=0 // pred_fallthru
    _
  %v30 = vld [vmem:[%s0] sm:$0x3]
  %v31 = vld [vmem:[%s1] sm:$0xf]
  %v32 = vld [vmem:[%s1 + $0x4] sm:$0xf]
  %v33 = vld [vmem:[%s1 + $0x8] sm:$0xf]
  %v34 = vld [vmem:[%s1 + $0xc] sm:$0xf]
  %v35 = vld [vmem:[%s2] sm:$0x1]
  %v37 = vlaneseq
  %v38 = vshrl.u32 %v37, 7
  %v39 = vsub.s32 0, %v38
  %v40 = vrot.slane %v35, %v39
  %v46 = vunpack.c.l.b16 %v31
  %v47 = vunpack.c.l.b16 %v32
  %v48 = vunpack.c.l.b16 %v33
  %v49 = vunpack.c.l.b16 %v34
  %v50 = vpack.c.b16 %v47, %v46
  %v51 = vpack.c.b16 %v49, %v48
  %vm54 = vcmask 261120
  %v56 = vsel %vm54, %v30, 0
  %58 = vmatprep.subr.bf16.mxu0 0
  %59 = vmatpush1.bf16.msra.mxu0 0
  %60 = vmatprep.subr.bf16.mxu0 0
  %61 = vmatpush1.bf16.msra.mxu0 0
  %62 = vmatprep.subr.bf16.mxu0 0
  %63 = vmatpush1.bf16.msra.mxu0 0
  %64 = vmatprep.subr.bf16.mxu0 0
  %65 = vmatpush1.bf16.msra.mxu0 0
  %66 = vmatprep.subr.bf16.mxu0 0
  %67 = vmatpush1.bf16.msra.mxu0 0
  %68 = vmatprep.subr.bf16.mxu0 0
  %69 = vmatpush1.bf16.msra.mxu0 0
  %70 = vmatprep.subr.bf16.mxu0 0
  %71 = vmatpush1.bf16.msra.mxu0 %v51
  %72 = vmatprep.subr.bf16.mxu0 0
  %73 = vmatpush1.bf16.msra.mxu0 %v50
  %74 = vmatprep.subr.bf16.mxu0 0
  %75 = vmatpush2.bf16.msra.mxu0 0
  %76 = vmatprep.subr.bf16.mxu0 0
  %77 = vmatpush2.bf16.msra.mxu0 0
  %78 = vmatprep.subr.bf16.mxu0 0
  %79 = vmatpush2.bf16.msra.mxu0 0
  %80 = vmatprep.subr.bf16.mxu0 0
  %81 = vmatpush2.bf16.msra.mxu0 0
  %82 = vmatprep.subr.bf16.mxu0 0
  %83 = vmatpush2.bf16.msra.mxu0 0
  %84 = vmatprep.subr.bf16.mxu0 0
  %85 = vmatpush2.bf16.msra.mxu0 0
  %86 = vmatprep.subr.bf16.mxu0 0
  %87 = vmatpush2.bf16.msra.mxu0 0
  %88 = vmatprep.subr.bf16.mxu0 0
  %89 = vmatpush2.bf16.msra.mxu0 0
  %90 = vmatprep.mubr.bf16.mxu0 0
  %91 = vmatmul.mubr.bf16.gmra.mxu0 %v56
  %v92 = vpop.f32.mrf.mxu0
  %v93 = vadd.f32 %v40, %v92
  %v94 = vpop.f32.mrf.mxu0
  %v95 = vpop.f32.mrf.mxu0
  %v96 = vpop.f32.mrf.mxu0
  %97 = vdwg.mxu0
  %v98 = vmax.f32 %v93, 0.0
  %v99 = vpack.c.bf16 %v98, %v98
  %v100 = vld [vmem:[%s3] sm:$0xf]
  %v101 = vld [vmem:[%s3 + $0x4] sm:$0xf]
  %v102 = vld [vmem:[%s3 + $0x8] sm:$0xf]
  %v103 = vld [vmem:[%s3 + $0xc] sm:$0xf]
  %v104 = vld [vmem:[%s3 + $0x10] sm:$0xf]
  %v105 = vld [vmem:[%s3 + $0x14] sm:$0xf]
  %v106 = vld [vmem:[%s3 + $0x18] sm:$0xf]
  %v107 = vld [vmem:[%s3 + $0x1c] sm:$0xf]
  %v108 = vld [vmem:[%s3 + $0x20] sm:$0xf]
  %v109 = vld [vmem:[%s3 + $0x24] sm:$0xf]
  %v110 = vld [vmem:[%s3 + $0x28] sm:$0xf]
  %v111 = vld [vmem:[%s3 + $0x2c] sm:$0xf]
  %v112 = vld [vmem:[%s3 + $0x30] sm:$0xf]
  %v113 = vld [vmem:[%s3 + $0x34] sm:$0xf]
  %v114 = vld [vmem:[%s3 + $0x38] sm:$0xf]
  %v115 = vld [vmem:[%s3 + $0x3c] sm:$0xf]
  %v116 = vld [vmem:[%s4] sm:$0x1]
  %v118 = vlaneseq
  %v119 = vshrl.u32 %v118, 7
  %v120 = vsub.s32 0, %v119
  %v121 = vrot.slane %v116, %v120
  %v139 = vunpack.c.l.b16 %v100
  %v140 = vunpack.c.l.b16 %v101
  %v141 = vunpack.c.l.b16 %v102
  %v142 = vunpack.c.l.b16 %v103
  %v143 = vunpack.c.l.b16 %v104
  %v144 = vunpack.c.l.b16 %v105
  %v145 = vunpack.c.l.b16 %v106
  %v146 = vunpack.c.l.b16 %v107
  %v147 = vunpack.c.l.b16 %v108
  %v148 = vunpack.c.l.b16 %v109
  %v149 = vunpack.c.l.b16 %v110
  %v150 = vunpack.c.l.b16 %v111
  %v151 = vunpack.c.l.b16 %v112
  %v152 = vunpack.c.l.b16 %v113
  %v153 = vunpack.c.l.b16 %v114
  %v154 = vunpack.c.l.b16 %v115
  %v155 = vpack.c.b16 %v140, %v139
  %v156 = vpack.c.b16 %v142, %v141
  %v157 = vpack.c.b16 %v144, %v143
  %v158 = vpack.c.b16 %v146, %v145
  %v159 = vpack.c.b16 %v148, %v147
  %v160 = vpack.c.b16 %v150, %v149
  %v161 = vpack.c.b16 %v152, %v151
  %v162 = vpack.c.b16 %v154, %v153
  %171 = vmatprep.subr.bf16.mxu0 0
  %172 = vmatpush1.bf16.msra.mxu0 %v162
  %173 = vmatprep.subr.bf16.mxu0 0
  %174 = vmatpush1.bf16.msra.mxu0 %v161
  %175 = vmatprep.subr.bf16.mxu0 0
  %176 = vmatpush1.bf16.msra.mxu0 %v160
  %177 = vmatprep.subr.bf16.mxu0 0
  %178 = vmatpush1.bf16.msra.mxu0 %v159
  %179 = vmatprep.subr.bf16.mxu0 0
  %180 = vmatpush1.bf16.msra.mxu0 %v158
  %181 = vmatprep.subr.bf16.mxu0 0
  %182 = vmatpush1.bf16.msra.mxu0 %v157
  %183 = vmatprep.subr.bf16.mxu0 0
  %184 = vmatpush1.bf16.msra.mxu0 %v156
  %185 = vmatprep.subr.bf16.mxu0 0
  %186 = vmatpush1.bf16.msra.mxu0 %v155
  %187 = vmatprep.subr.bf16.mxu0 0
  %188 = vmatpush2.bf16.msra.mxu0 0
  %189 = vmatprep.subr.bf16.mxu0 0
  %190 = vmatpush2.bf16.msra.mxu0 0
  %191 = vmatprep.subr.bf16.mxu0 0
  %192 = vmatpush2.bf16.msra.mxu0 0
  %193 = vmatprep.subr.bf16.mxu0 0
  %194 = vmatpush2.bf16.msra.mxu0 0
  %195 = vmatprep.subr.bf16.mxu0 0
  %196 = vmatpush2.bf16.msra.mxu0 0
  %197 = vmatprep.subr.bf16.mxu0 0
  %198 = vmatpush2.bf16.msra.mxu0 0
  %199 = vmatprep.subr.bf16.mxu0 0
  %200 = vmatpush2.bf16.msra.mxu0 0
  %201 = vmatprep.subr.bf16.mxu0 0
  %202 = vmatpush2.bf16.msra.mxu0 0
  %203 = vmatprep.mubr.bf16.mxu0 0
  %204 = vmatmul.mubr.bf16.gmra.mxu0 %v99
  %v205 = vpop.f32.mrf.mxu0
  %v206 = vadd.f32 %v121, %v205
  %v207 = vpop.f32.mrf.mxu0
  %v208 = vpop.f32.mrf.mxu0
  %v209 = vpop.f32.mrf.mxu0
  %210 = vdwg.mxu0
  %v211 = vmax.f32 %v206, 0.0
  %v212 = vld [vmem:[%s5] sm:$0x1]
  %v214 = vlaneseq
  %v215 = vshrl.u32 %v214, 7
  %v216 = vsub.s32 0, %v215
  %v217 = vrot.slane %v212, %v216
  %v219 = vmul.f32 %v211, %v217
  %vm220 = vcmask 1043456
  %v221 = vsel %vm220, %v219, 0.0
  %222 = vadd.xlane.f32.xlu0 %v221
  %v223 = vpop.xlane.xlu0 %222
  %s224 = sld [smem:[#allocation2]]
  %v225 = vstv %s224
  %v226 = vadd.f32 %v223, %v225
  %vm227 = vcmask 3072
  %228 = vst.msk [vmem:[%s8] sm:$0xf] %vm227, %v226
  %v229 = vpack.c.bf16 %v211, %v211
  %230 = vst [vmem:[%s7] sm:$0x3] %v229
  // Predicated region
  $region30: #{bigbigan_forward.5} parent=0 // pred_check
    _
  $region31: #{bigbigan_forward.5} parent=0 // pred_check_branch
    %232 = sbr.rel (0) target = $region33
  $region32: #{bigbigan_forward.5} parent=0 // pred_region
    _
  $region33: #{bigbigan_forward.5} parent=0 // pred_fallthru
    _
  // Predicated region
  $region34: #{bigbigan_forward.5} parent=0 // pred_check
    _
  $region35: #{bigbigan_forward.5} parent=0 // pred_check_branch
    %234 = sbr.rel (0) target = $region37
  $region36: #{bigbigan_forward.5} parent=0 // pred_region
    _
  $region37: #{bigbigan_forward.5} parent=0 // pred_fallthru
    _
  // Predicated region
  $region38: #{bigbigan_forward.5} parent=0 // pred_check
    _
  $region39: #{bigbigan_forward.5} parent=0 // pred_check_branch
    %236 = sbr.rel (0) target = $region41
  $region40: #{bigbigan_forward.5} parent=0 // pred_region
    _
  $region41: #{bigbigan_forward.5} parent=0 // pred_fallthru
    _
  // Predicated region
  $region42: #{bigbigan_forward.5} parent=0 // pred_check
    _
  $region43: #{bigbigan_forward.5} parent=0 // pred_check_branch
    %238 = sbr.rel (0) target = $region45
  $region44: #{bigbigan_forward.5} parent=0 // pred_region
    _
  $region45: #{bigbigan_forward.5} parent=0 // pred_fallthru
    _

// kernel: bigbigan_forward.9
$region0: #{bigbigan_forward.9}
  #allocation0 [shape = 'u32[]', space=smem, size = 0x4, offset = 0x4, fixed_abs, tag = 'smem constant byte address 0x4 - core index']
  #allocation1 [shape = 'u32[144,128]{1,0:T(1,128)}', space=vmem, size = 0x12000, scoped, tag = 'internal scratch']
  #allocation2 [shape = 'f32[1,1]{1,0:T(1,128)S(6)}', space=smem, size = 0x200, scoped, tag = 'scoped memory for bigbigan_forward.9']
  %s0 = inlined_call_operand.vmem [shape: bf16[4,256], index: 0, kind: input, shape index: {}]
  %s1 = inlined_call_operand.vmem [shape: bf16[256,128], index: 1, kind: input, shape index: {}]
  %s2 = inlined_call_operand.vmem [shape: f32[1,128], index: 2, kind: input, shape index: {}]
  %s3 = inlined_call_operand.vmem [shape: bf16[128,128], index: 3, kind: input, shape index: {}]
  %s4 = inlined_call_operand.vmem [shape: f32[1,128], index: 4, kind: input, shape index: {}]
  %s5 = inlined_call_operand.vmem [shape: f32[1,128], index: 5, kind: input, shape index: {}]
  %s6 = inlined_call_operand.<no memory space> [shape: f32[1,1], index: 6, kind: input, shape index: {}]
  %s7 = inlined_call_operand.hbm [shape: bf16[4,128], index: 7, kind: output, shape index: {0}]
  %s8 = inlined_call_operand.vmem [shape: f32[4,1], index: 8, kind: output, shape index: {1}]
  %9 = xla_tuple %s7, %s8
  %s10 = sld [smem:[#allocation0]]
  $region46: #{bigbigan_forward.9} parent=0
    _
  %s12 = ssub.s32 1, %s10
  %s13 = scalar_select 0, %s12, %s10
  %14 = sst [smem:[#allocation2]] %s6
  $region1: #{bigbigan_forward.9} parent=0
    #allocation3 [shape = 'u8[1024]{0}', space=vmem, size = 0x400, scoped, tag = 'output window, operand 0, single buffered']
    #allocation4 [shape = 's32[1]{0}', space=sflag, size = 0x4, scoped, tag = 'scoped memory for bigbigan_forward.9']
    %15 = vsyncpa [#allocation4], 0
    // Predicated region
    $region2: #{bigbigan_forward.9} parent=1 // pred_check
      _
    $region3: #{bigbigan_forward.9} parent=1 // pred_check_branch
      %17 = sbr.rel (0) target = $region5
    $region4: #{bigbigan_forward.9} parent=1 // pred_region
      _
    $region5: #{bigbigan_forward.9} parent=1 // pred_fallthru
      _
    // Predicated region
    $region6: #{bigbigan_forward.9} parent=1 // pred_check
      _
    $region7: #{bigbigan_forward.9} parent=1 // pred_check_branch
      %19 = sbr.rel (0) target = $region9
    $region8: #{bigbigan_forward.9} parent=1 // pred_region
      _
    $region9: #{bigbigan_forward.9} parent=1 // pred_fallthru
      _
    // Predicated region
    $region10: #{bigbigan_forward.9} parent=1 // pred_check
      _
    $region11: #{bigbigan_forward.9} parent=1 // pred_check_branch
      %21 = sbr.rel (0) target = $region13
    $region12: #{bigbigan_forward.9} parent=1 // pred_region
      _
    $region13: #{bigbigan_forward.9} parent=1 // pred_fallthru
      _
    // Predicated region
    $region14: #{bigbigan_forward.9} parent=1 // pred_check
      _
    $region15: #{bigbigan_forward.9} parent=1 // pred_check_branch
      %23 = sbr.rel (0) target = $region17
    $region16: #{bigbigan_forward.9} parent=1 // pred_region
      _
    $region17: #{bigbigan_forward.9} parent=1 // pred_fallthru
      _
    // Predicated region
    $region18: #{bigbigan_forward.9} parent=1 // pred_check
      _
    $region19: #{bigbigan_forward.9} parent=1 // pred_check_branch
      %25 = sbr.rel (0) target = $region21
    $region20: #{bigbigan_forward.9} parent=1 // pred_region
      _
    $region21: #{bigbigan_forward.9} parent=1 // pred_fallthru
      _
    // Predicated region
    $region22: #{bigbigan_forward.9} parent=1 // pred_check
      _
    $region23: #{bigbigan_forward.9} parent=1 // pred_check_branch
      %27 = sbr.rel (0) target = $region25
    $region24: #{bigbigan_forward.9} parent=1 // pred_region
      _
    $region25: #{bigbigan_forward.9} parent=1 // pred_fallthru
      _
    // Predicated region
    $region26: #{bigbigan_forward.9} parent=1 // pred_check
      _
    $region27: #{bigbigan_forward.9} parent=1 // pred_check_branch
      %29 = sbr.rel (0) target = $region29
    $region28: #{bigbigan_forward.9} parent=1 // pred_region
      _
    $region29: #{bigbigan_forward.9} parent=1 // pred_fallthru
      _
    %v31 = vld [vmem:[%s0] sm:$0xf]
    %v32 = vld [vmem:[%s1] sm:$0xf]
    %v33 = vld [vmem:[%s1 + $0x4] sm:$0xf]
    %v34 = vld [vmem:[%s1 + $0x8] sm:$0xf]
    %v35 = vld [vmem:[%s1 + $0xc] sm:$0xf]
    %v36 = vld [vmem:[%s1 + $0x10] sm:$0xf]
    %v37 = vld [vmem:[%s1 + $0x14] sm:$0xf]
    %v38 = vld [vmem:[%s1 + $0x18] sm:$0xf]
    %v39 = vld [vmem:[%s1 + $0x1c] sm:$0xf]
    %v40 = vld [vmem:[%s1 + $0x20] sm:$0xf]
    %v41 = vld [vmem:[%s1 + $0x24] sm:$0xf]
    %v42 = vld [vmem:[%s1 + $0x28] sm:$0xf]
    %v43 = vld [vmem:[%s1 + $0x2c] sm:$0xf]
    %v44 = vld [vmem:[%s1 + $0x30] sm:$0xf]
    %v45 = vld [vmem:[%s1 + $0x34] sm:$0xf]
    %v46 = vld [vmem:[%s1 + $0x38] sm:$0xf]
    %v47 = vld [vmem:[%s1 + $0x3c] sm:$0xf]
    %v48 = vld [vmem:[%s1 + $0x40] sm:$0xf]
    %v49 = vld [vmem:[%s1 + $0x44] sm:$0xf]
    %v50 = vld [vmem:[%s1 + $0x48] sm:$0xf]
    %v51 = vld [vmem:[%s1 + $0x4c] sm:$0xf]
    %v52 = vld [vmem:[%s1 + $0x50] sm:$0xf]
    %v53 = vld [vmem:[%s1 + $0x54] sm:$0xf]
    %v54 = vld [vmem:[%s1 + $0x58] sm:$0xf]
    %v55 = vld [vmem:[%s1 + $0x5c] sm:$0xf]
    %v56 = vld [vmem:[%s1 + $0x60] sm:$0xf]
    %v57 = vld [vmem:[%s1 + $0x64] sm:$0xf]
    %v58 = vld [vmem:[%s1 + $0x68] sm:$0xf]
    %v59 = vld [vmem:[%s1 + $0x6c] sm:$0xf]
    %v60 = vld [vmem:[%s1 + $0x70] sm:$0xf]
    %v61 = vld [vmem:[%s1 + $0x74] sm:$0xf]
    %v62 = vld [vmem:[%s1 + $0x78] sm:$0xf]
    %v63 = vld [vmem:[%s1 + $0x7c] sm:$0xf]
    %v64 = vld [vmem:[%s2] sm:$0x1]
    %v66 = vlaneseq
    %v67 = vshrl.u32 %v66, 7
    %v68 = vsub.s32 0, %v67
    %v69 = vrot.slane %v64, %v68
    %v73 = vunpack.c.l.s4 1983009808
    %v74 = vunpack.c.0.s8 %v73
    %v75 = vlaneseq
    %v76 = vshrl.u32 %v75, 7
    %v77 = vsub.s32 %v74, %v76
    %v78 = vrot.slane %v31, %v77
    %v79 = vcombine.high %v78, %v78
    %v114 = vunpack.c.l.b16 %v32
    %v115 = vunpack.c.l.b16 %v33
    %v116 = vunpack.c.l.b16 %v34
    %v117 = vunpack.c.l.b16 %v35
    %v118 = vunpack.c.l.b16 %v36
    %v119 = vunpack.c.l.b16 %v37
    %v120 = vunpack.c.l.b16 %v38
    %v121 = vunpack.c.l.b16 %v39
    %v122 = vunpack.c.l.b16 %v40
    %v123 = vunpack.c.l.b16 %v41
    %v124 = vunpack.c.l.b16 %v42
    %v125 = vunpack.c.l.b16 %v43
    %v126 = vunpack.c.l.b16 %v44
    %v127 = vunpack.c.l.b16 %v45
    %v128 = vunpack.c.l.b16 %v46
    %v129 = vunpack.c.l.b16 %v47
    %v130 = vunpack.c.l.b16 %v48
    %v131 = vunpack.c.l.b16 %v49
    %v132 = vunpack.c.l.b16 %v50
    %v133 = vunpack.c.l.b16 %v51
    %v134 = vunpack.c.l.b16 %v52
    %v135 = vunpack.c.l.b16 %v53
    %v136 = vunpack.c.l.b16 %v54
    %v137 = vunpack.c.l.b16 %v55
    %v138 = vunpack.c.l.b16 %v56
    %v139 = vunpack.c.l.b16 %v57
    %v140 = vunpack.c.l.b16 %v58
    %v141 = vunpack.c.l.b16 %v59
    %v142 = vunpack.c.l.b16 %v60
    %v143 = vunpack.c.l.b16 %v61
    %v144 = vunpack.c.l.b16 %v62
    %v145 = vunpack.c.l.b16 %v63
    %v146 = vpack.c.b16 %v115, %v114
    %v147 = vpack.c.b16 %v117, %v116
    %v148 = vpack.c.b16 %v119, %v118
    %v149 = vpack.c.b16 %v121, %v120
    %v150 = vpack.c.b16 %v123, %v122
    %v151 = vpack.c.b16 %v125, %v124
    %v152 = vpack.c.b16 %v127, %v126
    %v153 = vpack.c.b16 %v129, %v128
    %v154 = vpack.c.b16 %v131, %v130
    %v155 = vpack.c.b16 %v133, %v132
    %v156 = vpack.c.b16 %v135, %v134
    %v157 = vpack.c.b16 %v137, %v136
    %v158 = vpack.c.b16 %v139, %v138
    %v159 = vpack.c.b16 %v141, %v140
    %v160 = vpack.c.b16 %v143, %v142
    %v161 = vpack.c.b16 %v145, %v144
    %178 = vmatprep.subr.bf16.mxu0 0
    %179 = vmatpush1.bf16.msra.mxu0 %v153
    %180 = vmatprep.subr.bf16.mxu0 0
    %181 = vmatpush1.bf16.msra.mxu0 %v152
    %182 = vmatprep.subr.bf16.mxu0 0
    %183 = vmatpush1.bf16.msra.mxu0 %v151
    %184 = vmatprep.subr.bf16.mxu0 0
    %185 = vmatpush1.bf16.msra.mxu0 %v150
    %186 = vmatprep.subr.bf16.mxu0 0
    %187 = vmatpush1.bf16.msra.mxu0 %v149
    %188 = vmatprep.subr.bf16.mxu0 0
    %189 = vmatpush1.bf16.msra.mxu0 %v148
    %190 = vmatprep.subr.bf16.mxu0 0
    %191 = vmatpush1.bf16.msra.mxu0 %v147
    %192 = vmatprep.subr.bf16.mxu0 0
    %193 = vmatpush1.bf16.msra.mxu0 %v146
    %194 = vmatprep.subr.bf16.mxu0 0
    %195 = vmatpush2.bf16.msra.mxu0 %v161
    %196 = vmatprep.subr.bf16.mxu0 0
    %197 = vmatpush2.bf16.msra.mxu0 %v160
    %198 = vmatprep.subr.bf16.mxu0 0
    %199 = vmatpush2.bf16.msra.mxu0 %v159
    %200 = vmatprep.subr.bf16.mxu0 0
    %201 = vmatpush2.bf16.msra.mxu0 %v158
    %202 = vmatprep.subr.bf16.mxu0 0
    %203 = vmatpush2.bf16.msra.mxu0 %v157
    %204 = vmatprep.subr.bf16.mxu0 0
    %205 = vmatpush2.bf16.msra.mxu0 %v156
    %206 = vmatprep.subr.bf16.mxu0 0
    %207 = vmatpush2.bf16.msra.mxu0 %v155
    %208 = vmatprep.subr.bf16.mxu0 0
    %209 = vmatpush2.bf16.msra.mxu0 %v154
    %210 = vmatprep.mubr.bf16.mxu0 %v79
    %211 = vmatmul.mubr.bf16.gmra.mxu0 %v78
    %v212 = vpop.f32.mrf.mxu0
    %v213 = vadd.f32 %v69, %v212
    %v214 = vpop.f32.mrf.mxu0
    %v215 = vpop.f32.mrf.mxu0
    %v216 = vpop.f32.mrf.mxu0
    %217 = vdwg.mxu0
    %v218 = vmax.f32 %v213, 0.0
    %v219 = vpack.c.bf16 %v218, %v218
    %v220 = vld [vmem:[%s3] sm:$0xf]
    %v221 = vld [vmem:[%s3 + $0x4] sm:$0xf]
    %v222 = vld [vmem:[%s3 + $0x8] sm:$0xf]
    %v223 = vld [vmem:[%s3 + $0xc] sm:$0xf]
    %v224 = vld [vmem:[%s3 + $0x10] sm:$0xf]
    %v225 = vld [vmem:[%s3 + $0x14] sm:$0xf]
    %v226 = vld [vmem:[%s3 + $0x18] sm:$0xf]
    %v227 = vld [vmem:[%s3 + $0x1c] sm:$0xf]
    %v228 = vld [vmem:[%s3 + $0x20] sm:$0xf]
    %v229 = vld [vmem:[%s3 + $0x24] sm:$0xf]
    %v230 = vld [vmem:[%s3 + $0x28] sm:$0xf]
    %v231 = vld [vmem:[%s3 + $0x2c] sm:$0xf]
    %v232 = vld [vmem:[%s3 + $0x30] sm:$0xf]
    %v233 = vld [vmem:[%s3 + $0x34] sm:$0xf]
    %v234 = vld [vmem:[%s3 + $0x38] sm:$0xf]
    %v235 = vld [vmem:[%s3 + $0x3c] sm:$0xf]
    %v236 = vld [vmem:[%s4] sm:$0x1]
    %v238 = vlaneseq
    %v239 = vshrl.u32 %v238, 7
    %v240 = vsub.s32 0, %v239
    %v241 = vrot.slane %v236, %v240
    %v259 = vunpack.c.l.b16 %v220
    %v260 = vunpack.c.l.b16 %v221
    %v261 = vunpack.c.l.b16 %v222
    %v262 = vunpack.c.l.b16 %v223
    %v263 = vunpack.c.l.b16 %v224
    %v264 = vunpack.c.l.b16 %v225
    %v265 = vunpack.c.l.b16 %v226
    %v266 = vunpack.c.l.b16 %v227
    %v267 = vunpack.c.l.b16 %v228
    %v268 = vunpack.c.l.b16 %v229
    %v269 = vunpack.c.l.b16 %v230
    %v270 = vunpack.c.l.b16 %v231
    %v271 = vunpack.c.l.b16 %v232
    %v272 = vunpack.c.l.b16 %v233
    %v273 = vunpack.c.l.b16 %v234
    %v274 = vunpack.c.l.b16 %v235
    %v275 = vpack.c.b16 %v260, %v259
    %v276 = vpack.c.b16 %v262, %v261
    %v277 = vpack.c.b16 %v264, %v263
    %v278 = vpack.c.b16 %v266, %v265
    %v279 = vpack.c.b16 %v268, %v267
    %v280 = vpack.c.b16 %v270, %v269
    %v281 = vpack.c.b16 %v272, %v271
    %v282 = vpack.c.b16 %v274, %v273
    %291 = vmatprep.subr.bf16.mxu0 0
    %292 = vmatpush1.bf16.msra.mxu0 %v282
    %293 = vmatprep.subr.bf16.mxu0 0
    %294 = vmatpush1.bf16.msra.mxu0 %v281
    %295 = vmatprep.subr.bf16.mxu0 0
    %296 = vmatpush1.bf16.msra.mxu0 %v280
    %297 = vmatprep.subr.bf16.mxu0 0
    %298 = vmatpush1.bf16.msra.mxu0 %v279
    %299 = vmatprep.subr.bf16.mxu0 0
    %300 = vmatpush1.bf16.msra.mxu0 %v278
    %301 = vmatprep.subr.bf16.mxu0 0
    %302 = vmatpush1.bf16.msra.mxu0 %v277
    %303 = vmatprep.subr.bf16.mxu0 0
    %304 = vmatpush1.bf16.msra.mxu0 %v276
    %305 = vmatprep.subr.bf16.mxu0 0
    %306 = vmatpush1.bf16.msra.mxu0 %v275
    %307 = vmatprep.subr.bf16.mxu0 0
    %308 = vmatpush2.bf16.msra.mxu0 0
    %309 = vmatprep.subr.bf16.mxu0 0
    %310 = vmatpush2.bf16.msra.mxu0 0
    %311 = vmatprep.subr.bf16.mxu0 0
    %312 = vmatpush2.bf16.msra.mxu0 0
    %313 = vmatprep.subr.bf16.mxu0 0
    %314 = vmatpush2.bf16.msra.mxu0 0
    %315 = vmatprep.subr.bf16.mxu0 0
    %316 = vmatpush2.bf16.msra.mxu0 0
    %317 = vmatprep.subr.bf16.mxu0 0
    %318 = vmatpush2.bf16.msra.mxu0 0
    %319 = vmatprep.subr.bf16.mxu0 0
    %320 = vmatpush2.bf16.msra.mxu0 0
    %321 = vmatprep.subr.bf16.mxu0 0
    %322 = vmatpush2.bf16.msra.mxu0 0
    %323 = vmatprep.mubr.bf16.mxu0 0
    %324 = vmatmul.mubr.bf16.gmra.mxu0 %v219
    %v325 = vpop.f32.mrf.mxu0
    %v326 = vadd.f32 %v241, %v325
    %v327 = vpop.f32.mrf.mxu0
    %v328 = vpop.f32.mrf.mxu0
    %v329 = vpop.f32.mrf.mxu0
    %330 = vdwg.mxu0
    %v331 = vmax.f32 %v326, 0.0
    %v332 = vld [vmem:[%s5] sm:$0x1]
    %v334 = vlaneseq
    %v335 = vshrl.u32 %v334, 7
    %v336 = vsub.s32 0, %v335
    %v337 = vrot.slane %v332, %v336
    %v339 = vmul.f32 %v331, %v337
    %vm340 = vcmask 1043456
    %v341 = vsel %vm340, %v339, 0.0
    %342 = vadd.xlane.f32.xlu0 %v341
    %v343 = vpop.xlane.xlu0 %342
    %s344 = sld [smem:[#allocation2]]
    %v345 = vstv %s344
    %v346 = vadd.f32 %v343, %v345
    %vm347 = vcmask 3072
    %348 = vst.msk [vmem:[%s8] sm:$0xf] %vm347, %v346
    %v349 = vpack.c.bf16 %v331, %v331
    %350 = vst [vmem:[#allocation3] sm:$0x3] %v349
    // Predicated region
    $region30: #{bigbigan_forward.9} parent=1 // pred_check
      _
    $region31: #{bigbigan_forward.9} parent=1 // pred_check_branch
      %352 = sbr.rel (0) target = $region33
    $region32: #{bigbigan_forward.9} parent=1 // pred_region
      %s354 = ssub.s32 32, 32
      %355 = vsyncadd [#allocation4], %s354
      %s357 = sshll.u32 [#allocation3], 4
      %s358 = int_to_ptr.vmem [resolvable:$true] %s357
      %360 = dma.vmem_to_hbm [thread:$0]  %s358, 32, %s7, [#allocation4]
    $region33: #{bigbigan_forward.9} parent=1 // pred_fallthru
      _
    // Predicated region
    $region34: #{bigbigan_forward.9} parent=1 // pred_check
      _
    $region35: #{bigbigan_forward.9} parent=1 // pred_check_branch
      %362 = sbr.rel (0) target = $region37
    $region36: #{bigbigan_forward.9} parent=1 // pred_region
      _
    $region37: #{bigbigan_forward.9} parent=1 // pred_fallthru
      _
    // Predicated region
    $region38: #{bigbigan_forward.9} parent=1 // pred_check
      _
    $region39: #{bigbigan_forward.9} parent=1 // pred_check_branch
      %364 = sbr.rel (0) target = $region41
    $region40: #{bigbigan_forward.9} parent=1 // pred_region
      %365 = dma.done [#allocation4], 32
    $region41: #{bigbigan_forward.9} parent=1 // pred_fallthru
      _
    // Predicated region
    $region42: #{bigbigan_forward.9} parent=1 // pred_check
      _
    $region43: #{bigbigan_forward.9} parent=1 // pred_check_branch
      %367 = sbr.rel (0) target = $region45
    $region44: #{bigbigan_forward.9} parent=1 // pred_region
      _
    $region45: #{bigbigan_forward.9} parent=1 // pred_fallthru
      _
    %368 = vsyncpa [#allocation4], 1

</llo_original>
